<compile_context>
chip_gen: v7x
topology: tpu7x:2x2x1
jax: 0.10.0
libtpu: 0.0.40
codegen_flags: <defaults>
</compile_context>

<pallas_src>
import functools

import numpy as np
import jax
import jax.numpy as jnp
from jax import lax
from jax.experimental import pallas as pl
from jax.experimental.pallas import tpu as pltpu


def _round_up(x, m):
    return (x + m - 1) // m * m


def _pick_task_block(t, max_tb=8):
    """Largest divisor of t that is <= max_tb (tasks per grid step)."""
    tb = 1
    for c in range(1, min(t, max_tb) + 1):
        if t % c == 0:
            tb = c
    return tb


# ----------------------------------------------------------------------------
# Fused MAML kernel: one grid step processes a block of TB tasks.
# ----------------------------------------------------------------------------
def _meta_block_kernel(xs_ref, ys_ref, xq_ref, yq_ref, w_ref, b_ref,
                       stats_ref, gwm_ref, gbm_ref,
                       *, update_lr, update_step, tasks_per_block):
    """
    Shapes inside the kernel:
      xs [TB, Ns, D] bf16   ys [TB, Ns, Cp] f32
      xq [TB, Nq, D] bf16   yq [TB, Nq, Cp] f32
      w  [D, Cp] f32        b  [1, Cp] f32  (padded class lanes hold -1e30)
      stats [8, 128] f32    row 0: sum losses_q, row 1: sum corrects
                            (lane = inner-step index, summed over ALL tasks)
      gwm [D, Cp], gbm [1, Cp]   first-order meta gradient summed over tasks
    """
    K = update_step
    TB = tasks_per_block
    Ns = xs_ref.shape[1]
    Nq = xq_ref.shape[1]
    D = w_ref.shape[0]
    Cp = w_ref.shape[1]

    # Outputs are resident accumulators (constant out index_map + "arbitrary").
    @pl.when(pl.program_id(0) == 0)
    def _init():
        stats_ref[...] = jnp.zeros_like(stats_ref)
        gwm_ref[...] = jnp.zeros_like(gwm_ref)
        gbm_ref[...] = jnp.zeros_like(gbm_ref)

    w0 = w_ref[...]                 # f32 master weights
    b0 = b_ref[...]                 # f32 bias; padded lanes already -1e30
    w0_bf = w0.astype(jnp.bfloat16)

    col_q = lax.broadcasted_iota(jnp.int32, (Nq, Cp), 1)    # hoisted
    inv_ns = jnp.float32(1.0 / Ns)
    inv_nq = jnp.float32(1.0 / Nq)

    def logits_of(x_bf, w_bf, b):
        # bf16 MXU matmul, f32 accumulate; class mask comes from -1e30 bias.
        return jnp.dot(x_bf, w_bf, preferred_element_type=jnp.float32) + b

    def softmax_p(logits):
        m = jnp.max(logits, axis=-1, keepdims=True)
        e = jnp.exp(logits - m)
        s = jnp.sum(e, axis=-1, keepdims=True)
        return e * pl.reciprocal(s, approx=True)             # EUP reciprocal

    def ce_grad(x_bf, y_oh, w_bf, b, inv_n):
        # grad of mean cross-entropy wrt (w, b); no transpose: contract the
        # sample axis of both operands directly on the MXU.
        logits = logits_of(x_bf, w_bf, b)
        d = (softmax_p(logits) - y_oh) * inv_n                # [n, Cp] f32
        gw = lax.dot_general(x_bf, d.astype(jnp.bfloat16),
                             dimension_numbers=(((0,), (0,)), ((), ())),
                             preferred_element_type=jnp.float32)   # [D, Cp]
        gb = jnp.sum(d, axis=0, keepdims=True)                 # [1, Cp]
        return gw, gb

    def query_eval(xq_bf, yq_oh, yq_idx, w_bf, b):
        logits = logits_of(xq_bf, w_bf, b)
        m = jnp.max(logits, axis=-1, keepdims=True)
        lse = m + jnp.log(jnp.sum(jnp.exp(logits - m), axis=-1, keepdims=True))
        picked = jnp.sum(yq_oh * logits, axis=-1, keepdims=True)
        loss = jnp.sum(lse - picked) * inv_nq
        # argmax(softmax) == argmax(logits); first-index tie-break like torch.
        pred = jnp.min(jnp.where(logits == m, col_q, Cp), axis=-1,
                       keepdims=True)
        corr = jnp.sum((pred == yq_idx).astype(jnp.float32))
        return loss, corr

    loss_steps = [jnp.float32(0.0)] * (K + 1)
    corr_steps = [jnp.float32(0.0)] * (K + 1)
    gw_blk = jnp.zeros((D, Cp), jnp.float32)
    gb_blk = jnp.zeros((1, Cp), jnp.float32)

    for tb in range(TB):                      # TB static & small -> unrolled
        xs_bf = xs_ref[tb]
        ys = ys_ref[tb]
        xq_bf = xq_ref[tb]
        yq = yq_ref[tb]
        yq_idx = jnp.sum(yq * col_q.astype(jnp.float32), axis=-1,
                         keepdims=True).astype(jnp.int32)

        # Query with the original params (before any update).
        l0, c0 = query_eval(xq_bf, yq, yq_idx, w0_bf, b0)
        loss_steps[0] = loss_steps[0] + l0
        corr_steps[0] = corr_steps[0] + c0

        # Inner step 0: grad on support set with theta, SGD update.
        gw, gb = ce_grad(xs_bf, ys, w0_bf, b0, inv_ns)
        fw = w0 - update_lr * gw
        fb = b0 - update_lr * gb
        fw_bf = fw.astype(jnp.bfloat16)
        l1, c1 = query_eval(xq_bf, yq, yq_idx, fw_bf, fb)
        loss_steps[1] = loss_steps[1] + l1
        corr_steps[1] = corr_steps[1] + c1

        # Remaining inner steps (fully unrolled; K is small & static).
        for k in range(1, K):
            gw, gb = ce_grad(xs_bf, ys, fw_bf, fb, inv_ns)
            fw = fw - update_lr * gw
            fb = fb - update_lr * gb
            fw_bf = fw.astype(jnp.bfloat16)
            lk, ck = query_eval(xq_bf, yq, yq_idx, fw_bf, fb)
            loss_steps[k + 1] = loss_steps[k + 1] + lk
            corr_steps[k + 1] = corr_steps[k + 1] + ck

        # First-order meta grad of the final query loss w.r.t. the final fast
        # weights, accumulated over the whole task block.
        gwq, gbq = ce_grad(xq_bf, yq, fw_bf, fb, inv_nq)
        gw_blk = gw_blk + gwq
        gb_blk = gb_blk + gbq

    # Single lane-dense stats RMW per grid step (instead of per inner step).
    lane = lax.broadcasted_iota(jnp.int32, stats_ref.shape, 1)
    row = lax.broadcasted_iota(jnp.int32, stats_ref.shape, 0)
    acc = jnp.zeros(stats_ref.shape, jnp.float32)
    for s in range(K + 1):
        vals = jnp.where(row == 0, loss_steps[s], corr_steps[s])
        acc = acc + jnp.where((lane == s) & (row < 2), vals, 0.0)
    stats_ref[...] += acc
    gwm_ref[...] += gw_blk
    gbm_ref[...] += gb_blk


def run_meta_tasks(xs, ys_oh, xq, yq_oh, w, b, *, update_lr, update_step,
                   task_block):
    """One pallas_call over all tasks. Returns (stats, gw_meta, gb_meta)."""
    T, Ns, D = xs.shape
    Nq = xq.shape[1]
    Cp = w.shape[1]
    TB = task_block
    assert T % TB == 0

    kernel = functools.partial(_meta_block_kernel, update_lr=update_lr,
                               update_step=update_step, tasks_per_block=TB)

    # Re-derived VMEM budget (double-buffered ins/outs + f32/bf16 temporaries),
    # capped at 64 MiB so the limit is valid on v7x as well as v5e/v6e.
    est = 2 * (TB * Ns * D * 2 + TB * Ns * Cp * 4
               + TB * Nq * D * 2 + TB * Nq * Cp * 4
               + D * Cp * 4 + Cp * 4
               + 8 * 128 * 4 + D * Cp * 4 + Cp * 4) + 8 * D * Cp * 4
    vmem_limit = int(min(max(est, 32 * 2 ** 20), 64 * 2 ** 20))

    stats, gwm, gbm = pl.pallas_call(
        kernel,
        grid=(T // TB,),
        in_specs=[
            pl.BlockSpec((TB, Ns, D), lambda t: (t, 0, 0)),
            pl.BlockSpec((TB, Ns, Cp), lambda t: (t, 0, 0)),
            pl.BlockSpec((TB, Nq, D), lambda t: (t, 0, 0)),
            pl.BlockSpec((TB, Nq, Cp), lambda t: (t, 0, 0)),
            pl.BlockSpec((D, Cp), lambda t: (0, 0)),
            pl.BlockSpec((1, Cp), lambda t: (0, 0)),
        ],
        out_specs=(
            pl.BlockSpec((8, 128), lambda t: (0, 0)),   # resident accumulators
            pl.BlockSpec((D, Cp), lambda t: (0, 0)),
            pl.BlockSpec((1, Cp), lambda t: (0, 0)),
        ),
        out_shape=(
            jax.ShapeDtypeStruct((8, 128), jnp.float32),
            jax.ShapeDtypeStruct((D, Cp), jnp.float32),
            jax.ShapeDtypeStruct((1, Cp), jnp.float32),
        ),
        compiler_params=pltpu.CompilerParams(
            dimension_semantics=("arbitrary",),   # required for accumulators
            vmem_limit_bytes=vmem_limit),
    )(xs, ys_oh, xq, yq_oh, w, b)
    return stats, gwm, gbm


# ----------------------------------------------------------------------------
# Meta (MAML) forward pass driver.
# ----------------------------------------------------------------------------
class MetaPallas:
    def __init__(self, n_way, imgc, imgsz, update_lr, meta_lr, update_step,
                 key):
        assert update_step >= 1 and update_step + 1 <= 128
        self.n_way = int(n_way)
        self.update_lr = float(update_lr)
        self.meta_lr = float(meta_lr)
        self.update_step = int(update_step)

        self.D_raw = imgc * imgsz * imgsz
        self.D = _round_up(self.D_raw, 128)              # lane-friendly features
        self.Cp = _round_up(max(self.n_way, 128), 128)   # lane-dense classes

        w = jnp.zeros((self.D, self.Cp), jnp.float32)
        w = w.at[:self.D_raw, :self.n_way].set(
            jax.random.normal(key, (self.D_raw, self.n_way), jnp.float32)
            * 0.01)
        self.w = w
        # Class mask baked into the bias: padded lanes = -1e30 (their softmax
        # prob underflows to exactly 0 in f32, so their grads stay exactly 0).
        b = jnp.full((1, self.Cp), -1e30, jnp.float32)
        self.b = b.at[:, :self.n_way].set(0.0)

        # Adam state (meta optimizer).
        self.mw = jnp.zeros_like(self.w)
        self.vw = jnp.zeros_like(self.w)
        self.mb = jnp.zeros_like(self.b)
        self.vb = jnp.zeros_like(self.b)
        self.t = jnp.int32(0)

        Cp, D_raw, D = self.Cp, self.D_raw, self.D
        lr, mlr, K = self.update_lr, self.meta_lr, self.update_step

        def _forward(w, b, mw, vw, mb, vb, t, x_spt, y_spt, x_qry, y_qry):
            T, Ns = x_spt.shape[0], x_spt.shape[1]
            Nq = x_qry.shape[1]
            xs = x_spt.reshape(T, Ns, -1).astype(jnp.float32)
            xq = x_qry.reshape(T, Nq, -1).astype(jnp.float32)
            if D != D_raw:
                xs = jnp.pad(xs, ((0, 0), (0, 0), (0, D - D_raw)))
                xq = jnp.pad(xq, ((0, 0), (0, 0), (0, D - D_raw)))
            xs = xs.astype(jnp.bfloat16)      # halves x DMA/VMEM traffic
            xq = xq.astype(jnp.bfloat16)
            ys = jax.nn.one_hot(y_spt, Cp, dtype=jnp.float32)
            yq = jax.nn.one_hot(y_qry, Cp, dtype=jnp.float32)

            TB = _pick_task_block(T)
            stats, gwm, gbm = run_meta_tasks(
                xs, ys, xq, yq, w, b,
                update_lr=lr, update_step=K, task_block=TB)

            losses_q = stats[0, :K + 1]                    # [K+1] (sum over tasks)
            corrects = stats[1, :K + 1]                    # [K+1]
            accs = corrects / jnp.float32(Nq * T)

            # Meta update: Adam on the (first-order) grad of losses_q[-1]/T.
            gw = gwm / T
            gb = gbm / T
            b1, b2, eps = 0.9, 0.999, 1e-8
            t = t + 1
            mw = b1 * mw + (1 - b1) * gw
            vw = b2 * vw + (1 - b2) * gw * gw
            mb = b1 * mb + (1 - b1) * gb
            vb = b2 * vb + (1 - b2) * gb * gb
            tf = t.astype(jnp.float32)
            c1 = 1.0 - jnp.power(jnp.float32(b1), tf)
            c2 = 1.0 - jnp.power(jnp.float32(b2), tf)
            w = w - mlr * (mw / c1) / (jnp.sqrt(vw / c2) + eps)
            b = b - mlr * (mb / c1) / (jnp.sqrt(vb / c2) + eps)
            return accs, losses_q, w, b, mw, vw, mb, vb, t

        self._forward = jax.jit(_forward)

    def forward(self, x_spt, y_spt, x_qry, y_qry):
        (accs, _losses_q, self.w, self.b,
         self.mw, self.vw, self.mb, self.vb, self.t) = self._forward(
            self.w, self.b, self.mw, self.vw, self.mb, self.vb, self.t,
            x_spt, y_spt, x_qry, y_qry)
        # Single device->host transfer for the returned accuracies.
        return np.asarray(jax.device_get(accs))


# ----------------------------------------------------------------------------
if __name__ == "__main__":
    key = jax.random.PRNGKey(0)
    task_num, n_way, k_spt, k_qry = 2, 4, 2, 2
    imgc, imgsz = 1, 16
    setsz = n_way * k_spt      # 8
    querysz = n_way * k_qry    # 8

    k1, k2, k3, k4, kw = jax.random.split(key, 5)
    x_spt = jax.random.normal(
        k1, (task_num, setsz, imgc, imgsz, imgsz), jnp.float32)
    y_spt = jax.random.randint(
        k2, (task_num, setsz), 0, n_way, dtype=jnp.int32)
    x_qry = jax.random.normal(
        k3, (task_num, querysz, imgc, imgsz, imgsz), jnp.float32)
    y_qry = jax.random.randint(
        k4, (task_num, querysz), 0, n_way, dtype=jnp.int32)

    meta = MetaPallas(n_way=n_way, imgc=imgc, imgsz=imgsz,
                      update_lr=0.4, meta_lr=1e-3, update_step=3, key=kw)

    accs = meta.forward(x_spt, y_spt, x_qry, y_qry)
    jax.block_until_ready(meta.w)
    jax.block_until_ready(meta.b)
    assert accs.shape == (meta.update_step + 1,)
    assert np.all(np.isfinite(accs))
    assert np.all((accs >= 0.0) & (accs <= 1.0))
    print("KERNEL_OK")
</pallas_src>

<mosaic_0001>
module attributes {stable_mosaic.version = 11 : i64} {
  func.func @_meta_block_kernel(%arg0: i32, %arg1: memref<2x8x256xbf16, #tpu.memory_space<vmem>>, %arg2: memref<2x8x128xf32, #tpu.memory_space<vmem>>, %arg3: memref<2x8x256xbf16, #tpu.memory_space<vmem>>, %arg4: memref<2x8x128xf32, #tpu.memory_space<vmem>>, %arg5: memref<256x128xf32, #tpu.memory_space<vmem>>, %arg6: memref<1x128xf32, #tpu.memory_space<vmem>>, %arg7: memref<8x128xf32, #tpu.memory_space<vmem>>, %arg8: memref<256x128xf32, #tpu.memory_space<vmem>>, %arg9: memref<1x128xf32, #tpu.memory_space<vmem>>) attributes {dimension_semantics = [#tpu.dimension_semantics<arbitrary>], iteration_bounds = array<i64: 1>, scalar_prefetch = 0 : i64, scratch_operands = 0 : i64, tpu.core_type = #tpu.core_type<tc>, window_params = [{transform_indices = @transform_0, window_bounds = array<i64: 2, 8, 256>}, {transform_indices = @transform_1, window_bounds = array<i64: 2, 8, 128>}, {transform_indices = @transform_2, window_bounds = array<i64: 2, 8, 256>}, {transform_indices = @transform_3, window_bounds = array<i64: 2, 8, 128>}, {pipeline_mode = #tpu.pipeline_mode<synchronous>, transform_indices = @transform_4, window_bounds = array<i64: 256, 128>}, {pipeline_mode = #tpu.pipeline_mode<synchronous>, transform_indices = @transform_5, window_bounds = array<i64: 1, 128>}, {pipeline_mode = #tpu.pipeline_mode<synchronous>, transform_indices = @transform_6, window_bounds = array<i64: 8, 128>}, {pipeline_mode = #tpu.pipeline_mode<synchronous>, transform_indices = @transform_7, window_bounds = array<i64: 256, 128>}, {pipeline_mode = #tpu.pipeline_mode<synchronous>, transform_indices = @transform_8, window_bounds = array<i64: 1, 128>}]} {
    %c0_i32 = arith.constant 0 : i32
    %0 = arith.cmpi eq, %arg0, %c0_i32 : i32
    %1 = arith.extui %0 : i1 to i32
    %c0_i32_0 = arith.constant 0 : i32
    %2 = arith.cmpi ne, %1, %c0_i32_0 : i32
    scf.if %2 {
      %cst_195 = arith.constant 0.000000e+00 : f32
      %593 = vector.broadcast %cst_195 : f32 to vector<8x128xf32>
      %c0_196 = arith.constant 0 : index
      %c0_197 = arith.constant 0 : index
      %594 = vector.load %arg7[%c0_196, %c0_197] : memref<8x128xf32, #tpu.memory_space<vmem>>, vector<8x128xf32>
      tpu.vector_store %arg7[%c0_196, %c0_197], %593 {strides = array<i32>} : memref<8x128xf32, #tpu.memory_space<vmem>>, vector<8x128xf32>,
      %cst_198 = arith.constant 0.000000e+00 : f32
      %595 = vector.broadcast %cst_198 : f32 to vector<256x128xf32>
      %c0_199 = arith.constant 0 : index
      %c0_200 = arith.constant 0 : index
      %596 = vector.load %arg8[%c0_199, %c0_200] : memref<256x128xf32, #tpu.memory_space<vmem>>, vector<256x128xf32>
      tpu.vector_store %arg8[%c0_199, %c0_200], %595 {strides = array<i32>} : memref<256x128xf32, #tpu.memory_space<vmem>>, vector<256x128xf32>,
      %cst_201 = arith.constant 0.000000e+00 : f32
      %597 = vector.broadcast %cst_201 : f32 to vector<1x128xf32>
      %c0_202 = arith.constant 0 : index
      %c0_203 = arith.constant 0 : index
      %598 = vector.load %arg9[%c0_202, %c0_203] : memref<1x128xf32, #tpu.memory_space<vmem>>, vector<1x128xf32>
      tpu.vector_store %arg9[%c0_202, %c0_203], %597 {strides = array<i32>} : memref<1x128xf32, #tpu.memory_space<vmem>>, vector<1x128xf32>,
    } else {
    }
    %c0 = arith.constant 0 : index
    %c0_1 = arith.constant 0 : index
    %3 = vector.load %arg5[%c0, %c0_1] : memref<256x128xf32, #tpu.memory_space<vmem>>, vector<256x128xf32>
    %c0_2 = arith.constant 0 : index
    %c0_3 = arith.constant 0 : index
    %4 = vector.load %arg6[%c0_2, %c0_3] : memref<1x128xf32, #tpu.memory_space<vmem>>, vector<1x128xf32>
    %5 = arith.truncf %3 : vector<256x128xf32> to vector<256x128xbf16>
    %6 = tpu.iota {dimensions = array<i32: 1>} : vector<8x128xi32>
    %cst = arith.constant 0.000000e+00 : f32
    %7 = vector.broadcast %cst : f32 to vector<256x128xf32>
    %cst_4 = arith.constant 0.000000e+00 : f32
    %8 = vector.broadcast %cst_4 : f32 to vector<1x128xf32>
    %c0_5 = arith.constant 0 : index
    %c0_6 = arith.constant 0 : index
    %c0_7 = arith.constant 0 : index
    %9 = vector.load %arg1[%c0_5, %c0_6, %c0_7] : memref<2x8x256xbf16, #tpu.memory_space<vmem>>, vector<1x8x256xbf16>
    %10 = vector.shape_cast %9 : vector<1x8x256xbf16> to vector<8x256xbf16>
    %c0_8 = arith.constant 0 : index
    %c0_9 = arith.constant 0 : index
    %c0_10 = arith.constant 0 : index
    %11 = vector.load %arg2[%c0_8, %c0_9, %c0_10] : memref<2x8x128xf32, #tpu.memory_space<vmem>>, vector<1x8x128xf32>
    %12 = vector.shape_cast %11 : vector<1x8x128xf32> to vector<8x128xf32>
    %c0_11 = arith.constant 0 : index
    %c0_12 = arith.constant 0 : index
    %c0_13 = arith.constant 0 : index
    %13 = vector.load %arg3[%c0_11, %c0_12, %c0_13] : memref<2x8x256xbf16, #tpu.memory_space<vmem>>, vector<1x8x256xbf16>
    %14 = vector.shape_cast %13 : vector<1x8x256xbf16> to vector<8x256xbf16>
    %c0_14 = arith.constant 0 : index
    %c0_15 = arith.constant 0 : index
    %c0_16 = arith.constant 0 : index
    %15 = vector.load %arg4[%c0_14, %c0_15, %c0_16] : memref<2x8x128xf32, #tpu.memory_space<vmem>>, vector<1x8x128xf32>
    %16 = vector.shape_cast %15 : vector<1x8x128xf32> to vector<8x128xf32>
    %17 = arith.sitofp %6 : vector<8x128xi32> to vector<8x128xf32>
    %18 = arith.mulf %16, %17 : vector<8x128xf32>
    %cst_17 = arith.constant dense<0.000000e+00> : vector<8xf32>
    %19 = vector.multi_reduction <add>, %18, %cst_17 [1] : vector<8x128xf32> to vector<8xf32>
    %20 = vector.shape_cast %19 : vector<8xf32> to vector<8x1xf32>
    %21 = arith.fptosi %20 : vector<8x1xf32> to vector<8x1xi32>
    %cst_18 = arith.constant dense<0.000000e+00> : vector<8x128xf32>
    %22 = tpu.matmul %14, %5, %cst_18 {dimension_numbers = #tpu.dot_dimension_numbers<[1], [0], [0], [1], [0, 0, 1, 1], [], []>} : vector<8x256xbf16>, vector<256x128xbf16>, vector<8x128xf32> -> vector<8x128xf32>
    %23 = vector.broadcast %4 : vector<1x128xf32> to vector<8x128xf32>
    %24 = arith.addf %22, %23 : vector<8x128xf32>
    %cst_19 = arith.constant dense<0xFF800000> : vector<8xf32>
    %25 = vector.multi_reduction <maximumf>, %24, %cst_19 [1] : vector<8x128xf32> to vector<8xf32>
    %26 = vector.shape_cast %25 : vector<8xf32> to vector<8x1xf32>
    %27 = vector.broadcast %26 : vector<8x1xf32> to vector<8x128xf32>
    %28 = arith.subf %24, %27 : vector<8x128xf32>
    %29 = math.exp %28 : vector<8x128xf32>
    %cst_20 = arith.constant dense<0.000000e+00> : vector<8xf32>
    %30 = vector.multi_reduction <add>, %29, %cst_20 [1] : vector<8x128xf32> to vector<8xf32>
    %31 = vector.shape_cast %30 : vector<8xf32> to vector<8x1xf32>
    %32 = math.log %31 : vector<8x1xf32>
    %33 = arith.addf %26, %32 : vector<8x1xf32>
    %34 = arith.mulf %16, %24 : vector<8x128xf32>
    %cst_21 = arith.constant dense<0.000000e+00> : vector<8xf32>
    %35 = vector.multi_reduction <add>, %34, %cst_21 [1] : vector<8x128xf32> to vector<8xf32>
    %36 = vector.shape_cast %35 : vector<8xf32> to vector<8x1xf32>
    %37 = arith.subf %33, %36 : vector<8x1xf32>
    %38 = vector.shape_cast %37 : vector<8x1xf32> to vector<1x8x1xf32>
    %cst_22 = arith.constant dense<0.000000e+00> : vector<1xf32>
    %39 = vector.multi_reduction <add>, %38, %cst_22 [1, 2] : vector<1x8x1xf32> to vector<1xf32>
    %40 = vector.shape_cast %39 : vector<1xf32> to vector<1x1x1xf32>
    %41 = vector.extract %40[0, 0, 0] : f32 from vector<1x1x1xf32>
    %cst_23 = arith.constant 1.250000e-01 : f32
    %42 = arith.mulf %41, %cst_23 : f32
    %43 = vector.broadcast %26 : vector<8x1xf32> to vector<8x128xf32>
    %44 = arith.cmpf oeq, %24, %43 : vector<8x128xf32>
    %c128_i32 = arith.constant 128 : i32
    %45 = vector.broadcast %c128_i32 : i32 to vector<8x128xi32>
    %46 = arith.select %44, %6, %45 : vector<8x128xi1>, vector<8x128xi32>
    %cst_24 = arith.constant dense<2147483647> : vector<8xi32>
    %47 = vector.multi_reduction <minsi>, %46, %cst_24 [1] : vector<8x128xi32> to vector<8xi32>
    %48 = vector.shape_cast %47 : vector<8xi32> to vector<8x1xi32>
    %49 = arith.cmpi eq, %48, %21 : vector<8x1xi32>
    %50 = arith.extui %49 : vector<8x1xi1> to vector<8x1xi32>
    %51 = arith.sitofp %50 : vector<8x1xi32> to vector<8x1xf32>
    %52 = vector.shape_cast %51 : vector<8x1xf32> to vector<1x8x1xf32>
    %cst_25 = arith.constant dense<0.000000e+00> : vector<1xf32>
    %53 = vector.multi_reduction <add>, %52, %cst_25 [1, 2] : vector<1x8x1xf32> to vector<1xf32>
    %54 = vector.shape_cast %53 : vector<1xf32> to vector<1x1x1xf32>
    %55 = vector.extract %54[0, 0, 0] : f32 from vector<1x1x1xf32>
    %cst_26 = arith.constant 0.000000e+00 : f32
    %56 = arith.addf %cst_26, %42 : f32
    %cst_27 = arith.constant 0.000000e+00 : f32
    %57 = arith.addf %cst_27, %55 : f32
    %cst_28 = arith.constant dense<0.000000e+00> : vector<8x128xf32>
    %58 = tpu.matmul %10, %5, %cst_28 {dimension_numbers = #tpu.dot_dimension_numbers<[1], [0], [0], [1], [0, 0, 1, 1], [], []>} : vector<8x256xbf16>, vector<256x128xbf16>, vector<8x128xf32> -> vector<8x128xf32>
    %59 = vector.broadcast %4 : vector<1x128xf32> to vector<8x128xf32>
    %60 = arith.addf %58, %59 : vector<8x128xf32>
    %cst_29 = arith.constant dense<0xFF800000> : vector<8xf32>
    %61 = vector.multi_reduction <maximumf>, %60, %cst_29 [1] : vector<8x128xf32> to vector<8xf32>
    %62 = vector.shape_cast %61 : vector<8xf32> to vector<8x1xf32>
    %63 = vector.broadcast %62 : vector<8x1xf32> to vector<8x128xf32>
    %64 = arith.subf %60, %63 : vector<8x128xf32>
    %65 = math.exp %64 : vector<8x128xf32>
    %cst_30 = arith.constant dense<0.000000e+00> : vector<8xf32>
    %66 = vector.multi_reduction <add>, %65, %cst_30 [1] : vector<8x128xf32> to vector<8xf32>
    %67 = vector.shape_cast %66 : vector<8xf32> to vector<8x1xf32>
    %68 = tpu.reciprocal %67 {approx = true} : vector<8x1xf32> -> vector<8x1xf32>
    %69 = vector.broadcast %68 : vector<8x1xf32> to vector<8x128xf32>
    %70 = arith.mulf %65, %69 : vector<8x128xf32>
    %71 = arith.subf %70, %12 : vector<8x128xf32>
    %cst_31 = arith.constant 1.250000e-01 : f32
    %72 = vector.broadcast %cst_31 : f32 to vector<8x128xf32>
    %73 = arith.mulf %71, %72 : vector<8x128xf32>
    %74 = arith.truncf %73 : vector<8x128xf32> to vector<8x128xbf16>
    %cst_32 = arith.constant dense<0.000000e+00> : vector<256x128xf32>
    %75 = tpu.matmul %10, %74, %cst_32 {dimension_numbers = #tpu.dot_dimension_numbers<[0], [0], [1], [1], [0, 1, 1, 1], [], []>} : vector<8x256xbf16>, vector<8x128xbf16>, vector<256x128xf32> -> vector<256x128xf32>
    %cst_33 = arith.constant dense<0.000000e+00> : vector<128xf32>
    %76 = vector.multi_reduction <add>, %73, %cst_33 [0] : vector<8x128xf32> to vector<128xf32>
    %77 = vector.shape_cast %76 : vector<128xf32> to vector<1x128xf32>
    %cst_34 = arith.constant 4.000000e-01 : f32
    %78 = vector.broadcast %cst_34 : f32 to vector<256x128xf32>
    %79 = arith.mulf %78, %75 : vector<256x128xf32>
    %80 = arith.subf %3, %79 : vector<256x128xf32>
    %cst_35 = arith.constant 4.000000e-01 : f32
    %81 = vector.broadcast %cst_35 : f32 to vector<1x128xf32>
    %82 = arith.mulf %81, %77 : vector<1x128xf32>
    %83 = arith.subf %4, %82 : vector<1x128xf32>
    %84 = arith.truncf %80 : vector<256x128xf32> to vector<256x128xbf16>
    %cst_36 = arith.constant dense<0.000000e+00> : vector<8x128xf32>
    %85 = tpu.matmul %14, %84, %cst_36 {dimension_numbers = #tpu.dot_dimension_numbers<[1], [0], [0], [1], [0, 0, 1, 1], [], []>} : vector<8x256xbf16>, vector<256x128xbf16>, vector<8x128xf32> -> vector<8x128xf32>
    %86 = vector.broadcast %83 : vector<1x128xf32> to vector<8x128xf32>
    %87 = arith.addf %85, %86 : vector<8x128xf32>
    %cst_37 = arith.constant dense<0xFF800000> : vector<8xf32>
    %88 = vector.multi_reduction <maximumf>, %87, %cst_37 [1] : vector<8x128xf32> to vector<8xf32>
    %89 = vector.shape_cast %88 : vector<8xf32> to vector<8x1xf32>
    %90 = vector.broadcast %89 : vector<8x1xf32> to vector<8x128xf32>
    %91 = arith.subf %87, %90 : vector<8x128xf32>
    %92 = math.exp %91 : vector<8x128xf32>
    %cst_38 = arith.constant dense<0.000000e+00> : vector<8xf32>
    %93 = vector.multi_reduction <add>, %92, %cst_38 [1] : vector<8x128xf32> to vector<8xf32>
    %94 = vector.shape_cast %93 : vector<8xf32> to vector<8x1xf32>
    %95 = math.log %94 : vector<8x1xf32>
    %96 = arith.addf %89, %95 : vector<8x1xf32>
    %97 = arith.mulf %16, %87 : vector<8x128xf32>
    %cst_39 = arith.constant dense<0.000000e+00> : vector<8xf32>
    %98 = vector.multi_reduction <add>, %97, %cst_39 [1] : vector<8x128xf32> to vector<8xf32>
    %99 = vector.shape_cast %98 : vector<8xf32> to vector<8x1xf32>
    %100 = arith.subf %96, %99 : vector<8x1xf32>
    %101 = vector.shape_cast %100 : vector<8x1xf32> to vector<1x8x1xf32>
    %cst_40 = arith.constant dense<0.000000e+00> : vector<1xf32>
    %102 = vector.multi_reduction <add>, %101, %cst_40 [1, 2] : vector<1x8x1xf32> to vector<1xf32>
    %103 = vector.shape_cast %102 : vector<1xf32> to vector<1x1x1xf32>
    %104 = vector.extract %103[0, 0, 0] : f32 from vector<1x1x1xf32>
    %cst_41 = arith.constant 1.250000e-01 : f32
    %105 = arith.mulf %104, %cst_41 : f32
    %106 = vector.broadcast %89 : vector<8x1xf32> to vector<8x128xf32>
    %107 = arith.cmpf oeq, %87, %106 : vector<8x128xf32>
    %c128_i32_42 = arith.constant 128 : i32
    %108 = vector.broadcast %c128_i32_42 : i32 to vector<8x128xi32>
    %109 = arith.select %107, %6, %108 : vector<8x128xi1>, vector<8x128xi32>
    %cst_43 = arith.constant dense<2147483647> : vector<8xi32>
    %110 = vector.multi_reduction <minsi>, %109, %cst_43 [1] : vector<8x128xi32> to vector<8xi32>
    %111 = vector.shape_cast %110 : vector<8xi32> to vector<8x1xi32>
    %112 = arith.cmpi eq, %111, %21 : vector<8x1xi32>
    %113 = arith.extui %112 : vector<8x1xi1> to vector<8x1xi32>
    %114 = arith.sitofp %113 : vector<8x1xi32> to vector<8x1xf32>
    %115 = vector.shape_cast %114 : vector<8x1xf32> to vector<1x8x1xf32>
    %cst_44 = arith.constant dense<0.000000e+00> : vector<1xf32>
    %116 = vector.multi_reduction <add>, %115, %cst_44 [1, 2] : vector<1x8x1xf32> to vector<1xf32>
    %117 = vector.shape_cast %116 : vector<1xf32> to vector<1x1x1xf32>
    %118 = vector.extract %117[0, 0, 0] : f32 from vector<1x1x1xf32>
    %cst_45 = arith.constant 0.000000e+00 : f32
    %119 = arith.addf %cst_45, %105 : f32
    %cst_46 = arith.constant 0.000000e+00 : f32
    %120 = arith.addf %cst_46, %118 : f32
    %cst_47 = arith.constant dense<0.000000e+00> : vector<8x128xf32>
    %121 = tpu.matmul %10, %84, %cst_47 {dimension_numbers = #tpu.dot_dimension_numbers<[1], [0], [0], [1], [0, 0, 1, 1], [], []>} : vector<8x256xbf16>, vector<256x128xbf16>, vector<8x128xf32> -> vector<8x128xf32>
    %122 = vector.broadcast %83 : vector<1x128xf32> to vector<8x128xf32>
    %123 = arith.addf %121, %122 : vector<8x128xf32>
    %cst_48 = arith.constant dense<0xFF800000> : vector<8xf32>
    %124 = vector.multi_reduction <maximumf>, %123, %cst_48 [1] : vector<8x128xf32> to vector<8xf32>
    %125 = vector.shape_cast %124 : vector<8xf32> to vector<8x1xf32>
    %126 = vector.broadcast %125 : vector<8x1xf32> to vector<8x128xf32>
    %127 = arith.subf %123, %126 : vector<8x128xf32>
    %128 = math.exp %127 : vector<8x128xf32>
    %cst_49 = arith.constant dense<0.000000e+00> : vector<8xf32>
    %129 = vector.multi_reduction <add>, %128, %cst_49 [1] : vector<8x128xf32> to vector<8xf32>
    %130 = vector.shape_cast %129 : vector<8xf32> to vector<8x1xf32>
    %131 = tpu.reciprocal %130 {approx = true} : vector<8x1xf32> -> vector<8x1xf32>
    %132 = vector.broadcast %131 : vector<8x1xf32> to vector<8x128xf32>
    %133 = arith.mulf %128, %132 : vector<8x128xf32>
    %134 = arith.subf %133, %12 : vector<8x128xf32>
    %cst_50 = arith.constant 1.250000e-01 : f32
    %135 = vector.broadcast %cst_50 : f32 to vector<8x128xf32>
    %136 = arith.mulf %134, %135 : vector<8x128xf32>
    %137 = arith.truncf %136 : vector<8x128xf32> to vector<8x128xbf16>
    %cst_51 = arith.constant dense<0.000000e+00> : vector<256x128xf32>
    %138 = tpu.matmul %10, %137, %cst_51 {dimension_numbers = #tpu.dot_dimension_numbers<[0], [0], [1], [1], [0, 1, 1, 1], [], []>} : vector<8x256xbf16>, vector<8x128xbf16>, vector<256x128xf32> -> vector<256x128xf32>
    %cst_52 = arith.constant dense<0.000000e+00> : vector<128xf32>
    %139 = vector.multi_reduction <add>, %136, %cst_52 [0] : vector<8x128xf32> to vector<128xf32>
    %140 = vector.shape_cast %139 : vector<128xf32> to vector<1x128xf32>
    %cst_53 = arith.constant 4.000000e-01 : f32
    %141 = vector.broadcast %cst_53 : f32 to vector<256x128xf32>
    %142 = arith.mulf %141, %138 : vector<256x128xf32>
    %143 = arith.subf %80, %142 : vector<256x128xf32>
    %cst_54 = arith.constant 4.000000e-01 : f32
    %144 = vector.broadcast %cst_54 : f32 to vector<1x128xf32>
    %145 = arith.mulf %144, %140 : vector<1x128xf32>
    %146 = arith.subf %83, %145 : vector<1x128xf32>
    %147 = arith.truncf %143 : vector<256x128xf32> to vector<256x128xbf16>
    %cst_55 = arith.constant dense<0.000000e+00> : vector<8x128xf32>
    %148 = tpu.matmul %14, %147, %cst_55 {dimension_numbers = #tpu.dot_dimension_numbers<[1], [0], [0], [1], [0, 0, 1, 1], [], []>} : vector<8x256xbf16>, vector<256x128xbf16>, vector<8x128xf32> -> vector<8x128xf32>
    %149 = vector.broadcast %146 : vector<1x128xf32> to vector<8x128xf32>
    %150 = arith.addf %148, %149 : vector<8x128xf32>
    %cst_56 = arith.constant dense<0xFF800000> : vector<8xf32>
    %151 = vector.multi_reduction <maximumf>, %150, %cst_56 [1] : vector<8x128xf32> to vector<8xf32>
    %152 = vector.shape_cast %151 : vector<8xf32> to vector<8x1xf32>
    %153 = vector.broadcast %152 : vector<8x1xf32> to vector<8x128xf32>
    %154 = arith.subf %150, %153 : vector<8x128xf32>
    %155 = math.exp %154 : vector<8x128xf32>
    %cst_57 = arith.constant dense<0.000000e+00> : vector<8xf32>
    %156 = vector.multi_reduction <add>, %155, %cst_57 [1] : vector<8x128xf32> to vector<8xf32>
    %157 = vector.shape_cast %156 : vector<8xf32> to vector<8x1xf32>
    %158 = math.log %157 : vector<8x1xf32>
    %159 = arith.addf %152, %158 : vector<8x1xf32>
    %160 = arith.mulf %16, %150 : vector<8x128xf32>
    %cst_58 = arith.constant dense<0.000000e+00> : vector<8xf32>
    %161 = vector.multi_reduction <add>, %160, %cst_58 [1] : vector<8x128xf32> to vector<8xf32>
    %162 = vector.shape_cast %161 : vector<8xf32> to vector<8x1xf32>
    %163 = arith.subf %159, %162 : vector<8x1xf32>
    %164 = vector.shape_cast %163 : vector<8x1xf32> to vector<1x8x1xf32>
    %cst_59 = arith.constant dense<0.000000e+00> : vector<1xf32>
    %165 = vector.multi_reduction <add>, %164, %cst_59 [1, 2] : vector<1x8x1xf32> to vector<1xf32>
    %166 = vector.shape_cast %165 : vector<1xf32> to vector<1x1x1xf32>
    %167 = vector.extract %166[0, 0, 0] : f32 from vector<1x1x1xf32>
    %cst_60 = arith.constant 1.250000e-01 : f32
    %168 = arith.mulf %167, %cst_60 : f32
    %169 = vector.broadcast %152 : vector<8x1xf32> to vector<8x128xf32>
    %170 = arith.cmpf oeq, %150, %169 : vector<8x128xf32>
    %c128_i32_61 = arith.constant 128 : i32
    %171 = vector.broadcast %c128_i32_61 : i32 to vector<8x128xi32>
    %172 = arith.select %170, %6, %171 : vector<8x128xi1>, vector<8x128xi32>
    %cst_62 = arith.constant dense<2147483647> : vector<8xi32>
    %173 = vector.multi_reduction <minsi>, %172, %cst_62 [1] : vector<8x128xi32> to vector<8xi32>
    %174 = vector.shape_cast %173 : vector<8xi32> to vector<8x1xi32>
    %175 = arith.cmpi eq, %174, %21 : vector<8x1xi32>
    %176 = arith.extui %175 : vector<8x1xi1> to vector<8x1xi32>
    %177 = arith.sitofp %176 : vector<8x1xi32> to vector<8x1xf32>
    %178 = vector.shape_cast %177 : vector<8x1xf32> to vector<1x8x1xf32>
    %cst_63 = arith.constant dense<0.000000e+00> : vector<1xf32>
    %179 = vector.multi_reduction <add>, %178, %cst_63 [1, 2] : vector<1x8x1xf32> to vector<1xf32>
    %180 = vector.shape_cast %179 : vector<1xf32> to vector<1x1x1xf32>
    %181 = vector.extract %180[0, 0, 0] : f32 from vector<1x1x1xf32>
    %cst_64 = arith.constant 0.000000e+00 : f32
    %182 = arith.addf %cst_64, %168 : f32
    %cst_65 = arith.constant 0.000000e+00 : f32
    %183 = arith.addf %cst_65, %181 : f32
    %cst_66 = arith.constant dense<0.000000e+00> : vector<8x128xf32>
    %184 = tpu.matmul %10, %147, %cst_66 {dimension_numbers = #tpu.dot_dimension_numbers<[1], [0], [0], [1], [0, 0, 1, 1], [], []>} : vector<8x256xbf16>, vector<256x128xbf16>, vector<8x128xf32> -> vector<8x128xf32>
    %185 = vector.broadcast %146 : vector<1x128xf32> to vector<8x128xf32>
    %186 = arith.addf %184, %185 : vector<8x128xf32>
    %cst_67 = arith.constant dense<0xFF800000> : vector<8xf32>
    %187 = vector.multi_reduction <maximumf>, %186, %cst_67 [1] : vector<8x128xf32> to vector<8xf32>
    %188 = vector.shape_cast %187 : vector<8xf32> to vector<8x1xf32>
    %189 = vector.broadcast %188 : vector<8x1xf32> to vector<8x128xf32>
    %190 = arith.subf %186, %189 : vector<8x128xf32>
    %191 = math.exp %190 : vector<8x128xf32>
    %cst_68 = arith.constant dense<0.000000e+00> : vector<8xf32>
    %192 = vector.multi_reduction <add>, %191, %cst_68 [1] : vector<8x128xf32> to vector<8xf32>
    %193 = vector.shape_cast %192 : vector<8xf32> to vector<8x1xf32>
    %194 = tpu.reciprocal %193 {approx = true} : vector<8x1xf32> -> vector<8x1xf32>
    %195 = vector.broadcast %194 : vector<8x1xf32> to vector<8x128xf32>
    %196 = arith.mulf %191, %195 : vector<8x128xf32>
    %197 = arith.subf %196, %12 : vector<8x128xf32>
    %cst_69 = arith.constant 1.250000e-01 : f32
    %198 = vector.broadcast %cst_69 : f32 to vector<8x128xf32>
    %199 = arith.mulf %197, %198 : vector<8x128xf32>
    %200 = arith.truncf %199 : vector<8x128xf32> to vector<8x128xbf16>
    %cst_70 = arith.constant dense<0.000000e+00> : vector<256x128xf32>
    %201 = tpu.matmul %10, %200, %cst_70 {dimension_numbers = #tpu.dot_dimension_numbers<[0], [0], [1], [1], [0, 1, 1, 1], [], []>} : vector<8x256xbf16>, vector<8x128xbf16>, vector<256x128xf32> -> vector<256x128xf32>
    %cst_71 = arith.constant dense<0.000000e+00> : vector<128xf32>
    %202 = vector.multi_reduction <add>, %199, %cst_71 [0] : vector<8x128xf32> to vector<128xf32>
    %203 = vector.shape_cast %202 : vector<128xf32> to vector<1x128xf32>
    %cst_72 = arith.constant 4.000000e-01 : f32
    %204 = vector.broadcast %cst_72 : f32 to vector<256x128xf32>
    %205 = arith.mulf %204, %201 : vector<256x128xf32>
    %206 = arith.subf %143, %205 : vector<256x128xf32>
    %cst_73 = arith.constant 4.000000e-01 : f32
    %207 = vector.broadcast %cst_73 : f32 to vector<1x128xf32>
    %208 = arith.mulf %207, %203 : vector<1x128xf32>
    %209 = arith.subf %146, %208 : vector<1x128xf32>
    %210 = arith.truncf %206 : vector<256x128xf32> to vector<256x128xbf16>
    %cst_74 = arith.constant dense<0.000000e+00> : vector<8x128xf32>
    %211 = tpu.matmul %14, %210, %cst_74 {dimension_numbers = #tpu.dot_dimension_numbers<[1], [0], [0], [1], [0, 0, 1, 1], [], []>} : vector<8x256xbf16>, vector<256x128xbf16>, vector<8x128xf32> -> vector<8x128xf32>
    %212 = vector.broadcast %209 : vector<1x128xf32> to vector<8x128xf32>
    %213 = arith.addf %211, %212 : vector<8x128xf32>
    %cst_75 = arith.constant dense<0xFF800000> : vector<8xf32>
    %214 = vector.multi_reduction <maximumf>, %213, %cst_75 [1] : vector<8x128xf32> to vector<8xf32>
    %215 = vector.shape_cast %214 : vector<8xf32> to vector<8x1xf32>
    %216 = vector.broadcast %215 : vector<8x1xf32> to vector<8x128xf32>
    %217 = arith.subf %213, %216 : vector<8x128xf32>
    %218 = math.exp %217 : vector<8x128xf32>
    %cst_76 = arith.constant dense<0.000000e+00> : vector<8xf32>
    %219 = vector.multi_reduction <add>, %218, %cst_76 [1] : vector<8x128xf32> to vector<8xf32>
    %220 = vector.shape_cast %219 : vector<8xf32> to vector<8x1xf32>
    %221 = math.log %220 : vector<8x1xf32>
    %222 = arith.addf %215, %221 : vector<8x1xf32>
    %223 = arith.mulf %16, %213 : vector<8x128xf32>
    %cst_77 = arith.constant dense<0.000000e+00> : vector<8xf32>
    %224 = vector.multi_reduction <add>, %223, %cst_77 [1] : vector<8x128xf32> to vector<8xf32>
    %225 = vector.shape_cast %224 : vector<8xf32> to vector<8x1xf32>
    %226 = arith.subf %222, %225 : vector<8x1xf32>
    %227 = vector.shape_cast %226 : vector<8x1xf32> to vector<1x8x1xf32>
    %cst_78 = arith.constant dense<0.000000e+00> : vector<1xf32>
    %228 = vector.multi_reduction <add>, %227, %cst_78 [1, 2] : vector<1x8x1xf32> to vector<1xf32>
    %229 = vector.shape_cast %228 : vector<1xf32> to vector<1x1x1xf32>
    %230 = vector.extract %229[0, 0, 0] : f32 from vector<1x1x1xf32>
    %cst_79 = arith.constant 1.250000e-01 : f32
    %231 = arith.mulf %230, %cst_79 : f32
    %232 = vector.broadcast %215 : vector<8x1xf32> to vector<8x128xf32>
    %233 = arith.cmpf oeq, %213, %232 : vector<8x128xf32>
    %c128_i32_80 = arith.constant 128 : i32
    %234 = vector.broadcast %c128_i32_80 : i32 to vector<8x128xi32>
    %235 = arith.select %233, %6, %234 : vector<8x128xi1>, vector<8x128xi32>
    %cst_81 = arith.constant dense<2147483647> : vector<8xi32>
    %236 = vector.multi_reduction <minsi>, %235, %cst_81 [1] : vector<8x128xi32> to vector<8xi32>
    %237 = vector.shape_cast %236 : vector<8xi32> to vector<8x1xi32>
    %238 = arith.cmpi eq, %237, %21 : vector<8x1xi32>
    %239 = arith.extui %238 : vector<8x1xi1> to vector<8x1xi32>
    %240 = arith.sitofp %239 : vector<8x1xi32> to vector<8x1xf32>
    %241 = vector.shape_cast %240 : vector<8x1xf32> to vector<1x8x1xf32>
    %cst_82 = arith.constant dense<0.000000e+00> : vector<1xf32>
    %242 = vector.multi_reduction <add>, %241, %cst_82 [1, 2] : vector<1x8x1xf32> to vector<1xf32>
    %243 = vector.shape_cast %242 : vector<1xf32> to vector<1x1x1xf32>
    %244 = vector.extract %243[0, 0, 0] : f32 from vector<1x1x1xf32>
    %cst_83 = arith.constant 0.000000e+00 : f32
    %245 = arith.addf %cst_83, %231 : f32
    %cst_84 = arith.constant 0.000000e+00 : f32
    %246 = arith.addf %cst_84, %244 : f32
    %cst_85 = arith.constant dense<0.000000e+00> : vector<8x128xf32>
    %247 = tpu.matmul %14, %210, %cst_85 {dimension_numbers = #tpu.dot_dimension_numbers<[1], [0], [0], [1], [0, 0, 1, 1], [], []>} : vector<8x256xbf16>, vector<256x128xbf16>, vector<8x128xf32> -> vector<8x128xf32>
    %248 = vector.broadcast %209 : vector<1x128xf32> to vector<8x128xf32>
    %249 = arith.addf %247, %248 : vector<8x128xf32>
    %cst_86 = arith.constant dense<0xFF800000> : vector<8xf32>
    %250 = vector.multi_reduction <maximumf>, %249, %cst_86 [1] : vector<8x128xf32> to vector<8xf32>
    %251 = vector.shape_cast %250 : vector<8xf32> to vector<8x1xf32>
    %252 = vector.broadcast %251 : vector<8x1xf32> to vector<8x128xf32>
    %253 = arith.subf %249, %252 : vector<8x128xf32>
    %254 = math.exp %253 : vector<8x128xf32>
    %cst_87 = arith.constant dense<0.000000e+00> : vector<8xf32>
    %255 = vector.multi_reduction <add>, %254, %cst_87 [1] : vector<8x128xf32> to vector<8xf32>
    %256 = vector.shape_cast %255 : vector<8xf32> to vector<8x1xf32>
    %257 = tpu.reciprocal %256 {approx = true} : vector<8x1xf32> -> vector<8x1xf32>
    %258 = vector.broadcast %257 : vector<8x1xf32> to vector<8x128xf32>
    %259 = arith.mulf %254, %258 : vector<8x128xf32>
    %260 = arith.subf %259, %16 : vector<8x128xf32>
    %cst_88 = arith.constant 1.250000e-01 : f32
    %261 = vector.broadcast %cst_88 : f32 to vector<8x128xf32>
    %262 = arith.mulf %260, %261 : vector<8x128xf32>
    %263 = arith.truncf %262 : vector<8x128xf32> to vector<8x128xbf16>
    %cst_89 = arith.constant dense<0.000000e+00> : vector<256x128xf32>
    %264 = tpu.matmul %14, %263, %cst_89 {dimension_numbers = #tpu.dot_dimension_numbers<[0], [0], [1], [1], [0, 1, 1, 1], [], []>} : vector<8x256xbf16>, vector<8x128xbf16>, vector<256x128xf32> -> vector<256x128xf32>
    %cst_90 = arith.constant dense<0.000000e+00> : vector<128xf32>
    %265 = vector.multi_reduction <add>, %262, %cst_90 [0] : vector<8x128xf32> to vector<128xf32>
    %266 = vector.shape_cast %265 : vector<128xf32> to vector<1x128xf32>
    %267 = arith.addf %7, %264 : vector<256x128xf32>
    %268 = arith.addf %8, %266 : vector<1x128xf32>
    %c1 = arith.constant 1 : index
    %c0_91 = arith.constant 0 : index
    %c0_92 = arith.constant 0 : index
    %269 = vector.load %arg1[%c1, %c0_91, %c0_92] : memref<2x8x256xbf16, #tpu.memory_space<vmem>>, vector<1x8x256xbf16>
    %270 = vector.shape_cast %269 : vector<1x8x256xbf16> to vector<8x256xbf16>
    %c1_93 = arith.constant 1 : index
    %c0_94 = arith.constant 0 : index
    %c0_95 = arith.constant 0 : index
    %271 = vector.load %arg2[%c1_93, %c0_94, %c0_95] : memref<2x8x128xf32, #tpu.memory_space<vmem>>, vector<1x8x128xf32>
    %272 = vector.shape_cast %271 : vector<1x8x128xf32> to vector<8x128xf32>
    %c1_96 = arith.constant 1 : index
    %c0_97 = arith.constant 0 : index
    %c0_98 = arith.constant 0 : index
    %273 = vector.load %arg3[%c1_96, %c0_97, %c0_98] : memref<2x8x256xbf16, #tpu.memory_space<vmem>>, vector<1x8x256xbf16>
    %274 = vector.shape_cast %273 : vector<1x8x256xbf16> to vector<8x256xbf16>
    %c1_99 = arith.constant 1 : index
    %c0_100 = arith.constant 0 : index
    %c0_101 = arith.constant 0 : index
    %275 = vector.load %arg4[%c1_99, %c0_100, %c0_101] : memref<2x8x128xf32, #tpu.memory_space<vmem>>, vector<1x8x128xf32>
    %276 = vector.shape_cast %275 : vector<1x8x128xf32> to vector<8x128xf32>
    %277 = arith.sitofp %6 : vector<8x128xi32> to vector<8x128xf32>
    %278 = arith.mulf %276, %277 : vector<8x128xf32>
    %cst_102 = arith.constant dense<0.000000e+00> : vector<8xf32>
    %279 = vector.multi_reduction <add>, %278, %cst_102 [1] : vector<8x128xf32> to vector<8xf32>
    %280 = vector.shape_cast %279 : vector<8xf32> to vector<8x1xf32>
    %281 = arith.fptosi %280 : vector<8x1xf32> to vector<8x1xi32>
    %cst_103 = arith.constant dense<0.000000e+00> : vector<8x128xf32>
    %282 = tpu.matmul %274, %5, %cst_103 {dimension_numbers = #tpu.dot_dimension_numbers<[1], [0], [0], [1], [0, 0, 1, 1], [], []>} : vector<8x256xbf16>, vector<256x128xbf16>, vector<8x128xf32> -> vector<8x128xf32>
    %283 = vector.broadcast %4 : vector<1x128xf32> to vector<8x128xf32>
    %284 = arith.addf %282, %283 : vector<8x128xf32>
    %cst_104 = arith.constant dense<0xFF800000> : vector<8xf32>
    %285 = vector.multi_reduction <maximumf>, %284, %cst_104 [1] : vector<8x128xf32> to vector<8xf32>
    %286 = vector.shape_cast %285 : vector<8xf32> to vector<8x1xf32>
    %287 = vector.broadcast %286 : vector<8x1xf32> to vector<8x128xf32>
    %288 = arith.subf %284, %287 : vector<8x128xf32>
    %289 = math.exp %288 : vector<8x128xf32>
    %cst_105 = arith.constant dense<0.000000e+00> : vector<8xf32>
    %290 = vector.multi_reduction <add>, %289, %cst_105 [1] : vector<8x128xf32> to vector<8xf32>
    %291 = vector.shape_cast %290 : vector<8xf32> to vector<8x1xf32>
    %292 = math.log %291 : vector<8x1xf32>
    %293 = arith.addf %286, %292 : vector<8x1xf32>
    %294 = arith.mulf %276, %284 : vector<8x128xf32>
    %cst_106 = arith.constant dense<0.000000e+00> : vector<8xf32>
    %295 = vector.multi_reduction <add>, %294, %cst_106 [1] : vector<8x128xf32> to vector<8xf32>
    %296 = vector.shape_cast %295 : vector<8xf32> to vector<8x1xf32>
    %297 = arith.subf %293, %296 : vector<8x1xf32>
    %298 = vector.shape_cast %297 : vector<8x1xf32> to vector<1x8x1xf32>
    %cst_107 = arith.constant dense<0.000000e+00> : vector<1xf32>
    %299 = vector.multi_reduction <add>, %298, %cst_107 [1, 2] : vector<1x8x1xf32> to vector<1xf32>
    %300 = vector.shape_cast %299 : vector<1xf32> to vector<1x1x1xf32>
    %301 = vector.extract %300[0, 0, 0] : f32 from vector<1x1x1xf32>
    %cst_108 = arith.constant 1.250000e-01 : f32
    %302 = arith.mulf %301, %cst_108 : f32
    %303 = vector.broadcast %286 : vector<8x1xf32> to vector<8x128xf32>
    %304 = arith.cmpf oeq, %284, %303 : vector<8x128xf32>
    %c128_i32_109 = arith.constant 128 : i32
    %305 = vector.broadcast %c128_i32_109 : i32 to vector<8x128xi32>
    %306 = arith.select %304, %6, %305 : vector<8x128xi1>, vector<8x128xi32>
    %cst_110 = arith.constant dense<2147483647> : vector<8xi32>
    %307 = vector.multi_reduction <minsi>, %306, %cst_110 [1] : vector<8x128xi32> to vector<8xi32>
    %308 = vector.shape_cast %307 : vector<8xi32> to vector<8x1xi32>
    %309 = arith.cmpi eq, %308, %281 : vector<8x1xi32>
    %310 = arith.extui %309 : vector<8x1xi1> to vector<8x1xi32>
    %311 = arith.sitofp %310 : vector<8x1xi32> to vector<8x1xf32>
    %312 = vector.shape_cast %311 : vector<8x1xf32> to vector<1x8x1xf32>
    %cst_111 = arith.constant dense<0.000000e+00> : vector<1xf32>
    %313 = vector.multi_reduction <add>, %312, %cst_111 [1, 2] : vector<1x8x1xf32> to vector<1xf32>
    %314 = vector.shape_cast %313 : vector<1xf32> to vector<1x1x1xf32>
    %315 = vector.extract %314[0, 0, 0] : f32 from vector<1x1x1xf32>
    %316 = arith.addf %56, %302 : f32
    %317 = arith.addf %57, %315 : f32
    %cst_112 = arith.constant dense<0.000000e+00> : vector<8x128xf32>
    %318 = tpu.matmul %270, %5, %cst_112 {dimension_numbers = #tpu.dot_dimension_numbers<[1], [0], [0], [1], [0, 0, 1, 1], [], []>} : vector<8x256xbf16>, vector<256x128xbf16>, vector<8x128xf32> -> vector<8x128xf32>
    %319 = vector.broadcast %4 : vector<1x128xf32> to vector<8x128xf32>
    %320 = arith.addf %318, %319 : vector<8x128xf32>
    %cst_113 = arith.constant dense<0xFF800000> : vector<8xf32>
    %321 = vector.multi_reduction <maximumf>, %320, %cst_113 [1] : vector<8x128xf32> to vector<8xf32>
    %322 = vector.shape_cast %321 : vector<8xf32> to vector<8x1xf32>
    %323 = vector.broadcast %322 : vector<8x1xf32> to vector<8x128xf32>
    %324 = arith.subf %320, %323 : vector<8x128xf32>
    %325 = math.exp %324 : vector<8x128xf32>
    %cst_114 = arith.constant dense<0.000000e+00> : vector<8xf32>
    %326 = vector.multi_reduction <add>, %325, %cst_114 [1] : vector<8x128xf32> to vector<8xf32>
    %327 = vector.shape_cast %326 : vector<8xf32> to vector<8x1xf32>
    %328 = tpu.reciprocal %327 {approx = true} : vector<8x1xf32> -> vector<8x1xf32>
    %329 = vector.broadcast %328 : vector<8x1xf32> to vector<8x128xf32>
    %330 = arith.mulf %325, %329 : vector<8x128xf32>
    %331 = arith.subf %330, %272 : vector<8x128xf32>
    %cst_115 = arith.constant 1.250000e-01 : f32
    %332 = vector.broadcast %cst_115 : f32 to vector<8x128xf32>
    %333 = arith.mulf %331, %332 : vector<8x128xf32>
    %334 = arith.truncf %333 : vector<8x128xf32> to vector<8x128xbf16>
    %cst_116 = arith.constant dense<0.000000e+00> : vector<256x128xf32>
    %335 = tpu.matmul %270, %334, %cst_116 {dimension_numbers = #tpu.dot_dimension_numbers<[0], [0], [1], [1], [0, 1, 1, 1], [], []>} : vector<8x256xbf16>, vector<8x128xbf16>, vector<256x128xf32> -> vector<256x128xf32>
    %cst_117 = arith.constant dense<0.000000e+00> : vector<128xf32>
    %336 = vector.multi_reduction <add>, %333, %cst_117 [0] : vector<8x128xf32> to vector<128xf32>
    %337 = vector.shape_cast %336 : vector<128xf32> to vector<1x128xf32>
    %cst_118 = arith.constant 4.000000e-01 : f32
    %338 = vector.broadcast %cst_118 : f32 to vector<256x128xf32>
    %339 = arith.mulf %338, %335 : vector<256x128xf32>
    %340 = arith.subf %3, %339 : vector<256x128xf32>
    %cst_119 = arith.constant 4.000000e-01 : f32
    %341 = vector.broadcast %cst_119 : f32 to vector<1x128xf32>
    %342 = arith.mulf %341, %337 : vector<1x128xf32>
    %343 = arith.subf %4, %342 : vector<1x128xf32>
    %344 = arith.truncf %340 : vector<256x128xf32> to vector<256x128xbf16>
    %cst_120 = arith.constant dense<0.000000e+00> : vector<8x128xf32>
    %345 = tpu.matmul %274, %344, %cst_120 {dimension_numbers = #tpu.dot_dimension_numbers<[1], [0], [0], [1], [0, 0, 1, 1], [], []>} : vector<8x256xbf16>, vector<256x128xbf16>, vector<8x128xf32> -> vector<8x128xf32>
    %346 = vector.broadcast %343 : vector<1x128xf32> to vector<8x128xf32>
    %347 = arith.addf %345, %346 : vector<8x128xf32>
    %cst_121 = arith.constant dense<0xFF800000> : vector<8xf32>
    %348 = vector.multi_reduction <maximumf>, %347, %cst_121 [1] : vector<8x128xf32> to vector<8xf32>
    %349 = vector.shape_cast %348 : vector<8xf32> to vector<8x1xf32>
    %350 = vector.broadcast %349 : vector<8x1xf32> to vector<8x128xf32>
    %351 = arith.subf %347, %350 : vector<8x128xf32>
    %352 = math.exp %351 : vector<8x128xf32>
    %cst_122 = arith.constant dense<0.000000e+00> : vector<8xf32>
    %353 = vector.multi_reduction <add>, %352, %cst_122 [1] : vector<8x128xf32> to vector<8xf32>
    %354 = vector.shape_cast %353 : vector<8xf32> to vector<8x1xf32>
    %355 = math.log %354 : vector<8x1xf32>
    %356 = arith.addf %349, %355 : vector<8x1xf32>
    %357 = arith.mulf %276, %347 : vector<8x128xf32>
    %cst_123 = arith.constant dense<0.000000e+00> : vector<8xf32>
    %358 = vector.multi_reduction <add>, %357, %cst_123 [1] : vector<8x128xf32> to vector<8xf32>
    %359 = vector.shape_cast %358 : vector<8xf32> to vector<8x1xf32>
    %360 = arith.subf %356, %359 : vector<8x1xf32>
    %361 = vector.shape_cast %360 : vector<8x1xf32> to vector<1x8x1xf32>
    %cst_124 = arith.constant dense<0.000000e+00> : vector<1xf32>
    %362 = vector.multi_reduction <add>, %361, %cst_124 [1, 2] : vector<1x8x1xf32> to vector<1xf32>
    %363 = vector.shape_cast %362 : vector<1xf32> to vector<1x1x1xf32>
    %364 = vector.extract %363[0, 0, 0] : f32 from vector<1x1x1xf32>
    %cst_125 = arith.constant 1.250000e-01 : f32
    %365 = arith.mulf %364, %cst_125 : f32
    %366 = vector.broadcast %349 : vector<8x1xf32> to vector<8x128xf32>
    %367 = arith.cmpf oeq, %347, %366 : vector<8x128xf32>
    %c128_i32_126 = arith.constant 128 : i32
    %368 = vector.broadcast %c128_i32_126 : i32 to vector<8x128xi32>
    %369 = arith.select %367, %6, %368 : vector<8x128xi1>, vector<8x128xi32>
    %cst_127 = arith.constant dense<2147483647> : vector<8xi32>
    %370 = vector.multi_reduction <minsi>, %369, %cst_127 [1] : vector<8x128xi32> to vector<8xi32>
    %371 = vector.shape_cast %370 : vector<8xi32> to vector<8x1xi32>
    %372 = arith.cmpi eq, %371, %281 : vector<8x1xi32>
    %373 = arith.extui %372 : vector<8x1xi1> to vector<8x1xi32>
    %374 = arith.sitofp %373 : vector<8x1xi32> to vector<8x1xf32>
    %375 = vector.shape_cast %374 : vector<8x1xf32> to vector<1x8x1xf32>
    %cst_128 = arith.constant dense<0.000000e+00> : vector<1xf32>
    %376 = vector.multi_reduction <add>, %375, %cst_128 [1, 2] : vector<1x8x1xf32> to vector<1xf32>
    %377 = vector.shape_cast %376 : vector<1xf32> to vector<1x1x1xf32>
    %378 = vector.extract %377[0, 0, 0] : f32 from vector<1x1x1xf32>
    %379 = arith.addf %119, %365 : f32
    %380 = arith.addf %120, %378 : f32
    %cst_129 = arith.constant dense<0.000000e+00> : vector<8x128xf32>
    %381 = tpu.matmul %270, %344, %cst_129 {dimension_numbers = #tpu.dot_dimension_numbers<[1], [0], [0], [1], [0, 0, 1, 1], [], []>} : vector<8x256xbf16>, vector<256x128xbf16>, vector<8x128xf32> -> vector<8x128xf32>
    %382 = vector.broadcast %343 : vector<1x128xf32> to vector<8x128xf32>
    %383 = arith.addf %381, %382 : vector<8x128xf32>
    %cst_130 = arith.constant dense<0xFF800000> : vector<8xf32>
    %384 = vector.multi_reduction <maximumf>, %383, %cst_130 [1] : vector<8x128xf32> to vector<8xf32>
    %385 = vector.shape_cast %384 : vector<8xf32> to vector<8x1xf32>
    %386 = vector.broadcast %385 : vector<8x1xf32> to vector<8x128xf32>
    %387 = arith.subf %383, %386 : vector<8x128xf32>
    %388 = math.exp %387 : vector<8x128xf32>
    %cst_131 = arith.constant dense<0.000000e+00> : vector<8xf32>
    %389 = vector.multi_reduction <add>, %388, %cst_131 [1] : vector<8x128xf32> to vector<8xf32>
    %390 = vector.shape_cast %389 : vector<8xf32> to vector<8x1xf32>
    %391 = tpu.reciprocal %390 {approx = true} : vector<8x1xf32> -> vector<8x1xf32>
    %392 = vector.broadcast %391 : vector<8x1xf32> to vector<8x128xf32>
    %393 = arith.mulf %388, %392 : vector<8x128xf32>
    %394 = arith.subf %393, %272 : vector<8x128xf32>
    %cst_132 = arith.constant 1.250000e-01 : f32
    %395 = vector.broadcast %cst_132 : f32 to vector<8x128xf32>
    %396 = arith.mulf %394, %395 : vector<8x128xf32>
    %397 = arith.truncf %396 : vector<8x128xf32> to vector<8x128xbf16>
    %cst_133 = arith.constant dense<0.000000e+00> : vector<256x128xf32>
    %398 = tpu.matmul %270, %397, %cst_133 {dimension_numbers = #tpu.dot_dimension_numbers<[0], [0], [1], [1], [0, 1, 1, 1], [], []>} : vector<8x256xbf16>, vector<8x128xbf16>, vector<256x128xf32> -> vector<256x128xf32>
    %cst_134 = arith.constant dense<0.000000e+00> : vector<128xf32>
    %399 = vector.multi_reduction <add>, %396, %cst_134 [0] : vector<8x128xf32> to vector<128xf32>
    %400 = vector.shape_cast %399 : vector<128xf32> to vector<1x128xf32>
    %cst_135 = arith.constant 4.000000e-01 : f32
    %401 = vector.broadcast %cst_135 : f32 to vector<256x128xf32>
    %402 = arith.mulf %401, %398 : vector<256x128xf32>
    %403 = arith.subf %340, %402 : vector<256x128xf32>
    %cst_136 = arith.constant 4.000000e-01 : f32
    %404 = vector.broadcast %cst_136 : f32 to vector<1x128xf32>
    %405 = arith.mulf %404, %400 : vector<1x128xf32>
    %406 = arith.subf %343, %405 : vector<1x128xf32>
    %407 = arith.truncf %403 : vector<256x128xf32> to vector<256x128xbf16>
    %cst_137 = arith.constant dense<0.000000e+00> : vector<8x128xf32>
    %408 = tpu.matmul %274, %407, %cst_137 {dimension_numbers = #tpu.dot_dimension_numbers<[1], [0], [0], [1], [0, 0, 1, 1], [], []>} : vector<8x256xbf16>, vector<256x128xbf16>, vector<8x128xf32> -> vector<8x128xf32>
    %409 = vector.broadcast %406 : vector<1x128xf32> to vector<8x128xf32>
    %410 = arith.addf %408, %409 : vector<8x128xf32>
    %cst_138 = arith.constant dense<0xFF800000> : vector<8xf32>
    %411 = vector.multi_reduction <maximumf>, %410, %cst_138 [1] : vector<8x128xf32> to vector<8xf32>
    %412 = vector.shape_cast %411 : vector<8xf32> to vector<8x1xf32>
    %413 = vector.broadcast %412 : vector<8x1xf32> to vector<8x128xf32>
    %414 = arith.subf %410, %413 : vector<8x128xf32>
    %415 = math.exp %414 : vector<8x128xf32>
    %cst_139 = arith.constant dense<0.000000e+00> : vector<8xf32>
    %416 = vector.multi_reduction <add>, %415, %cst_139 [1] : vector<8x128xf32> to vector<8xf32>
    %417 = vector.shape_cast %416 : vector<8xf32> to vector<8x1xf32>
    %418 = math.log %417 : vector<8x1xf32>
    %419 = arith.addf %412, %418 : vector<8x1xf32>
    %420 = arith.mulf %276, %410 : vector<8x128xf32>
    %cst_140 = arith.constant dense<0.000000e+00> : vector<8xf32>
    %421 = vector.multi_reduction <add>, %420, %cst_140 [1] : vector<8x128xf32> to vector<8xf32>
    %422 = vector.shape_cast %421 : vector<8xf32> to vector<8x1xf32>
    %423 = arith.subf %419, %422 : vector<8x1xf32>
    %424 = vector.shape_cast %423 : vector<8x1xf32> to vector<1x8x1xf32>
    %cst_141 = arith.constant dense<0.000000e+00> : vector<1xf32>
    %425 = vector.multi_reduction <add>, %424, %cst_141 [1, 2] : vector<1x8x1xf32> to vector<1xf32>
    %426 = vector.shape_cast %425 : vector<1xf32> to vector<1x1x1xf32>
    %427 = vector.extract %426[0, 0, 0] : f32 from vector<1x1x1xf32>
    %cst_142 = arith.constant 1.250000e-01 : f32
    %428 = arith.mulf %427, %cst_142 : f32
    %429 = vector.broadcast %412 : vector<8x1xf32> to vector<8x128xf32>
    %430 = arith.cmpf oeq, %410, %429 : vector<8x128xf32>
    %c128_i32_143 = arith.constant 128 : i32
    %431 = vector.broadcast %c128_i32_143 : i32 to vector<8x128xi32>
    %432 = arith.select %430, %6, %431 : vector<8x128xi1>, vector<8x128xi32>
    %cst_144 = arith.constant dense<2147483647> : vector<8xi32>
    %433 = vector.multi_reduction <minsi>, %432, %cst_144 [1] : vector<8x128xi32> to vector<8xi32>
    %434 = vector.shape_cast %433 : vector<8xi32> to vector<8x1xi32>
    %435 = arith.cmpi eq, %434, %281 : vector<8x1xi32>
    %436 = arith.extui %435 : vector<8x1xi1> to vector<8x1xi32>
    %437 = arith.sitofp %436 : vector<8x1xi32> to vector<8x1xf32>
    %438 = vector.shape_cast %437 : vector<8x1xf32> to vector<1x8x1xf32>
    %cst_145 = arith.constant dense<0.000000e+00> : vector<1xf32>
    %439 = vector.multi_reduction <add>, %438, %cst_145 [1, 2] : vector<1x8x1xf32> to vector<1xf32>
    %440 = vector.shape_cast %439 : vector<1xf32> to vector<1x1x1xf32>
    %441 = vector.extract %440[0, 0, 0] : f32 from vector<1x1x1xf32>
    %442 = arith.addf %182, %428 : f32
    %443 = arith.addf %183, %441 : f32
    %cst_146 = arith.constant dense<0.000000e+00> : vector<8x128xf32>
    %444 = tpu.matmul %270, %407, %cst_146 {dimension_numbers = #tpu.dot_dimension_numbers<[1], [0], [0], [1], [0, 0, 1, 1], [], []>} : vector<8x256xbf16>, vector<256x128xbf16>, vector<8x128xf32> -> vector<8x128xf32>
    %445 = vector.broadcast %406 : vector<1x128xf32> to vector<8x128xf32>
    %446 = arith.addf %444, %445 : vector<8x128xf32>
    %cst_147 = arith.constant dense<0xFF800000> : vector<8xf32>
    %447 = vector.multi_reduction <maximumf>, %446, %cst_147 [1] : vector<8x128xf32> to vector<8xf32>
    %448 = vector.shape_cast %447 : vector<8xf32> to vector<8x1xf32>
    %449 = vector.broadcast %448 : vector<8x1xf32> to vector<8x128xf32>
    %450 = arith.subf %446, %449 : vector<8x128xf32>
    %451 = math.exp %450 : vector<8x128xf32>
    %cst_148 = arith.constant dense<0.000000e+00> : vector<8xf32>
    %452 = vector.multi_reduction <add>, %451, %cst_148 [1] : vector<8x128xf32> to vector<8xf32>
    %453 = vector.shape_cast %452 : vector<8xf32> to vector<8x1xf32>
    %454 = tpu.reciprocal %453 {approx = true} : vector<8x1xf32> -> vector<8x1xf32>
    %455 = vector.broadcast %454 : vector<8x1xf32> to vector<8x128xf32>
    %456 = arith.mulf %451, %455 : vector<8x128xf32>
    %457 = arith.subf %456, %272 : vector<8x128xf32>
    %cst_149 = arith.constant 1.250000e-01 : f32
    %458 = vector.broadcast %cst_149 : f32 to vector<8x128xf32>
    %459 = arith.mulf %457, %458 : vector<8x128xf32>
    %460 = arith.truncf %459 : vector<8x128xf32> to vector<8x128xbf16>
    %cst_150 = arith.constant dense<0.000000e+00> : vector<256x128xf32>
    %461 = tpu.matmul %270, %460, %cst_150 {dimension_numbers = #tpu.dot_dimension_numbers<[0], [0], [1], [1], [0, 1, 1, 1], [], []>} : vector<8x256xbf16>, vector<8x128xbf16>, vector<256x128xf32> -> vector<256x128xf32>
    %cst_151 = arith.constant dense<0.000000e+00> : vector<128xf32>
    %462 = vector.multi_reduction <add>, %459, %cst_151 [0] : vector<8x128xf32> to vector<128xf32>
    %463 = vector.shape_cast %462 : vector<128xf32> to vector<1x128xf32>
    %cst_152 = arith.constant 4.000000e-01 : f32
    %464 = vector.broadcast %cst_152 : f32 to vector<256x128xf32>
    %465 = arith.mulf %464, %461 : vector<256x128xf32>
    %466 = arith.subf %403, %465 : vector<256x128xf32>
    %cst_153 = arith.constant 4.000000e-01 : f32
    %467 = vector.broadcast %cst_153 : f32 to vector<1x128xf32>
    %468 = arith.mulf %467, %463 : vector<1x128xf32>
    %469 = arith.subf %406, %468 : vector<1x128xf32>
    %470 = arith.truncf %466 : vector<256x128xf32> to vector<256x128xbf16>
    %cst_154 = arith.constant dense<0.000000e+00> : vector<8x128xf32>
    %471 = tpu.matmul %274, %470, %cst_154 {dimension_numbers = #tpu.dot_dimension_numbers<[1], [0], [0], [1], [0, 0, 1, 1], [], []>} : vector<8x256xbf16>, vector<256x128xbf16>, vector<8x128xf32> -> vector<8x128xf32>
    %472 = vector.broadcast %469 : vector<1x128xf32> to vector<8x128xf32>
    %473 = arith.addf %471, %472 : vector<8x128xf32>
    %cst_155 = arith.constant dense<0xFF800000> : vector<8xf32>
    %474 = vector.multi_reduction <maximumf>, %473, %cst_155 [1] : vector<8x128xf32> to vector<8xf32>
    %475 = vector.shape_cast %474 : vector<8xf32> to vector<8x1xf32>
    %476 = vector.broadcast %475 : vector<8x1xf32> to vector<8x128xf32>
    %477 = arith.subf %473, %476 : vector<8x128xf32>
    %478 = math.exp %477 : vector<8x128xf32>
    %cst_156 = arith.constant dense<0.000000e+00> : vector<8xf32>
    %479 = vector.multi_reduction <add>, %478, %cst_156 [1] : vector<8x128xf32> to vector<8xf32>
    %480 = vector.shape_cast %479 : vector<8xf32> to vector<8x1xf32>
    %481 = math.log %480 : vector<8x1xf32>
    %482 = arith.addf %475, %481 : vector<8x1xf32>
    %483 = arith.mulf %276, %473 : vector<8x128xf32>
    %cst_157 = arith.constant dense<0.000000e+00> : vector<8xf32>
    %484 = vector.multi_reduction <add>, %483, %cst_157 [1] : vector<8x128xf32> to vector<8xf32>
    %485 = vector.shape_cast %484 : vector<8xf32> to vector<8x1xf32>
    %486 = arith.subf %482, %485 : vector<8x1xf32>
    %487 = vector.shape_cast %486 : vector<8x1xf32> to vector<1x8x1xf32>
    %cst_158 = arith.constant dense<0.000000e+00> : vector<1xf32>
    %488 = vector.multi_reduction <add>, %487, %cst_158 [1, 2] : vector<1x8x1xf32> to vector<1xf32>
    %489 = vector.shape_cast %488 : vector<1xf32> to vector<1x1x1xf32>
    %490 = vector.extract %489[0, 0, 0] : f32 from vector<1x1x1xf32>
    %cst_159 = arith.constant 1.250000e-01 : f32
    %491 = arith.mulf %490, %cst_159 : f32
    %492 = vector.broadcast %475 : vector<8x1xf32> to vector<8x128xf32>
    %493 = arith.cmpf oeq, %473, %492 : vector<8x128xf32>
    %c128_i32_160 = arith.constant 128 : i32
    %494 = vector.broadcast %c128_i32_160 : i32 to vector<8x128xi32>
    %495 = arith.select %493, %6, %494 : vector<8x128xi1>, vector<8x128xi32>
    %cst_161 = arith.constant dense<2147483647> : vector<8xi32>
    %496 = vector.multi_reduction <minsi>, %495, %cst_161 [1] : vector<8x128xi32> to vector<8xi32>
    %497 = vector.shape_cast %496 : vector<8xi32> to vector<8x1xi32>
    %498 = arith.cmpi eq, %497, %281 : vector<8x1xi32>
    %499 = arith.extui %498 : vector<8x1xi1> to vector<8x1xi32>
    %500 = arith.sitofp %499 : vector<8x1xi32> to vector<8x1xf32>
    %501 = vector.shape_cast %500 : vector<8x1xf32> to vector<1x8x1xf32>
    %cst_162 = arith.constant dense<0.000000e+00> : vector<1xf32>
    %502 = vector.multi_reduction <add>, %501, %cst_162 [1, 2] : vector<1x8x1xf32> to vector<1xf32>
    %503 = vector.shape_cast %502 : vector<1xf32> to vector<1x1x1xf32>
    %504 = vector.extract %503[0, 0, 0] : f32 from vector<1x1x1xf32>
    %505 = arith.addf %245, %491 : f32
    %506 = arith.addf %246, %504 : f32
    %cst_163 = arith.constant dense<0.000000e+00> : vector<8x128xf32>
    %507 = tpu.matmul %274, %470, %cst_163 {dimension_numbers = #tpu.dot_dimension_numbers<[1], [0], [0], [1], [0, 0, 1, 1], [], []>} : vector<8x256xbf16>, vector<256x128xbf16>, vector<8x128xf32> -> vector<8x128xf32>
    %508 = vector.broadcast %469 : vector<1x128xf32> to vector<8x128xf32>
    %509 = arith.addf %507, %508 : vector<8x128xf32>
    %cst_164 = arith.constant dense<0xFF800000> : vector<8xf32>
    %510 = vector.multi_reduction <maximumf>, %509, %cst_164 [1] : vector<8x128xf32> to vector<8xf32>
    %511 = vector.shape_cast %510 : vector<8xf32> to vector<8x1xf32>
    %512 = vector.broadcast %511 : vector<8x1xf32> to vector<8x128xf32>
    %513 = arith.subf %509, %512 : vector<8x128xf32>
    %514 = math.exp %513 : vector<8x128xf32>
    %cst_165 = arith.constant dense<0.000000e+00> : vector<8xf32>
    %515 = vector.multi_reduction <add>, %514, %cst_165 [1] : vector<8x128xf32> to vector<8xf32>
    %516 = vector.shape_cast %515 : vector<8xf32> to vector<8x1xf32>
    %517 = tpu.reciprocal %516 {approx = true} : vector<8x1xf32> -> vector<8x1xf32>
    %518 = vector.broadcast %517 : vector<8x1xf32> to vector<8x128xf32>
    %519 = arith.mulf %514, %518 : vector<8x128xf32>
    %520 = arith.subf %519, %276 : vector<8x128xf32>
    %cst_166 = arith.constant 1.250000e-01 : f32
    %521 = vector.broadcast %cst_166 : f32 to vector<8x128xf32>
    %522 = arith.mulf %520, %521 : vector<8x128xf32>
    %523 = arith.truncf %522 : vector<8x128xf32> to vector<8x128xbf16>
    %cst_167 = arith.constant dense<0.000000e+00> : vector<256x128xf32>
    %524 = tpu.matmul %274, %523, %cst_167 {dimension_numbers = #tpu.dot_dimension_numbers<[0], [0], [1], [1], [0, 1, 1, 1], [], []>} : vector<8x256xbf16>, vector<8x128xbf16>, vector<256x128xf32> -> vector<256x128xf32>
    %cst_168 = arith.constant dense<0.000000e+00> : vector<128xf32>
    %525 = vector.multi_reduction <add>, %522, %cst_168 [0] : vector<8x128xf32> to vector<128xf32>
    %526 = vector.shape_cast %525 : vector<128xf32> to vector<1x128xf32>
    %527 = arith.addf %267, %524 : vector<256x128xf32>
    %528 = arith.addf %268, %526 : vector<1x128xf32>
    %529 = tpu.iota {dimensions = array<i32: 1>} : vector<8x128xi32>
    %530 = tpu.iota {dimensions = array<i32: 0>} : vector<8x128xi32>
    %cst_169 = arith.constant 0.000000e+00 : f32
    %531 = vector.broadcast %cst_169 : f32 to vector<8x128xf32>
    %c0_i32_170 = arith.constant 0 : i32
    %532 = vector.broadcast %c0_i32_170 : i32 to vector<8x128xi32>
    %533 = arith.cmpi eq, %530, %532 : vector<8x128xi32>
    %534 = vector.broadcast %316 : f32 to vector<8x128xf32>
    %535 = vector.broadcast %317 : f32 to vector<8x128xf32>
    %536 = arith.select %533, %534, %535 : vector<8x128xi1>, vector<8x128xf32>
    %c0_i32_171 = arith.constant 0 : i32
    %537 = vector.broadcast %c0_i32_171 : i32 to vector<8x128xi32>
    %538 = arith.cmpi eq, %529, %537 : vector<8x128xi32>
    %c2_i32 = arith.constant 2 : i32
    %539 = vector.broadcast %c2_i32 : i32 to vector<8x128xi32>
    %540 = arith.cmpi slt, %530, %539 : vector<8x128xi32>
    %541 = arith.andi %538, %540 : vector<8x128xi1>
    %cst_172 = arith.constant 0.000000e+00 : f32
    %542 = vector.broadcast %cst_172 : f32 to vector<8x128xf32>
    %543 = arith.select %541, %536, %542 : vector<8x128xi1>, vector<8x128xf32>
    %544 = arith.addf %531, %543 : vector<8x128xf32>
    %c0_i32_173 = arith.constant 0 : i32
    %545 = vector.broadcast %c0_i32_173 : i32 to vector<8x128xi32>
    %546 = arith.cmpi eq, %530, %545 : vector<8x128xi32>
    %547 = vector.broadcast %379 : f32 to vector<8x128xf32>
    %548 = vector.broadcast %380 : f32 to vector<8x128xf32>
    %549 = arith.select %546, %547, %548 : vector<8x128xi1>, vector<8x128xf32>
    %c1_i32 = arith.constant 1 : i32
    %550 = vector.broadcast %c1_i32 : i32 to vector<8x128xi32>
    %551 = arith.cmpi eq, %529, %550 : vector<8x128xi32>
    %c2_i32_174 = arith.constant 2 : i32
    %552 = vector.broadcast %c2_i32_174 : i32 to vector<8x128xi32>
    %553 = arith.cmpi slt, %530, %552 : vector<8x128xi32>
    %554 = arith.andi %551, %553 : vector<8x128xi1>
    %cst_175 = arith.constant 0.000000e+00 : f32
    %555 = vector.broadcast %cst_175 : f32 to vector<8x128xf32>
    %556 = arith.select %554, %549, %555 : vector<8x128xi1>, vector<8x128xf32>
    %557 = arith.addf %544, %556 : vector<8x128xf32>
    %c0_i32_176 = arith.constant 0 : i32
    %558 = vector.broadcast %c0_i32_176 : i32 to vector<8x128xi32>
    %559 = arith.cmpi eq, %530, %558 : vector<8x128xi32>
    %560 = vector.broadcast %442 : f32 to vector<8x128xf32>
    %561 = vector.broadcast %443 : f32 to vector<8x128xf32>
    %562 = arith.select %559, %560, %561 : vector<8x128xi1>, vector<8x128xf32>
    %c2_i32_177 = arith.constant 2 : i32
    %563 = vector.broadcast %c2_i32_177 : i32 to vector<8x128xi32>
    %564 = arith.cmpi eq, %529, %563 : vector<8x128xi32>
    %c2_i32_178 = arith.constant 2 : i32
    %565 = vector.broadcast %c2_i32_178 : i32 to vector<8x128xi32>
    %566 = arith.cmpi slt, %530, %565 : vector<8x128xi32>
    %567 = arith.andi %564, %566 : vector<8x128xi1>
    %cst_179 = arith.constant 0.000000e+00 : f32
    %568 = vector.broadcast %cst_179 : f32 to vector<8x128xf32>
    %569 = arith.select %567, %562, %568 : vector<8x128xi1>, vector<8x128xf32>
    %570 = arith.addf %557, %569 : vector<8x128xf32>
    %c0_i32_180 = arith.constant 0 : i32
    %571 = vector.broadcast %c0_i32_180 : i32 to vector<8x128xi32>
    %572 = arith.cmpi eq, %530, %571 : vector<8x128xi32>
    %573 = vector.broadcast %505 : f32 to vector<8x128xf32>
    %574 = vector.broadcast %506 : f32 to vector<8x128xf32>
    %575 = arith.select %572, %573, %574 : vector<8x128xi1>, vector<8x128xf32>
    %c3_i32 = arith.constant 3 : i32
    %576 = vector.broadcast %c3_i32 : i32 to vector<8x128xi32>
    %577 = arith.cmpi eq, %529, %576 : vector<8x128xi32>
    %c2_i32_181 = arith.constant 2 : i32
    %578 = vector.broadcast %c2_i32_181 : i32 to vector<8x128xi32>
    %579 = arith.cmpi slt, %530, %578 : vector<8x128xi32>
    %580 = arith.andi %577, %579 : vector<8x128xi1>
    %cst_182 = arith.constant 0.000000e+00 : f32
    %581 = vector.broadcast %cst_182 : f32 to vector<8x128xf32>
    %582 = arith.select %580, %575, %581 : vector<8x128xi1>, vector<8x128xf32>
    %583 = arith.addf %570, %582 : vector<8x128xf32>
    %c0_183 = arith.constant 0 : index
    %c0_184 = arith.constant 0 : index
    %584 = vector.load %arg7[%c0_183, %c0_184] : memref<8x128xf32, #tpu.memory_space<vmem>>, vector<8x128xf32>
    %585 = arith.addf %584, %583 : vector<8x128xf32>
    %c0_185 = arith.constant 0 : index
    %c0_186 = arith.constant 0 : index
    %586 = vector.load %arg7[%c0_185, %c0_186] : memref<8x128xf32, #tpu.memory_space<vmem>>, vector<8x128xf32>
    tpu.vector_store %arg7[%c0_185, %c0_186], %585 {strides = array<i32>} : memref<8x128xf32, #tpu.memory_space<vmem>>, vector<8x128xf32>,
    %c0_187 = arith.constant 0 : index
    %c0_188 = arith.constant 0 : index
    %587 = vector.load %arg8[%c0_187, %c0_188] : memref<256x128xf32, #tpu.memory_space<vmem>>, vector<256x128xf32>
    %588 = arith.addf %587, %527 : vector<256x128xf32>
    %c0_189 = arith.constant 0 : index
    %c0_190 = arith.constant 0 : index
    %589 = vector.load %arg8[%c0_189, %c0_190] : memref<256x128xf32, #tpu.memory_space<vmem>>, vector<256x128xf32>
    tpu.vector_store %arg8[%c0_189, %c0_190], %588 {strides = array<i32>} : memref<256x128xf32, #tpu.memory_space<vmem>>, vector<256x128xf32>,
    %c0_191 = arith.constant 0 : index
    %c0_192 = arith.constant 0 : index
    %590 = vector.load %arg9[%c0_191, %c0_192] : memref<1x128xf32, #tpu.memory_space<vmem>>, vector<1x128xf32>
    %591 = arith.addf %590, %528 : vector<1x128xf32>
    %c0_193 = arith.constant 0 : index
    %c0_194 = arith.constant 0 : index
    %592 = vector.load %arg9[%c0_193, %c0_194] : memref<1x128xf32, #tpu.memory_space<vmem>>, vector<1x128xf32>
    tpu.vector_store %arg9[%c0_193, %c0_194], %591 {strides = array<i32>} : memref<1x128xf32, #tpu.memory_space<vmem>>, vector<1x128xf32>,
    return
  }
  func.func @transform_0(%arg0: i32) -> (i32, i32, i32) {
    %c0_i32 = arith.constant 0 : i32
    %c0_i32_0 = arith.constant 0 : i32
    %c0_i32_1 = arith.constant 0 : i32
    return %arg0, %c0_i32, %c0_i32_0 : i32, i32, i32
  }
  func.func @transform_1(%arg0: i32) -> (i32, i32, i32) {
    %c0_i32 = arith.constant 0 : i32
    %c0_i32_0 = arith.constant 0 : i32
    %c0_i32_1 = arith.constant 0 : i32
    return %arg0, %c0_i32, %c0_i32_0 : i32, i32, i32
  }
  func.func @transform_2(%arg0: i32) -> (i32, i32, i32) {
    %c0_i32 = arith.constant 0 : i32
    %c0_i32_0 = arith.constant 0 : i32
    %c0_i32_1 = arith.constant 0 : i32
    return %arg0, %c0_i32, %c0_i32_0 : i32, i32, i32
  }
  func.func @transform_3(%arg0: i32) -> (i32, i32, i32) {
    %c0_i32 = arith.constant 0 : i32
    %c0_i32_0 = arith.constant 0 : i32
    %c0_i32_1 = arith.constant 0 : i32
    return %arg0, %c0_i32, %c0_i32_0 : i32, i32, i32
  }
  func.func @transform_4(%arg0: i32) -> (i32, i32) {
    %c0_i32 = arith.constant 0 : i32
    %c0_i32_0 = arith.constant 0 : i32
    %c0_i32_1 = arith.constant 0 : i32
    return %c0_i32, %c0_i32_0 : i32, i32
  }
  func.func @transform_5(%arg0: i32) -> (i32, i32) {
    %c0_i32 = arith.constant 0 : i32
    %c0_i32_0 = arith.constant 0 : i32
    %c0_i32_1 = arith.constant 0 : i32
    return %c0_i32, %c0_i32_0 : i32, i32
  }
  func.func @transform_6(%arg0: i32) -> (i32, i32) {
    %c0_i32 = arith.constant 0 : i32
    %c0_i32_0 = arith.constant 0 : i32
    %c0_i32_1 = arith.constant 0 : i32
    return %c0_i32, %c0_i32_0 : i32, i32
  }
  func.func @transform_7(%arg0: i32) -> (i32, i32) {
    %c0_i32 = arith.constant 0 : i32
    %c0_i32_0 = arith.constant 0 : i32
    %c0_i32_1 = arith.constant 0 : i32
    return %c0_i32, %c0_i32_0 : i32, i32
  }
  func.func @transform_8(%arg0: i32) -> (i32, i32) {
    %c0_i32 = arith.constant 0 : i32
    %c0_i32_0 = arith.constant 0 : i32
    %c0_i32_1 = arith.constant 0 : i32
    return %c0_i32, %c0_i32_0 : i32, i32
  }
}

</mosaic_0001>

<llo_original>
// kernel: _forward.1
$region0: #{_forward.1}
  #allocation0 [shape = 'u32[]', space=smem, size = 0x4, offset = 0x4, fixed_abs, tag = 'smem constant byte address 0x4 - core index']
  #allocation1 [shape = 'u32[144,128]{1,0:T(1,128)}', space=vmem, size = 0x12000, scoped, tag = 'internal scratch']
  %s0 = inlined_call_operand.vmem [shape: bf16[2,8,256], index: 0, kind: input, shape index: {}]
  %s1 = inlined_call_operand.vmem [shape: f32[2,8,128], index: 1, kind: input, shape index: {}]
  %s2 = inlined_call_operand.vmem [shape: bf16[2,8,256], index: 2, kind: input, shape index: {}]
  %s3 = inlined_call_operand.vmem [shape: f32[2,8,128], index: 3, kind: input, shape index: {}]
  %s4 = inlined_call_operand.vmem [shape: f32[256,128], index: 4, kind: input, shape index: {}]
  %s5 = inlined_call_operand.vmem [shape: f32[1,128], index: 5, kind: input, shape index: {}]
  %s6 = inlined_call_operand.vmem [shape: f32[8,128], index: 6, kind: output, shape index: {0}]
  %s7 = inlined_call_operand.vmem [shape: f32[256,128], index: 7, kind: output, shape index: {1}]
  %s8 = inlined_call_operand.vmem [shape: f32[1,128], index: 8, kind: output, shape index: {2}]
  %9 = xla_tuple %s6, %s7, %s8
  %s10 = sld [smem:[#allocation0]]
  $region54: #{_forward.1} parent=0
    _
  %s12 = ssub.s32 1, %s10
  %s13 = scalar_select 0, %s12, %s10
  // Predicated region
  $region2: #{_forward.1} parent=0 // pred_check
    _
  $region3: #{_forward.1} parent=0 // pred_check_branch
    %15 = sbr.rel (0) target = $region5
  $region4: #{_forward.1} parent=0 // pred_region
    _
  $region5: #{_forward.1} parent=0 // pred_fallthru
    _
  // Predicated region
  $region6: #{_forward.1} parent=0 // pred_check
    _
  $region7: #{_forward.1} parent=0 // pred_check_branch
    %17 = sbr.rel (0) target = $region9
  $region8: #{_forward.1} parent=0 // pred_region
    _
  $region9: #{_forward.1} parent=0 // pred_fallthru
    _
  // Predicated region
  $region10: #{_forward.1} parent=0 // pred_check
    _
  $region11: #{_forward.1} parent=0 // pred_check_branch
    %19 = sbr.rel (0) target = $region13
  $region12: #{_forward.1} parent=0 // pred_region
    _
  $region13: #{_forward.1} parent=0 // pred_fallthru
    _
  // Predicated region
  $region14: #{_forward.1} parent=0 // pred_check
    _
  $region15: #{_forward.1} parent=0 // pred_check_branch
    %21 = sbr.rel (0) target = $region17
  $region16: #{_forward.1} parent=0 // pred_region
    _
  $region17: #{_forward.1} parent=0 // pred_fallthru
    _
  // Predicated region
  $region18: #{_forward.1} parent=0 // pred_check
    _
  $region19: #{_forward.1} parent=0 // pred_check_branch
    %23 = sbr.rel (0) target = $region21
  $region20: #{_forward.1} parent=0 // pred_region
    _
  $region21: #{_forward.1} parent=0 // pred_fallthru
    _
  // Predicated region
  $region22: #{_forward.1} parent=0 // pred_check
    _
  $region23: #{_forward.1} parent=0 // pred_check_branch
    %25 = sbr.rel (0) target = $region25
  $region24: #{_forward.1} parent=0 // pred_region
    _
  $region25: #{_forward.1} parent=0 // pred_fallthru
    _
  %p27 = scmp.eq.s32.totalorder 0, 0
  // Predicated region
  $region26: #{_forward.1} parent=0 // pred_check
    %p28 = pneg %p27
  $region27: #{_forward.1} parent=0 // pred_check_branch
    %30 = sbr.rel (%p28) target = $region29
  $region28: #{_forward.1} parent=0 // pred_region
    %31 = vst [vmem:[%s6] sm:$0xff] 0.0
    %32 = vst [vmem:[%s7] sm:$0xff] 0.0
    %33 = vst [vmem:[%s7 + $0x8] sm:$0xff] 0.0
    %34 = vst [vmem:[%s7 + $0x10] sm:$0xff] 0.0
    %35 = vst [vmem:[%s7 + $0x18] sm:$0xff] 0.0
    %36 = vst [vmem:[%s7 + $0x20] sm:$0xff] 0.0
    %37 = vst [vmem:[%s7 + $0x28] sm:$0xff] 0.0
    %38 = vst [vmem:[%s7 + $0x30] sm:$0xff] 0.0
    %39 = vst [vmem:[%s7 + $0x38] sm:$0xff] 0.0
    %40 = vst [vmem:[%s7 + $0x40] sm:$0xff] 0.0
    %41 = vst [vmem:[%s7 + $0x48] sm:$0xff] 0.0
    %42 = vst [vmem:[%s7 + $0x50] sm:$0xff] 0.0
    %43 = vst [vmem:[%s7 + $0x58] sm:$0xff] 0.0
    %44 = vst [vmem:[%s7 + $0x60] sm:$0xff] 0.0
    %45 = vst [vmem:[%s7 + $0x68] sm:$0xff] 0.0
    %46 = vst [vmem:[%s7 + $0x70] sm:$0xff] 0.0
    %47 = vst [vmem:[%s7 + $0x78] sm:$0xff] 0.0
    %48 = vst [vmem:[%s7 + $0x80] sm:$0xff] 0.0
    %49 = vst [vmem:[%s7 + $0x88] sm:$0xff] 0.0
    %50 = vst [vmem:[%s7 + $0x90] sm:$0xff] 0.0
    %51 = vst [vmem:[%s7 + $0x98] sm:$0xff] 0.0
    %52 = vst [vmem:[%s7 + $0xa0] sm:$0xff] 0.0
    %53 = vst [vmem:[%s7 + $0xa8] sm:$0xff] 0.0
    %54 = vst [vmem:[%s7 + $0xb0] sm:$0xff] 0.0
    %55 = vst [vmem:[%s7 + $0xb8] sm:$0xff] 0.0
    %56 = vst [vmem:[%s7 + $0xc0] sm:$0xff] 0.0
    %57 = vst [vmem:[%s7 + $0xc8] sm:$0xff] 0.0
    %58 = vst [vmem:[%s7 + $0xd0] sm:$0xff] 0.0
    %59 = vst [vmem:[%s7 + $0xd8] sm:$0xff] 0.0
    %60 = vst [vmem:[%s7 + $0xe0] sm:$0xff] 0.0
    %61 = vst [vmem:[%s7 + $0xe8] sm:$0xff] 0.0
    %62 = vst [vmem:[%s7 + $0xf0] sm:$0xff] 0.0
    %63 = vst [vmem:[%s7 + $0xf8] sm:$0xff] 0.0
    %64 = vst [vmem:[%s8] sm:$0x1] 0.0
  $region29: #{_forward.1} parent=0 // pred_fallthru
    _
  %v65 = vld [vmem:[%s4] sm:$0xff]
  %v66 = vld [vmem:[%s4 + $0x8] sm:$0xff]
  %v67 = vld [vmem:[%s4 + $0x10] sm:$0xff]
  %v68 = vld [vmem:[%s4 + $0x18] sm:$0xff]
  %v69 = vld [vmem:[%s4 + $0x20] sm:$0xff]
  %v70 = vld [vmem:[%s4 + $0x28] sm:$0xff]
  %v71 = vld [vmem:[%s4 + $0x30] sm:$0xff]
  %v72 = vld [vmem:[%s4 + $0x38] sm:$0xff]
  %v73 = vld [vmem:[%s4 + $0x40] sm:$0xff]
  %v74 = vld [vmem:[%s4 + $0x48] sm:$0xff]
  %v75 = vld [vmem:[%s4 + $0x50] sm:$0xff]
  %v76 = vld [vmem:[%s4 + $0x58] sm:$0xff]
  %v77 = vld [vmem:[%s4 + $0x60] sm:$0xff]
  %v78 = vld [vmem:[%s4 + $0x68] sm:$0xff]
  %v79 = vld [vmem:[%s4 + $0x70] sm:$0xff]
  %v80 = vld [vmem:[%s4 + $0x78] sm:$0xff]
  %v81 = vld [vmem:[%s4 + $0x80] sm:$0xff]
  %v82 = vld [vmem:[%s4 + $0x88] sm:$0xff]
  %v83 = vld [vmem:[%s4 + $0x90] sm:$0xff]
  %v84 = vld [vmem:[%s4 + $0x98] sm:$0xff]
  %v85 = vld [vmem:[%s4 + $0xa0] sm:$0xff]
  %v86 = vld [vmem:[%s4 + $0xa8] sm:$0xff]
  %v87 = vld [vmem:[%s4 + $0xb0] sm:$0xff]
  %v88 = vld [vmem:[%s4 + $0xb8] sm:$0xff]
  %v89 = vld [vmem:[%s4 + $0xc0] sm:$0xff]
  %v90 = vld [vmem:[%s4 + $0xc8] sm:$0xff]
  %v91 = vld [vmem:[%s4 + $0xd0] sm:$0xff]
  %v92 = vld [vmem:[%s4 + $0xd8] sm:$0xff]
  %v93 = vld [vmem:[%s4 + $0xe0] sm:$0xff]
  %v94 = vld [vmem:[%s4 + $0xe8] sm:$0xff]
  %v95 = vld [vmem:[%s4 + $0xf0] sm:$0xff]
  %v96 = vld [vmem:[%s4 + $0xf8] sm:$0xff]
  %v97 = vld [vmem:[%s5] sm:$0x1]
  %v98 = vpack.c.bf16 %v66, %v65
  %v99 = vpack.c.bf16 %v68, %v67
  %v100 = vpack.c.bf16 %v70, %v69
  %v101 = vpack.c.bf16 %v72, %v71
  %v102 = vpack.c.bf16 %v74, %v73
  %v103 = vpack.c.bf16 %v76, %v75
  %v104 = vpack.c.bf16 %v78, %v77
  %v105 = vpack.c.bf16 %v80, %v79
  %v106 = vpack.c.bf16 %v82, %v81
  %v107 = vpack.c.bf16 %v84, %v83
  %v108 = vpack.c.bf16 %v86, %v85
  %v109 = vpack.c.bf16 %v88, %v87
  %v110 = vpack.c.bf16 %v90, %v89
  %v111 = vpack.c.bf16 %v92, %v91
  %v112 = vpack.c.bf16 %v94, %v93
  %v113 = vpack.c.bf16 %v96, %v95
  %v114 = vlaneseq
  %v115 = vand.u32 %v114, 127
  %v116 = vld [vmem:[%s0] sm:$0xff]
  %v117 = vld [vmem:[%s1] sm:$0xff]
  %v118 = vld [vmem:[%s2] sm:$0xff]
  %v119 = vld [vmem:[%s3] sm:$0xff]
  %v120 = vcvt.s32.f32 %v115
  %v121 = vmul.f32 %v119, %v120
  %122 = vadd.xlane.f32.xlu0 %v121
  %v123 = vpop.xlane.xlu0 %122
  %v124 = vcvt.f32.s32.to.zero.pseudo %v123
  %v126 = vlaneseq
  %v127 = vshrl.u32 %v126, 7
  %v128 = vsub.s32 0, %v127
  %v129 = vrot.slane %v97, %v128
  %v132 = vunpack.c.l.b16 %v118
  %v133 = vunpack.c.h.b16 %v118
  %v134 = vpack.c.b16 %v132, %v132
  %v135 = vpack.c.b16 %v133, %v133
  %138 = vmatprep.subr.bf16.mxu0 0
  %139 = vmatpush1.bf16.msra.mxu0 %v98
  %140 = vmatprep.subr.bf16.mxu0 0
  %141 = vmatpush1.bf16.msra.mxu0 %v99
  %142 = vmatprep.subr.bf16.mxu0 0
  %143 = vmatpush1.bf16.msra.mxu0 %v100
  %144 = vmatprep.subr.bf16.mxu0 0
  %145 = vmatpush1.bf16.msra.mxu0 %v101
  %146 = vmatprep.subr.bf16.mxu0 0
  %147 = vmatpush1.bf16.msra.mxu0 %v102
  %148 = vmatprep.subr.bf16.mxu0 0
  %149 = vmatpush1.bf16.msra.mxu0 %v103
  %150 = vmatprep.subr.bf16.mxu0 0
  %151 = vmatpush1.bf16.msra.mxu0 %v104
  %152 = vmatprep.subr.bf16.mxu0 0
  %153 = vmatpush1.bf16.msra.mxu0 %v105
  %154 = vmatprep.subr.bf16.mxu0 0
  %155 = vmatpush1.bf16.msra.mxu0 %v106
  %156 = vmatprep.subr.bf16.mxu0 0
  %157 = vmatpush1.bf16.msra.mxu0 %v107
  %158 = vmatprep.subr.bf16.mxu0 0
  %159 = vmatpush1.bf16.msra.mxu0 %v108
  %160 = vmatprep.subr.bf16.mxu0 0
  %161 = vmatpush1.bf16.msra.mxu0 %v109
  %162 = vmatprep.subr.bf16.mxu0 0
  %163 = vmatpush1.bf16.msra.mxu0 %v110
  %164 = vmatprep.subr.bf16.mxu0 0
  %165 = vmatpush1.bf16.msra.mxu0 %v111
  %166 = vmatprep.subr.bf16.mxu0 0
  %167 = vmatpush1.bf16.msra.mxu0 %v112
  %168 = vmatprep.subr.bf16.mxu0 0
  %169 = vmatpush1.bf16.msra.mxu0 %v113
  %170 = vmatprep.mubr.bf16.mxu0 %v135
  %171 = vmatmul.mubr.bf16.gmra.mrb[0].mxu0 %v134
  %v172 = vpop.f32.mrb[0].mxu0
  %v173 = vadd.f32 %v129, %v172
  %v174 = vpop.f32.mrb[0].mxu0
  %v175 = vpop.f32.mrb[0].mxu0
  %v176 = vpop.f32.mrb[0].mxu0
  %177 = vdwg.mxu0
  %178 = vmax.xlane.f32.xlu0 %v173
  %v179 = vpop.xlane.xlu0 %178
  %v180 = vsub.f32 %v173, %v179
  %v181 = vmul.f32 %v180, 1.442695
  %v182 = vpow.pop %v181
  %183 = vadd.xlane.f32.xlu0 %v182
  %v184 = vpop.xlane.xlu0 %183
  %v185 = vlog2.pop %v184
  %v186 = vmul.f32 %v185, 0.6931472
  %v187 = vadd.f32 %v179, %v186
  %v188 = vmul.f32 %v119, %v173
  %189 = vadd.xlane.f32.xlu0 %v188
  %v190 = vpop.xlane.xlu0 %189
  %v191 = vsub.f32 %v187, %v190
  %vm192 = vcmask 7168
  %v193 = vsel %vm192, %v191, 0.0
  %194 = vadd.xlane.f32.xlu0 %v193
  %v195 = vpop.xlane.xlu0 %194
  %v196 = vrot.slane %v195, 4
  %v197 = vadd.f32 %v195, %v196
  %v198 = vrot.slane %v197, 2
  %v199 = vadd.f32 %v197, %v198
  %v200 = vrot.slane %v199, 1
  %v201 = vadd.f32 %v199, %v200
  %s202 = vtos %v201
  %s203 = smul.f32 %s202, 0.125
  %vm204 = vcmp.eq.f32.partialorder %v173, %v179
  %v205 = vsel %vm204, %v115, 128
  %v206 = vand.u32 %v205, 65535
  %v207 = vshra.s32 %v205, 16
  %v208 = vcvt.s32.f32 %v206
  %v209 = vcvt.s32.f32 %v207
  %210 = vmin.xlane.f32.xlu0 %v209
  %v211 = vpop.xlane.xlu0 %210
  %vm212 = vcmp.eq.f32.partialorder %v209, %v211
  %v213 = vsel %vm212, %v208, inf
  %214 = vmin.xlane.f32.xlu0 %v213
  %v215 = vpop.xlane.xlu0 %214
  %v216 = vcvt.f32.s32 %v215
  %v217 = vcvt.f32.s32 %v211
  %v218 = vshll.u32 %v217, 16
  %v219 = vadd.s32 %v218, %v216
  %vm220 = vcmp.eq.s32.totalorder %v219, %v124
  %v221 = vsel %vm220, 1, 0
  %v222 = vcvt.s32.f32 %v221
  %v223 = vsel %vm192, %v222, 0.0
  %224 = vadd.xlane.f32.xlu0 %v223
  %v225 = vpop.xlane.xlu0 %224
  %v226 = vrot.slane %v225, 4
  %v227 = vadd.f32 %v225, %v226
  %v228 = vrot.slane %v227, 2
  %v229 = vadd.f32 %v227, %v228
  %v230 = vrot.slane %v229, 1
  %v231 = vadd.f32 %v229, %v230
  %s232 = vtos %v231
  %s233 = sadd.f32 %s203, 0.0
  %s234 = sadd.f32 %s232, 0.0
  %v236 = vunpack.c.l.b16 %v116
  %v237 = vunpack.c.h.b16 %v116
  %v238 = vpack.c.b16 %v236, %v236
  %v239 = vpack.c.b16 %v237, %v237
  %242 = vmatprep.subr.bf16.mxu0 0
  %243 = vmatpush1.bf16.msra.mxu0 %v98
  %244 = vmatprep.subr.bf16.mxu0 0
  %245 = vmatpush1.bf16.msra.mxu0 %v99
  %246 = vmatprep.subr.bf16.mxu0 0
  %247 = vmatpush1.bf16.msra.mxu0 %v100
  %248 = vmatprep.subr.bf16.mxu0 0
  %249 = vmatpush1.bf16.msra.mxu0 %v101
  %250 = vmatprep.subr.bf16.mxu0 0
  %251 = vmatpush1.bf16.msra.mxu0 %v102
  %252 = vmatprep.subr.bf16.mxu0 0
  %253 = vmatpush1.bf16.msra.mxu0 %v103
  %254 = vmatprep.subr.bf16.mxu0 0
  %255 = vmatpush1.bf16.msra.mxu0 %v104
  %256 = vmatprep.subr.bf16.mxu0 0
  %257 = vmatpush1.bf16.msra.mxu0 %v105
  %258 = vmatprep.subr.bf16.mxu0 0
  %259 = vmatpush1.bf16.msra.mxu0 %v106
  %260 = vmatprep.subr.bf16.mxu0 0
  %261 = vmatpush1.bf16.msra.mxu0 %v107
  %262 = vmatprep.subr.bf16.mxu0 0
  %263 = vmatpush1.bf16.msra.mxu0 %v108
  %264 = vmatprep.subr.bf16.mxu0 0
  %265 = vmatpush1.bf16.msra.mxu0 %v109
  %266 = vmatprep.subr.bf16.mxu0 0
  %267 = vmatpush1.bf16.msra.mxu0 %v110
  %268 = vmatprep.subr.bf16.mxu0 0
  %269 = vmatpush1.bf16.msra.mxu0 %v111
  %270 = vmatprep.subr.bf16.mxu0 0
  %271 = vmatpush1.bf16.msra.mxu0 %v112
  %272 = vmatprep.subr.bf16.mxu0 0
  %273 = vmatpush1.bf16.msra.mxu0 %v113
  %274 = vmatprep.mubr.bf16.mxu0 %v239
  %275 = vmatmul.mubr.bf16.gmra.mrb[0].mxu0 %v238
  %v276 = vpop.f32.mrb[0].mxu0
  %v277 = vadd.f32 %v129, %v276
  %v278 = vpop.f32.mrb[0].mxu0
  %v279 = vpop.f32.mrb[0].mxu0
  %v280 = vpop.f32.mrb[0].mxu0
  %281 = vdwg.mxu0
  %282 = vmax.xlane.f32.xlu0 %v277
  %v283 = vpop.xlane.xlu0 %282
  %v284 = vsub.f32 %v277, %v283
  %v285 = vmul.f32 %v284, 1.442695
  %v286 = vpow.pop %v285
  %287 = vadd.xlane.f32.xlu0 %v286
  %v288 = vpop.xlane.xlu0 %287
  %v289 = vrcp.pop %v288
  %v290 = vmul.f32 %v286, %v289
  %v291 = vsub.f32 %v290, %v117
  %v292 = vmul.f32 %v291, 0.125
  %v293 = vpack.c.bf16 %v292, %v292
  %294 = vxpose.xlu0.c.b16.start [1/8] %v238, 128
  %295 = vxpose.xlu0.c.b16.cont [2/8] 0, 128
  %296 = vxpose.xlu0.c.b16.cont [3/8] 0, 128
  %297 = vxpose.xlu0.c.b16.cont [4/8] 0, 128
  %298 = vxpose.xlu0.c.b16.cont [5/8] 0, 128
  %299 = vxpose.xlu0.c.b16.cont [6/8] 0, 128
  %300 = vxpose.xlu0.c.b16.cont [7/8] 0, 128
  %301 = vxpose.xlu0.c.b16.end [8/8] 0, 128
  %v302 = vpop.trf.xlu0
  %v303 = vpop.trf.xlu0
  %v304 = vpop.trf.xlu0
  %v305 = vpop.trf.xlu0
  %v306 = vpop.trf.xlu0
  %v307 = vpop.trf.xlu0
  %v308 = vpop.trf.xlu0
  %v309 = vpop.trf.xlu0
  %310 = vxpose.xlu0.c.b16.start [1/8] %v239, 128
  %311 = vxpose.xlu0.c.b16.cont [2/8] 0, 128
  %312 = vxpose.xlu0.c.b16.cont [3/8] 0, 128
  %313 = vxpose.xlu0.c.b16.cont [4/8] 0, 128
  %314 = vxpose.xlu0.c.b16.cont [5/8] 0, 128
  %315 = vxpose.xlu0.c.b16.cont [6/8] 0, 128
  %316 = vxpose.xlu0.c.b16.cont [7/8] 0, 128
  %317 = vxpose.xlu0.c.b16.end [8/8] 0, 128
  %v318 = vpop.trf.xlu0
  %v319 = vpop.trf.xlu0
  %v320 = vpop.trf.xlu0
  %v321 = vpop.trf.xlu0
  %v322 = vpop.trf.xlu0
  %v323 = vpop.trf.xlu0
  %v324 = vpop.trf.xlu0
  %v325 = vpop.trf.xlu0
  %vm326 = vcmask 64512
  %v328 = vsel %vm326, %v302, 0
  %v331 = vsel %vm326, %v303, 0
  %v334 = vsel %vm326, %v304, 0
  %v337 = vsel %vm326, %v305, 0
  %v340 = vsel %vm326, %v306, 0
  %v343 = vsel %vm326, %v307, 0
  %v346 = vsel %vm326, %v308, 0
  %v349 = vsel %vm326, %v309, 0
  %v352 = vsel %vm326, %v318, 0
  %v355 = vsel %vm326, %v319, 0
  %v358 = vsel %vm326, %v320, 0
  %v361 = vsel %vm326, %v321, 0
  %v364 = vsel %vm326, %v322, 0
  %v367 = vsel %vm326, %v323, 0
  %v370 = vsel %vm326, %v324, 0
  %v373 = vsel %vm326, %v325, 0
  %vm375 = vcmask 1043456
  %v377 = vsel %vm375, %v293, 0
  %379 = vmatprep.subr.bf16.mxu0 0
  %380 = vmatpush1.bf16.msra.mxu0 %v377
  %381 = vmatprep.subr.bf16.mxu0 0
  %382 = vmatpush1.bf16.msra.mxu0 0
  %383 = vmatprep.subr.bf16.mxu0 0
  %384 = vmatpush1.bf16.msra.mxu0 0
  %385 = vmatprep.subr.bf16.mxu0 0
  %386 = vmatpush1.bf16.msra.mxu0 0
  %387 = vmatprep.subr.bf16.mxu0 0
  %388 = vmatpush1.bf16.msra.mxu0 0
  %389 = vmatprep.subr.bf16.mxu0 0
  %390 = vmatpush1.bf16.msra.mxu0 0
  %391 = vmatprep.subr.bf16.mxu0 0
  %392 = vmatpush1.bf16.msra.mxu0 0
  %393 = vmatprep.subr.bf16.mxu0 0
  %394 = vmatpush1.bf16.msra.mxu0 0
  %395 = vmatprep.subr.bf16.mxu0 0
  %396 = vmatpush1.bf16.msra.mxu0 0
  %397 = vmatprep.subr.bf16.mxu0 0
  %398 = vmatpush1.bf16.msra.mxu0 0
  %399 = vmatprep.subr.bf16.mxu0 0
  %400 = vmatpush1.bf16.msra.mxu0 0
  %401 = vmatprep.subr.bf16.mxu0 0
  %402 = vmatpush1.bf16.msra.mxu0 0
  %403 = vmatprep.subr.bf16.mxu0 0
  %404 = vmatpush1.bf16.msra.mxu0 0
  %405 = vmatprep.subr.bf16.mxu0 0
  %406 = vmatpush1.bf16.msra.mxu0 0
  %407 = vmatprep.subr.bf16.mxu0 0
  %408 = vmatpush1.bf16.msra.mxu0 0
  %409 = vmatprep.subr.bf16.mxu0 0
  %410 = vmatpush1.bf16.msra.mxu0 0
  %411 = vmatprep.mubr.bf16.mxu0 0
  %412 = vmatmul.mubr.bf16.gmra.mrb[0].mxu0 %v328
  %v413 = vpop.f32.mrb[0].mxu0
  %v414 = vadd.f32 0.0, %v413
  %v415 = vpop.f32.mrb[0].mxu0
  %v416 = vpop.f32.mrb[0].mxu0
  %v417 = vadd.f32 0.0, %v416
  %v418 = vpop.f32.mrb[0].mxu0
  %419 = vmatprep.mubr.bf16.mxu0 0
  %420 = vmatmul.mubr.bf16.gmra.mrb[0].mxu0 %v331
  %v421 = vpop.f32.mrb[0].mxu0
  %v422 = vadd.f32 0.0, %v421
  %v423 = vpop.f32.mrb[0].mxu0
  %v424 = vpop.f32.mrb[0].mxu0
  %v425 = vadd.f32 0.0, %v424
  %v426 = vpop.f32.mrb[0].mxu0
  %427 = vmatprep.mubr.bf16.mxu0 0
  %428 = vmatmul.mubr.bf16.gmra.mrb[0].mxu0 %v334
  %v429 = vpop.f32.mrb[0].mxu0
  %v430 = vadd.f32 0.0, %v429
  %v431 = vpop.f32.mrb[0].mxu0
  %v432 = vpop.f32.mrb[0].mxu0
  %v433 = vadd.f32 0.0, %v432
  %v434 = vpop.f32.mrb[0].mxu0
  %435 = vmatprep.mubr.bf16.mxu0 0
  %436 = vmatmul.mubr.bf16.gmra.mrb[0].mxu0 %v337
  %v437 = vpop.f32.mrb[0].mxu0
  %v438 = vadd.f32 0.0, %v437
  %v439 = vpop.f32.mrb[0].mxu0
  %v440 = vpop.f32.mrb[0].mxu0
  %v441 = vadd.f32 0.0, %v440
  %v442 = vpop.f32.mrb[0].mxu0
  %443 = vmatprep.mubr.bf16.mxu0 0
  %444 = vmatmul.mubr.bf16.gmra.mrb[0].mxu0 %v340
  %v445 = vpop.f32.mrb[0].mxu0
  %v446 = vadd.f32 0.0, %v445
  %v447 = vpop.f32.mrb[0].mxu0
  %v448 = vpop.f32.mrb[0].mxu0
  %v449 = vadd.f32 0.0, %v448
  %v450 = vpop.f32.mrb[0].mxu0
  %451 = vmatprep.mubr.bf16.mxu0 0
  %452 = vmatmul.mubr.bf16.gmra.mrb[0].mxu0 %v343
  %v453 = vpop.f32.mrb[0].mxu0
  %v454 = vadd.f32 0.0, %v453
  %v455 = vpop.f32.mrb[0].mxu0
  %v456 = vpop.f32.mrb[0].mxu0
  %v457 = vadd.f32 0.0, %v456
  %v458 = vpop.f32.mrb[0].mxu0
  %459 = vmatprep.mubr.bf16.mxu0 0
  %460 = vmatmul.mubr.bf16.gmra.mrb[0].mxu0 %v346
  %v461 = vpop.f32.mrb[0].mxu0
  %v462 = vadd.f32 0.0, %v461
  %v463 = vpop.f32.mrb[0].mxu0
  %v464 = vpop.f32.mrb[0].mxu0
  %v465 = vadd.f32 0.0, %v464
  %v466 = vpop.f32.mrb[0].mxu0
  %467 = vmatprep.mubr.bf16.mxu0 0
  %468 = vmatmul.mubr.bf16.gmra.mrb[0].mxu0 %v349
  %v469 = vpop.f32.mrb[0].mxu0
  %v470 = vadd.f32 0.0, %v469
  %v471 = vpop.f32.mrb[0].mxu0
  %v472 = vpop.f32.mrb[0].mxu0
  %v473 = vadd.f32 0.0, %v472
  %v474 = vpop.f32.mrb[0].mxu0
  %475 = vmatprep.mubr.bf16.mxu0 0
  %476 = vmatmul.mubr.bf16.gmra.mrb[0].mxu0 %v352
  %v477 = vpop.f32.mrb[0].mxu0
  %v478 = vadd.f32 0.0, %v477
  %v479 = vpop.f32.mrb[0].mxu0
  %v480 = vpop.f32.mrb[0].mxu0
  %v481 = vadd.f32 0.0, %v480
  %v482 = vpop.f32.mrb[0].mxu0
  %483 = vmatprep.mubr.bf16.mxu0 0
  %484 = vmatmul.mubr.bf16.gmra.mrb[0].mxu0 %v355
  %v485 = vpop.f32.mrb[0].mxu0
  %v486 = vadd.f32 0.0, %v485
  %v487 = vpop.f32.mrb[0].mxu0
  %v488 = vpop.f32.mrb[0].mxu0
  %v489 = vadd.f32 0.0, %v488
  %v490 = vpop.f32.mrb[0].mxu0
  %491 = vmatprep.mubr.bf16.mxu0 0
  %492 = vmatmul.mubr.bf16.gmra.mrb[0].mxu0 %v358
  %v493 = vpop.f32.mrb[0].mxu0
  %v494 = vadd.f32 0.0, %v493
  %v495 = vpop.f32.mrb[0].mxu0
  %v496 = vpop.f32.mrb[0].mxu0
  %v497 = vadd.f32 0.0, %v496
  %v498 = vpop.f32.mrb[0].mxu0
  %499 = vmatprep.mubr.bf16.mxu0 0
  %500 = vmatmul.mubr.bf16.gmra.mrb[0].mxu0 %v361
  %v501 = vpop.f32.mrb[0].mxu0
  %v502 = vadd.f32 0.0, %v501
  %v503 = vpop.f32.mrb[0].mxu0
  %v504 = vpop.f32.mrb[0].mxu0
  %v505 = vadd.f32 0.0, %v504
  %v506 = vpop.f32.mrb[0].mxu0
  %507 = vmatprep.mubr.bf16.mxu0 0
  %508 = vmatmul.mubr.bf16.gmra.mrb[0].mxu0 %v364
  %v509 = vpop.f32.mrb[0].mxu0
  %v510 = vadd.f32 0.0, %v509
  %v511 = vpop.f32.mrb[0].mxu0
  %v512 = vpop.f32.mrb[0].mxu0
  %v513 = vadd.f32 0.0, %v512
  %v514 = vpop.f32.mrb[0].mxu0
  %515 = vmatprep.mubr.bf16.mxu0 0
  %516 = vmatmul.mubr.bf16.gmra.mrb[0].mxu0 %v367
  %v517 = vpop.f32.mrb[0].mxu0
  %v518 = vadd.f32 0.0, %v517
  %v519 = vpop.f32.mrb[0].mxu0
  %v520 = vpop.f32.mrb[0].mxu0
  %v521 = vadd.f32 0.0, %v520
  %v522 = vpop.f32.mrb[0].mxu0
  %523 = vmatprep.mubr.bf16.mxu0 0
  %524 = vmatmul.mubr.bf16.gmra.mrb[0].mxu0 %v370
  %v525 = vpop.f32.mrb[0].mxu0
  %v526 = vadd.f32 0.0, %v525
  %v527 = vpop.f32.mrb[0].mxu0
  %v528 = vpop.f32.mrb[0].mxu0
  %v529 = vadd.f32 0.0, %v528
  %v530 = vpop.f32.mrb[0].mxu0
  %531 = vmatprep.mubr.bf16.mxu0 0
  %532 = vmatmul.mubr.bf16.gmra.mrb[0].mxu0 %v373
  %v533 = vpop.f32.mrb[0].mxu0
  %v534 = vadd.f32 0.0, %v533
  %v535 = vpop.f32.mrb[0].mxu0
  %v536 = vpop.f32.mrb[0].mxu0
  %v537 = vadd.f32 0.0, %v536
  %v538 = vpop.f32.mrb[0].mxu0
  %539 = vdwg.mxu0
  %v540 = vrot.slane %v292, 4
  %v541 = vadd.f32 %v292, %v540
  %v542 = vrot.slane %v541, 2
  %v543 = vadd.f32 %v541, %v542
  %v544 = vrot.slane %v543, 1
  %v545 = vadd.f32 %v543, %v544
  %v546 = vmul.f32 %v414, 0.4
  %v547 = vmul.f32 %v417, 0.4
  %v548 = vmul.f32 %v422, 0.4
  %v549 = vmul.f32 %v425, 0.4
  %v550 = vmul.f32 %v430, 0.4
  %v551 = vmul.f32 %v433, 0.4
  %v552 = vmul.f32 %v438, 0.4
  %v553 = vmul.f32 %v441, 0.4
  %v554 = vmul.f32 %v446, 0.4
  %v555 = vmul.f32 %v449, 0.4
  %v556 = vmul.f32 %v454, 0.4
  %v557 = vmul.f32 %v457, 0.4
  %v558 = vmul.f32 %v462, 0.4
  %v559 = vmul.f32 %v465, 0.4
  %v560 = vmul.f32 %v470, 0.4
  %v561 = vmul.f32 %v473, 0.4
  %v562 = vmul.f32 %v478, 0.4
  %v563 = vmul.f32 %v481, 0.4
  %v564 = vmul.f32 %v486, 0.4
  %v565 = vmul.f32 %v489, 0.4
  %v566 = vmul.f32 %v494, 0.4
  %v567 = vmul.f32 %v497, 0.4
  %v568 = vmul.f32 %v502, 0.4
  %v569 = vmul.f32 %v505, 0.4
  %v570 = vmul.f32 %v510, 0.4
  %v571 = vmul.f32 %v513, 0.4
  %v572 = vmul.f32 %v518, 0.4
  %v573 = vmul.f32 %v521, 0.4
  %v574 = vmul.f32 %v526, 0.4
  %v575 = vmul.f32 %v529, 0.4
  %v576 = vmul.f32 %v534, 0.4
  %v577 = vmul.f32 %v537, 0.4
  %v578 = vsub.f32 %v65, %v546
  %v579 = vsub.f32 %v66, %v547
  %v580 = vsub.f32 %v67, %v548
  %v581 = vsub.f32 %v68, %v549
  %v582 = vsub.f32 %v69, %v550
  %v583 = vsub.f32 %v70, %v551
  %v584 = vsub.f32 %v71, %v552
  %v585 = vsub.f32 %v72, %v553
  %v586 = vsub.f32 %v73, %v554
  %v587 = vsub.f32 %v74, %v555
  %v588 = vsub.f32 %v75, %v556
  %v589 = vsub.f32 %v76, %v557
  %v590 = vsub.f32 %v77, %v558
  %v591 = vsub.f32 %v78, %v559
  %v592 = vsub.f32 %v79, %v560
  %v593 = vsub.f32 %v80, %v561
  %v594 = vsub.f32 %v81, %v562
  %v595 = vsub.f32 %v82, %v563
  %v596 = vsub.f32 %v83, %v564
  %v597 = vsub.f32 %v84, %v565
  %v598 = vsub.f32 %v85, %v566
  %v599 = vsub.f32 %v86, %v567
  %v600 = vsub.f32 %v87, %v568
  %v601 = vsub.f32 %v88, %v569
  %v602 = vsub.f32 %v89, %v570
  %v603 = vsub.f32 %v90, %v571
  %v604 = vsub.f32 %v91, %v572
  %v605 = vsub.f32 %v92, %v573
  %v606 = vsub.f32 %v93, %v574
  %v607 = vsub.f32 %v94, %v575
  %v608 = vsub.f32 %v95, %v576
  %v609 = vsub.f32 %v96, %v577
  %v610 = vmul.f32 %v545, 0.4
  %v611 = vsub.f32 %v97, %v610
  %v612 = vpack.c.bf16 %v579, %v578
  %v613 = vpack.c.bf16 %v581, %v580
  %v614 = vpack.c.bf16 %v583, %v582
  %v615 = vpack.c.bf16 %v585, %v584
  %v616 = vpack.c.bf16 %v587, %v586
  %v617 = vpack.c.bf16 %v589, %v588
  %v618 = vpack.c.bf16 %v591, %v590
  %v619 = vpack.c.bf16 %v593, %v592
  %v620 = vpack.c.bf16 %v595, %v594
  %v621 = vpack.c.bf16 %v597, %v596
  %v622 = vpack.c.bf16 %v599, %v598
  %v623 = vpack.c.bf16 %v601, %v600
  %v624 = vpack.c.bf16 %v603, %v602
  %v625 = vpack.c.bf16 %v605, %v604
  %v626 = vpack.c.bf16 %v607, %v606
  %v627 = vpack.c.bf16 %v609, %v608
  %v629 = vlaneseq
  %v630 = vshrl.u32 %v629, 7
  %v631 = vsub.s32 0, %v630
  %v632 = vrot.slane %v611, %v631
  %634 = vmatprep.subr.bf16.mxu0 0
  %635 = vmatpush1.bf16.msra.mxu0 %v612
  %636 = vmatprep.subr.bf16.mxu0 0
  %637 = vmatpush1.bf16.msra.mxu0 %v613
  %638 = vmatprep.subr.bf16.mxu0 0
  %639 = vmatpush1.bf16.msra.mxu0 %v614
  %640 = vmatprep.subr.bf16.mxu0 0
  %641 = vmatpush1.bf16.msra.mxu0 %v615
  %642 = vmatprep.subr.bf16.mxu0 0
  %643 = vmatpush1.bf16.msra.mxu0 %v616
  %644 = vmatprep.subr.bf16.mxu0 0
  %645 = vmatpush1.bf16.msra.mxu0 %v617
  %646 = vmatprep.subr.bf16.mxu0 0
  %647 = vmatpush1.bf16.msra.mxu0 %v618
  %648 = vmatprep.subr.bf16.mxu0 0
  %649 = vmatpush1.bf16.msra.mxu0 %v619
  %650 = vmatprep.subr.bf16.mxu0 0
  %651 = vmatpush1.bf16.msra.mxu0 %v620
  %652 = vmatprep.subr.bf16.mxu0 0
  %653 = vmatpush1.bf16.msra.mxu0 %v621
  %654 = vmatprep.subr.bf16.mxu0 0
  %655 = vmatpush1.bf16.msra.mxu0 %v622
  %656 = vmatprep.subr.bf16.mxu0 0
  %657 = vmatpush1.bf16.msra.mxu0 %v623
  %658 = vmatprep.subr.bf16.mxu0 0
  %659 = vmatpush1.bf16.msra.mxu0 %v624
  %660 = vmatprep.subr.bf16.mxu0 0
  %661 = vmatpush1.bf16.msra.mxu0 %v625
  %662 = vmatprep.subr.bf16.mxu0 0
  %663 = vmatpush1.bf16.msra.mxu0 %v626
  %664 = vmatprep.subr.bf16.mxu0 0
  %665 = vmatpush1.bf16.msra.mxu0 %v627
  %666 = vmatprep.mubr.bf16.mxu0 %v135
  %667 = vmatmul.mubr.bf16.gmra.mrb[0].mxu0 %v134
  %v668 = vpop.f32.mrb[0].mxu0
  %v669 = vadd.f32 %v632, %v668
  %v670 = vpop.f32.mrb[0].mxu0
  %v671 = vpop.f32.mrb[0].mxu0
  %v672 = vpop.f32.mrb[0].mxu0
  %673 = vdwg.mxu0
  %674 = vmax.xlane.f32.xlu0 %v669
  %v675 = vpop.xlane.xlu0 %674
  %v676 = vsub.f32 %v669, %v675
  %v677 = vmul.f32 %v676, 1.442695
  %v678 = vpow.pop %v677
  %679 = vadd.xlane.f32.xlu0 %v678
  %v680 = vpop.xlane.xlu0 %679
  %v681 = vlog2.pop %v680
  %v682 = vmul.f32 %v681, 0.6931472
  %v683 = vadd.f32 %v675, %v682
  %v684 = vmul.f32 %v119, %v669
  %685 = vadd.xlane.f32.xlu0 %v684
  %v686 = vpop.xlane.xlu0 %685
  %v687 = vsub.f32 %v683, %v686
  %v688 = vsel %vm192, %v687, 0.0
  %689 = vadd.xlane.f32.xlu0 %v688
  %v690 = vpop.xlane.xlu0 %689
  %v691 = vrot.slane %v690, 4
  %v692 = vadd.f32 %v690, %v691
  %v693 = vrot.slane %v692, 2
  %v694 = vadd.f32 %v692, %v693
  %v695 = vrot.slane %v694, 1
  %v696 = vadd.f32 %v694, %v695
  %s697 = vtos %v696
  %s698 = smul.f32 %s697, 0.125
  %vm699 = vcmp.eq.f32.partialorder %v669, %v675
  %v700 = vsel %vm699, %v115, 128
  %v701 = vand.u32 %v700, 65535
  %v702 = vshra.s32 %v700, 16
  %v703 = vcvt.s32.f32 %v701
  %v704 = vcvt.s32.f32 %v702
  %705 = vmin.xlane.f32.xlu0 %v704
  %v706 = vpop.xlane.xlu0 %705
  %vm707 = vcmp.eq.f32.partialorder %v704, %v706
  %v708 = vsel %vm707, %v703, inf
  %709 = vmin.xlane.f32.xlu0 %v708
  %v710 = vpop.xlane.xlu0 %709
  %v711 = vcvt.f32.s32 %v710
  %v712 = vcvt.f32.s32 %v706
  %v713 = vshll.u32 %v712, 16
  %v714 = vadd.s32 %v713, %v711
  %vm715 = vcmp.eq.s32.totalorder %v714, %v124
  %v716 = vsel %vm715, 1, 0
  %v717 = vcvt.s32.f32 %v716
  %v718 = vsel %vm192, %v717, 0.0
  %719 = vadd.xlane.f32.xlu0 %v718
  %v720 = vpop.xlane.xlu0 %719
  %v721 = vrot.slane %v720, 4
  %v722 = vadd.f32 %v720, %v721
  %v723 = vrot.slane %v722, 2
  %v724 = vadd.f32 %v722, %v723
  %v725 = vrot.slane %v724, 1
  %v726 = vadd.f32 %v724, %v725
  %s727 = vtos %v726
  %s728 = sadd.f32 %s698, 0.0
  %s729 = sadd.f32 %s727, 0.0
  %730 = vmatprep.subr.bf16.mxu0 0
  %731 = vmatpush1.bf16.msra.mxu0 %v612
  %732 = vmatprep.subr.bf16.mxu0 0
  %733 = vmatpush1.bf16.msra.mxu0 %v613
  %734 = vmatprep.subr.bf16.mxu0 0
  %735 = vmatpush1.bf16.msra.mxu0 %v614
  %736 = vmatprep.subr.bf16.mxu0 0
  %737 = vmatpush1.bf16.msra.mxu0 %v615
  %738 = vmatprep.subr.bf16.mxu0 0
  %739 = vmatpush1.bf16.msra.mxu0 %v616
  %740 = vmatprep.subr.bf16.mxu0 0
  %741 = vmatpush1.bf16.msra.mxu0 %v617
  %742 = vmatprep.subr.bf16.mxu0 0
  %743 = vmatpush1.bf16.msra.mxu0 %v618
  %744 = vmatprep.subr.bf16.mxu0 0
  %745 = vmatpush1.bf16.msra.mxu0 %v619
  %746 = vmatprep.subr.bf16.mxu0 0
  %747 = vmatpush1.bf16.msra.mxu0 %v620
  %748 = vmatprep.subr.bf16.mxu0 0
  %749 = vmatpush1.bf16.msra.mxu0 %v621
  %750 = vmatprep.subr.bf16.mxu0 0
  %751 = vmatpush1.bf16.msra.mxu0 %v622
  %752 = vmatprep.subr.bf16.mxu0 0
  %753 = vmatpush1.bf16.msra.mxu0 %v623
  %754 = vmatprep.subr.bf16.mxu0 0
  %755 = vmatpush1.bf16.msra.mxu0 %v624
  %756 = vmatprep.subr.bf16.mxu0 0
  %757 = vmatpush1.bf16.msra.mxu0 %v625
  %758 = vmatprep.subr.bf16.mxu0 0
  %759 = vmatpush1.bf16.msra.mxu0 %v626
  %760 = vmatprep.subr.bf16.mxu0 0
  %761 = vmatpush1.bf16.msra.mxu0 %v627
  %762 = vmatprep.mubr.bf16.mxu0 %v239
  %763 = vmatmul.mubr.bf16.gmra.mrb[0].mxu0 %v238
  %v764 = vpop.f32.mrb[0].mxu0
  %v765 = vadd.f32 %v632, %v764
  %v766 = vpop.f32.mrb[0].mxu0
  %v767 = vpop.f32.mrb[0].mxu0
  %v768 = vpop.f32.mrb[0].mxu0
  %769 = vdwg.mxu0
  %770 = vmax.xlane.f32.xlu0 %v765
  %v771 = vpop.xlane.xlu0 %770
  %v772 = vsub.f32 %v765, %v771
  %v773 = vmul.f32 %v772, 1.442695
  %v774 = vpow.pop %v773
  %775 = vadd.xlane.f32.xlu0 %v774
  %v776 = vpop.xlane.xlu0 %775
  %v777 = vrcp.pop %v776
  %v778 = vmul.f32 %v774, %v777
  %v779 = vsub.f32 %v778, %v117
  %v780 = vmul.f32 %v779, 0.125
  %v781 = vpack.c.bf16 %v780, %v780
  %v783 = vsel %vm375, %v781, 0
  %785 = vmatprep.subr.bf16.mxu0 0
  %786 = vmatpush1.bf16.msra.mxu0 %v783
  %787 = vmatprep.subr.bf16.mxu0 0
  %788 = vmatpush1.bf16.msra.mxu0 0
  %789 = vmatprep.subr.bf16.mxu0 0
  %790 = vmatpush1.bf16.msra.mxu0 0
  %791 = vmatprep.subr.bf16.mxu0 0
  %792 = vmatpush1.bf16.msra.mxu0 0
  %793 = vmatprep.subr.bf16.mxu0 0
  %794 = vmatpush1.bf16.msra.mxu0 0
  %795 = vmatprep.subr.bf16.mxu0 0
  %796 = vmatpush1.bf16.msra.mxu0 0
  %797 = vmatprep.subr.bf16.mxu0 0
  %798 = vmatpush1.bf16.msra.mxu0 0
  %799 = vmatprep.subr.bf16.mxu0 0
  %800 = vmatpush1.bf16.msra.mxu0 0
  %801 = vmatprep.subr.bf16.mxu0 0
  %802 = vmatpush1.bf16.msra.mxu0 0
  %803 = vmatprep.subr.bf16.mxu0 0
  %804 = vmatpush1.bf16.msra.mxu0 0
  %805 = vmatprep.subr.bf16.mxu0 0
  %806 = vmatpush1.bf16.msra.mxu0 0
  %807 = vmatprep.subr.bf16.mxu0 0
  %808 = vmatpush1.bf16.msra.mxu0 0
  %809 = vmatprep.subr.bf16.mxu0 0
  %810 = vmatpush1.bf16.msra.mxu0 0
  %811 = vmatprep.subr.bf16.mxu0 0
  %812 = vmatpush1.bf16.msra.mxu0 0
  %813 = vmatprep.subr.bf16.mxu0 0
  %814 = vmatpush1.bf16.msra.mxu0 0
  %815 = vmatprep.subr.bf16.mxu0 0
  %816 = vmatpush1.bf16.msra.mxu0 0
  %817 = vmatprep.mubr.bf16.mxu0 0
  %818 = vmatmul.mubr.bf16.gmra.mrb[0].mxu0 %v328
  %v819 = vpop.f32.mrb[0].mxu0
  %v820 = vadd.f32 0.0, %v819
  %v821 = vpop.f32.mrb[0].mxu0
  %v822 = vpop.f32.mrb[0].mxu0
  %v823 = vadd.f32 0.0, %v822
  %v824 = vpop.f32.mrb[0].mxu0
  %825 = vmatprep.mubr.bf16.mxu0 0
  %826 = vmatmul.mubr.bf16.gmra.mrb[0].mxu0 %v331
  %v827 = vpop.f32.mrb[0].mxu0
  %v828 = vadd.f32 0.0, %v827
  %v829 = vpop.f32.mrb[0].mxu0
  %v830 = vpop.f32.mrb[0].mxu0
  %v831 = vadd.f32 0.0, %v830
  %v832 = vpop.f32.mrb[0].mxu0
  %833 = vmatprep.mubr.bf16.mxu0 0
  %834 = vmatmul.mubr.bf16.gmra.mrb[0].mxu0 %v334
  %v835 = vpop.f32.mrb[0].mxu0
  %v836 = vadd.f32 0.0, %v835
  %v837 = vpop.f32.mrb[0].mxu0
  %v838 = vpop.f32.mrb[0].mxu0
  %v839 = vadd.f32 0.0, %v838
  %v840 = vpop.f32.mrb[0].mxu0
  %841 = vmatprep.mubr.bf16.mxu0 0
  %842 = vmatmul.mubr.bf16.gmra.mrb[0].mxu0 %v337
  %v843 = vpop.f32.mrb[0].mxu0
  %v844 = vadd.f32 0.0, %v843
  %v845 = vpop.f32.mrb[0].mxu0
  %v846 = vpop.f32.mrb[0].mxu0
  %v847 = vadd.f32 0.0, %v846
  %v848 = vpop.f32.mrb[0].mxu0
  %849 = vmatprep.mubr.bf16.mxu0 0
  %850 = vmatmul.mubr.bf16.gmra.mrb[0].mxu0 %v340
  %v851 = vpop.f32.mrb[0].mxu0
  %v852 = vadd.f32 0.0, %v851
  %v853 = vpop.f32.mrb[0].mxu0
  %v854 = vpop.f32.mrb[0].mxu0
  %v855 = vadd.f32 0.0, %v854
  %v856 = vpop.f32.mrb[0].mxu0
  %857 = vmatprep.mubr.bf16.mxu0 0
  %858 = vmatmul.mubr.bf16.gmra.mrb[0].mxu0 %v343
  %v859 = vpop.f32.mrb[0].mxu0
  %v860 = vadd.f32 0.0, %v859
  %v861 = vpop.f32.mrb[0].mxu0
  %v862 = vpop.f32.mrb[0].mxu0
  %v863 = vadd.f32 0.0, %v862
  %v864 = vpop.f32.mrb[0].mxu0
  %865 = vmatprep.mubr.bf16.mxu0 0
  %866 = vmatmul.mubr.bf16.gmra.mrb[0].mxu0 %v346
  %v867 = vpop.f32.mrb[0].mxu0
  %v868 = vadd.f32 0.0, %v867
  %v869 = vpop.f32.mrb[0].mxu0
  %v870 = vpop.f32.mrb[0].mxu0
  %v871 = vadd.f32 0.0, %v870
  %v872 = vpop.f32.mrb[0].mxu0
  %873 = vmatprep.mubr.bf16.mxu0 0
  %874 = vmatmul.mubr.bf16.gmra.mrb[0].mxu0 %v349
  %v875 = vpop.f32.mrb[0].mxu0
  %v876 = vadd.f32 0.0, %v875
  %v877 = vpop.f32.mrb[0].mxu0
  %v878 = vpop.f32.mrb[0].mxu0
  %v879 = vadd.f32 0.0, %v878
  %v880 = vpop.f32.mrb[0].mxu0
  %881 = vmatprep.mubr.bf16.mxu0 0
  %882 = vmatmul.mubr.bf16.gmra.mrb[0].mxu0 %v352
  %v883 = vpop.f32.mrb[0].mxu0
  %v884 = vadd.f32 0.0, %v883
  %v885 = vpop.f32.mrb[0].mxu0
  %v886 = vpop.f32.mrb[0].mxu0
  %v887 = vadd.f32 0.0, %v886
  %v888 = vpop.f32.mrb[0].mxu0
  %889 = vmatprep.mubr.bf16.mxu0 0
  %890 = vmatmul.mubr.bf16.gmra.mrb[0].mxu0 %v355
  %v891 = vpop.f32.mrb[0].mxu0
  %v892 = vadd.f32 0.0, %v891
  %v893 = vpop.f32.mrb[0].mxu0
  %v894 = vpop.f32.mrb[0].mxu0
  %v895 = vadd.f32 0.0, %v894
  %v896 = vpop.f32.mrb[0].mxu0
  %897 = vmatprep.mubr.bf16.mxu0 0
  %898 = vmatmul.mubr.bf16.gmra.mrb[0].mxu0 %v358
  %v899 = vpop.f32.mrb[0].mxu0
  %v900 = vadd.f32 0.0, %v899
  %v901 = vpop.f32.mrb[0].mxu0
  %v902 = vpop.f32.mrb[0].mxu0
  %v903 = vadd.f32 0.0, %v902
  %v904 = vpop.f32.mrb[0].mxu0
  %905 = vmatprep.mubr.bf16.mxu0 0
  %906 = vmatmul.mubr.bf16.gmra.mrb[0].mxu0 %v361
  %v907 = vpop.f32.mrb[0].mxu0
  %v908 = vadd.f32 0.0, %v907
  %v909 = vpop.f32.mrb[0].mxu0
  %v910 = vpop.f32.mrb[0].mxu0
  %v911 = vadd.f32 0.0, %v910
  %v912 = vpop.f32.mrb[0].mxu0
  %913 = vmatprep.mubr.bf16.mxu0 0
  %914 = vmatmul.mubr.bf16.gmra.mrb[0].mxu0 %v364
  %v915 = vpop.f32.mrb[0].mxu0
  %v916 = vadd.f32 0.0, %v915
  %v917 = vpop.f32.mrb[0].mxu0
  %v918 = vpop.f32.mrb[0].mxu0
  %v919 = vadd.f32 0.0, %v918
  %v920 = vpop.f32.mrb[0].mxu0
  %921 = vmatprep.mubr.bf16.mxu0 0
  %922 = vmatmul.mubr.bf16.gmra.mrb[0].mxu0 %v367
  %v923 = vpop.f32.mrb[0].mxu0
  %v924 = vadd.f32 0.0, %v923
  %v925 = vpop.f32.mrb[0].mxu0
  %v926 = vpop.f32.mrb[0].mxu0
  %v927 = vadd.f32 0.0, %v926
  %v928 = vpop.f32.mrb[0].mxu0
  %929 = vmatprep.mubr.bf16.mxu0 0
  %930 = vmatmul.mubr.bf16.gmra.mrb[0].mxu0 %v370
  %v931 = vpop.f32.mrb[0].mxu0
  %v932 = vadd.f32 0.0, %v931
  %v933 = vpop.f32.mrb[0].mxu0
  %v934 = vpop.f32.mrb[0].mxu0
  %v935 = vadd.f32 0.0, %v934
  %v936 = vpop.f32.mrb[0].mxu0
  %937 = vmatprep.mubr.bf16.mxu0 0
  %938 = vmatmul.mubr.bf16.gmra.mrb[0].mxu0 %v373
  %v939 = vpop.f32.mrb[0].mxu0
  %v940 = vadd.f32 0.0, %v939
  %v941 = vpop.f32.mrb[0].mxu0
  %v942 = vpop.f32.mrb[0].mxu0
  %v943 = vadd.f32 0.0, %v942
  %v944 = vpop.f32.mrb[0].mxu0
  %945 = vdwg.mxu0
  %v946 = vrot.slane %v780, 4
  %v947 = vadd.f32 %v780, %v946
  %v948 = vrot.slane %v947, 2
  %v949 = vadd.f32 %v947, %v948
  %v950 = vrot.slane %v949, 1
  %v951 = vadd.f32 %v949, %v950
  %v952 = vmul.f32 %v820, 0.4
  %v953 = vmul.f32 %v823, 0.4
  %v954 = vmul.f32 %v828, 0.4
  %v955 = vmul.f32 %v831, 0.4
  %v956 = vmul.f32 %v836, 0.4
  %v957 = vmul.f32 %v839, 0.4
  %v958 = vmul.f32 %v844, 0.4
  %v959 = vmul.f32 %v847, 0.4
  %v960 = vmul.f32 %v852, 0.4
  %v961 = vmul.f32 %v855, 0.4
  %v962 = vmul.f32 %v860, 0.4
  %v963 = vmul.f32 %v863, 0.4
  %v964 = vmul.f32 %v868, 0.4
  %v965 = vmul.f32 %v871, 0.4
  %v966 = vmul.f32 %v876, 0.4
  %v967 = vmul.f32 %v879, 0.4
  %v968 = vmul.f32 %v884, 0.4
  %v969 = vmul.f32 %v887, 0.4
  %v970 = vmul.f32 %v892, 0.4
  %v971 = vmul.f32 %v895, 0.4
  %v972 = vmul.f32 %v900, 0.4
  %v973 = vmul.f32 %v903, 0.4
  %v974 = vmul.f32 %v908, 0.4
  %v975 = vmul.f32 %v911, 0.4
  %v976 = vmul.f32 %v916, 0.4
  %v977 = vmul.f32 %v919, 0.4
  %v978 = vmul.f32 %v924, 0.4
  %v979 = vmul.f32 %v927, 0.4
  %v980 = vmul.f32 %v932, 0.4
  %v981 = vmul.f32 %v935, 0.4
  %v982 = vmul.f32 %v940, 0.4
  %v983 = vmul.f32 %v943, 0.4
  %v984 = vsub.f32 %v578, %v952
  %v985 = vsub.f32 %v579, %v953
  %v986 = vsub.f32 %v580, %v954
  %v987 = vsub.f32 %v581, %v955
  %v988 = vsub.f32 %v582, %v956
  %v989 = vsub.f32 %v583, %v957
  %v990 = vsub.f32 %v584, %v958
  %v991 = vsub.f32 %v585, %v959
  %v992 = vsub.f32 %v586, %v960
  %v993 = vsub.f32 %v587, %v961
  %v994 = vsub.f32 %v588, %v962
  %v995 = vsub.f32 %v589, %v963
  %v996 = vsub.f32 %v590, %v964
  %v997 = vsub.f32 %v591, %v965
  %v998 = vsub.f32 %v592, %v966
  %v999 = vsub.f32 %v593, %v967
  %v1000 = vsub.f32 %v594, %v968
  %v1001 = vsub.f32 %v595, %v969
  %v1002 = vsub.f32 %v596, %v970
  %v1003 = vsub.f32 %v597, %v971
  %v1004 = vsub.f32 %v598, %v972
  %v1005 = vsub.f32 %v599, %v973
  %v1006 = vsub.f32 %v600, %v974
  %v1007 = vsub.f32 %v601, %v975
  %v1008 = vsub.f32 %v602, %v976
  %v1009 = vsub.f32 %v603, %v977
  %v1010 = vsub.f32 %v604, %v978
  %v1011 = vsub.f32 %v605, %v979
  %v1012 = vsub.f32 %v606, %v980
  %v1013 = vsub.f32 %v607, %v981
  %v1014 = vsub.f32 %v608, %v982
  %v1015 = vsub.f32 %v609, %v983
  %v1016 = vmul.f32 %v951, 0.4
  %v1017 = vsub.f32 %v611, %v1016
  %v1018 = vpack.c.bf16 %v985, %v984
  %v1019 = vpack.c.bf16 %v987, %v986
  %v1020 = vpack.c.bf16 %v989, %v988
  %v1021 = vpack.c.bf16 %v991, %v990
  %v1022 = vpack.c.bf16 %v993, %v992
  %v1023 = vpack.c.bf16 %v995, %v994
  %v1024 = vpack.c.bf16 %v997, %v996
  %v1025 = vpack.c.bf16 %v999, %v998
  %v1026 = vpack.c.bf16 %v1001, %v1000
  %v1027 = vpack.c.bf16 %v1003, %v1002
  %v1028 = vpack.c.bf16 %v1005, %v1004
  %v1029 = vpack.c.bf16 %v1007, %v1006
  %v1030 = vpack.c.bf16 %v1009, %v1008
  %v1031 = vpack.c.bf16 %v1011, %v1010
  %v1032 = vpack.c.bf16 %v1013, %v1012
  %v1033 = vpack.c.bf16 %v1015, %v1014
  %v1035 = vlaneseq
  %v1036 = vshrl.u32 %v1035, 7
  %v1037 = vsub.s32 0, %v1036
  %v1038 = vrot.slane %v1017, %v1037
  %1040 = vmatprep.subr.bf16.mxu0 0
  %1041 = vmatpush1.bf16.msra.mxu0 %v1018
  %1042 = vmatprep.subr.bf16.mxu0 0
  %1043 = vmatpush1.bf16.msra.mxu0 %v1019
  %1044 = vmatprep.subr.bf16.mxu0 0
  %1045 = vmatpush1.bf16.msra.mxu0 %v1020
  %1046 = vmatprep.subr.bf16.mxu0 0
  %1047 = vmatpush1.bf16.msra.mxu0 %v1021
  %1048 = vmatprep.subr.bf16.mxu0 0
  %1049 = vmatpush1.bf16.msra.mxu0 %v1022
  %1050 = vmatprep.subr.bf16.mxu0 0
  %1051 = vmatpush1.bf16.msra.mxu0 %v1023
  %1052 = vmatprep.subr.bf16.mxu0 0
  %1053 = vmatpush1.bf16.msra.mxu0 %v1024
  %1054 = vmatprep.subr.bf16.mxu0 0
  %1055 = vmatpush1.bf16.msra.mxu0 %v1025
  %1056 = vmatprep.subr.bf16.mxu0 0
  %1057 = vmatpush1.bf16.msra.mxu0 %v1026
  %1058 = vmatprep.subr.bf16.mxu0 0
  %1059 = vmatpush1.bf16.msra.mxu0 %v1027
  %1060 = vmatprep.subr.bf16.mxu0 0
  %1061 = vmatpush1.bf16.msra.mxu0 %v1028
  %1062 = vmatprep.subr.bf16.mxu0 0
  %1063 = vmatpush1.bf16.msra.mxu0 %v1029
  %1064 = vmatprep.subr.bf16.mxu0 0
  %1065 = vmatpush1.bf16.msra.mxu0 %v1030
  %1066 = vmatprep.subr.bf16.mxu0 0
  %1067 = vmatpush1.bf16.msra.mxu0 %v1031
  %1068 = vmatprep.subr.bf16.mxu0 0
  %1069 = vmatpush1.bf16.msra.mxu0 %v1032
  %1070 = vmatprep.subr.bf16.mxu0 0
  %1071 = vmatpush1.bf16.msra.mxu0 %v1033
  %1072 = vmatprep.mubr.bf16.mxu0 %v135
  %1073 = vmatmul.mubr.bf16.gmra.mrb[0].mxu0 %v134
  %v1074 = vpop.f32.mrb[0].mxu0
  %v1075 = vadd.f32 %v1038, %v1074
  %v1076 = vpop.f32.mrb[0].mxu0
  %v1077 = vpop.f32.mrb[0].mxu0
  %v1078 = vpop.f32.mrb[0].mxu0
  %1079 = vdwg.mxu0
  %1080 = vmax.xlane.f32.xlu0 %v1075
  %v1081 = vpop.xlane.xlu0 %1080
  %v1082 = vsub.f32 %v1075, %v1081
  %v1083 = vmul.f32 %v1082, 1.442695
  %v1084 = vpow.pop %v1083
  %1085 = vadd.xlane.f32.xlu0 %v1084
  %v1086 = vpop.xlane.xlu0 %1085
  %v1087 = vlog2.pop %v1086
  %v1088 = vmul.f32 %v1087, 0.6931472
  %v1089 = vadd.f32 %v1081, %v1088
  %v1090 = vmul.f32 %v119, %v1075
  %1091 = vadd.xlane.f32.xlu0 %v1090
  %v1092 = vpop.xlane.xlu0 %1091
  %v1093 = vsub.f32 %v1089, %v1092
  %v1094 = vsel %vm192, %v1093, 0.0
  %1095 = vadd.xlane.f32.xlu0 %v1094
  %v1096 = vpop.xlane.xlu0 %1095
  %v1097 = vrot.slane %v1096, 4
  %v1098 = vadd.f32 %v1096, %v1097
  %v1099 = vrot.slane %v1098, 2
  %v1100 = vadd.f32 %v1098, %v1099
  %v1101 = vrot.slane %v1100, 1
  %v1102 = vadd.f32 %v1100, %v1101
  %s1103 = vtos %v1102
  %s1104 = smul.f32 %s1103, 0.125
  %vm1105 = vcmp.eq.f32.partialorder %v1075, %v1081
  %v1106 = vsel %vm1105, %v115, 128
  %v1107 = vand.u32 %v1106, 65535
  %v1108 = vshra.s32 %v1106, 16
  %v1109 = vcvt.s32.f32 %v1107
  %v1110 = vcvt.s32.f32 %v1108
  %1111 = vmin.xlane.f32.xlu0 %v1110
  %v1112 = vpop.xlane.xlu0 %1111
  %vm1113 = vcmp.eq.f32.partialorder %v1110, %v1112
  %v1114 = vsel %vm1113, %v1109, inf
  %1115 = vmin.xlane.f32.xlu0 %v1114
  %v1116 = vpop.xlane.xlu0 %1115
  %v1117 = vcvt.f32.s32 %v1116
  %v1118 = vcvt.f32.s32 %v1112
  %v1119 = vshll.u32 %v1118, 16
  %v1120 = vadd.s32 %v1119, %v1117
  %vm1121 = vcmp.eq.s32.totalorder %v1120, %v124
  %v1122 = vsel %vm1121, 1, 0
  %v1123 = vcvt.s32.f32 %v1122
  %v1124 = vsel %vm192, %v1123, 0.0
  %1125 = vadd.xlane.f32.xlu0 %v1124
  %v1126 = vpop.xlane.xlu0 %1125
  %v1127 = vrot.slane %v1126, 4
  %v1128 = vadd.f32 %v1126, %v1127
  %v1129 = vrot.slane %v1128, 2
  %v1130 = vadd.f32 %v1128, %v1129
  %v1131 = vrot.slane %v1130, 1
  %v1132 = vadd.f32 %v1130, %v1131
  %s1133 = vtos %v1132
  %s1134 = sadd.f32 %s1104, 0.0
  %s1135 = sadd.f32 %s1133, 0.0
  %1136 = vmatprep.subr.bf16.mxu0 0
  %1137 = vmatpush1.bf16.msra.mxu0 %v1018
  %1138 = vmatprep.subr.bf16.mxu0 0
  %1139 = vmatpush1.bf16.msra.mxu0 %v1019
  %1140 = vmatprep.subr.bf16.mxu0 0
  %1141 = vmatpush1.bf16.msra.mxu0 %v1020
  %1142 = vmatprep.subr.bf16.mxu0 0
  %1143 = vmatpush1.bf16.msra.mxu0 %v1021
  %1144 = vmatprep.subr.bf16.mxu0 0
  %1145 = vmatpush1.bf16.msra.mxu0 %v1022
  %1146 = vmatprep.subr.bf16.mxu0 0
  %1147 = vmatpush1.bf16.msra.mxu0 %v1023
  %1148 = vmatprep.subr.bf16.mxu0 0
  %1149 = vmatpush1.bf16.msra.mxu0 %v1024
  %1150 = vmatprep.subr.bf16.mxu0 0
  %1151 = vmatpush1.bf16.msra.mxu0 %v1025
  %1152 = vmatprep.subr.bf16.mxu0 0
  %1153 = vmatpush1.bf16.msra.mxu0 %v1026
  %1154 = vmatprep.subr.bf16.mxu0 0
  %1155 = vmatpush1.bf16.msra.mxu0 %v1027
  %1156 = vmatprep.subr.bf16.mxu0 0
  %1157 = vmatpush1.bf16.msra.mxu0 %v1028
  %1158 = vmatprep.subr.bf16.mxu0 0
  %1159 = vmatpush1.bf16.msra.mxu0 %v1029
  %1160 = vmatprep.subr.bf16.mxu0 0
  %1161 = vmatpush1.bf16.msra.mxu0 %v1030
  %1162 = vmatprep.subr.bf16.mxu0 0
  %1163 = vmatpush1.bf16.msra.mxu0 %v1031
  %1164 = vmatprep.subr.bf16.mxu0 0
  %1165 = vmatpush1.bf16.msra.mxu0 %v1032
  %1166 = vmatprep.subr.bf16.mxu0 0
  %1167 = vmatpush1.bf16.msra.mxu0 %v1033
  %1168 = vmatprep.mubr.bf16.mxu0 %v239
  %1169 = vmatmul.mubr.bf16.gmra.mrb[0].mxu0 %v238
  %v1170 = vpop.f32.mrb[0].mxu0
  %v1171 = vadd.f32 %v1038, %v1170
  %v1172 = vpop.f32.mrb[0].mxu0
  %v1173 = vpop.f32.mrb[0].mxu0
  %v1174 = vpop.f32.mrb[0].mxu0
  %1175 = vdwg.mxu0
  %1176 = vmax.xlane.f32.xlu0 %v1171
  %v1177 = vpop.xlane.xlu0 %1176
  %v1178 = vsub.f32 %v1171, %v1177
  %v1179 = vmul.f32 %v1178, 1.442695
  %v1180 = vpow.pop %v1179
  %1181 = vadd.xlane.f32.xlu0 %v1180
  %v1182 = vpop.xlane.xlu0 %1181
  %v1183 = vrcp.pop %v1182
  %v1184 = vmul.f32 %v1180, %v1183
  %v1185 = vsub.f32 %v1184, %v117
  %v1186 = vmul.f32 %v1185, 0.125
  %v1187 = vpack.c.bf16 %v1186, %v1186
  %v1189 = vsel %vm375, %v1187, 0
  %1191 = vmatprep.subr.bf16.mxu0 0
  %1192 = vmatpush1.bf16.msra.mxu0 %v1189
  %1193 = vmatprep.subr.bf16.mxu0 0
  %1194 = vmatpush1.bf16.msra.mxu0 0
  %1195 = vmatprep.subr.bf16.mxu0 0
  %1196 = vmatpush1.bf16.msra.mxu0 0
  %1197 = vmatprep.subr.bf16.mxu0 0
  %1198 = vmatpush1.bf16.msra.mxu0 0
  %1199 = vmatprep.subr.bf16.mxu0 0
  %1200 = vmatpush1.bf16.msra.mxu0 0
  %1201 = vmatprep.subr.bf16.mxu0 0
  %1202 = vmatpush1.bf16.msra.mxu0 0
  %1203 = vmatprep.subr.bf16.mxu0 0
  %1204 = vmatpush1.bf16.msra.mxu0 0
  %1205 = vmatprep.subr.bf16.mxu0 0
  %1206 = vmatpush1.bf16.msra.mxu0 0
  %1207 = vmatprep.subr.bf16.mxu0 0
  %1208 = vmatpush1.bf16.msra.mxu0 0
  %1209 = vmatprep.subr.bf16.mxu0 0
  %1210 = vmatpush1.bf16.msra.mxu0 0
  %1211 = vmatprep.subr.bf16.mxu0 0
  %1212 = vmatpush1.bf16.msra.mxu0 0
  %1213 = vmatprep.subr.bf16.mxu0 0
  %1214 = vmatpush1.bf16.msra.mxu0 0
  %1215 = vmatprep.subr.bf16.mxu0 0
  %1216 = vmatpush1.bf16.msra.mxu0 0
  %1217 = vmatprep.subr.bf16.mxu0 0
  %1218 = vmatpush1.bf16.msra.mxu0 0
  %1219 = vmatprep.subr.bf16.mxu0 0
  %1220 = vmatpush1.bf16.msra.mxu0 0
  %1221 = vmatprep.subr.bf16.mxu0 0
  %1222 = vmatpush1.bf16.msra.mxu0 0
  %1223 = vmatprep.mubr.bf16.mxu0 0
  %1224 = vmatmul.mubr.bf16.gmra.mrb[0].mxu0 %v328
  %v1225 = vpop.f32.mrb[0].mxu0
  %v1226 = vadd.f32 0.0, %v1225
  %v1227 = vpop.f32.mrb[0].mxu0
  %v1228 = vpop.f32.mrb[0].mxu0
  %v1229 = vadd.f32 0.0, %v1228
  %v1230 = vpop.f32.mrb[0].mxu0
  %1231 = vmatprep.mubr.bf16.mxu0 0
  %1232 = vmatmul.mubr.bf16.gmra.mrb[0].mxu0 %v331
  %v1233 = vpop.f32.mrb[0].mxu0
  %v1234 = vadd.f32 0.0, %v1233
  %v1235 = vpop.f32.mrb[0].mxu0
  %v1236 = vpop.f32.mrb[0].mxu0
  %v1237 = vadd.f32 0.0, %v1236
  %v1238 = vpop.f32.mrb[0].mxu0
  %1239 = vmatprep.mubr.bf16.mxu0 0
  %1240 = vmatmul.mubr.bf16.gmra.mrb[0].mxu0 %v334
  %v1241 = vpop.f32.mrb[0].mxu0
  %v1242 = vadd.f32 0.0, %v1241
  %v1243 = vpop.f32.mrb[0].mxu0
  %v1244 = vpop.f32.mrb[0].mxu0
  %v1245 = vadd.f32 0.0, %v1244
  %v1246 = vpop.f32.mrb[0].mxu0
  %1247 = vmatprep.mubr.bf16.mxu0 0
  %1248 = vmatmul.mubr.bf16.gmra.mrb[0].mxu0 %v337
  %v1249 = vpop.f32.mrb[0].mxu0
  %v1250 = vadd.f32 0.0, %v1249
  %v1251 = vpop.f32.mrb[0].mxu0
  %v1252 = vpop.f32.mrb[0].mxu0
  %v1253 = vadd.f32 0.0, %v1252
  %v1254 = vpop.f32.mrb[0].mxu0
  %1255 = vmatprep.mubr.bf16.mxu0 0
  %1256 = vmatmul.mubr.bf16.gmra.mrb[0].mxu0 %v340
  %v1257 = vpop.f32.mrb[0].mxu0
  %v1258 = vadd.f32 0.0, %v1257
  %v1259 = vpop.f32.mrb[0].mxu0
  %v1260 = vpop.f32.mrb[0].mxu0
  %v1261 = vadd.f32 0.0, %v1260
  %v1262 = vpop.f32.mrb[0].mxu0
  %1263 = vmatprep.mubr.bf16.mxu0 0
  %1264 = vmatmul.mubr.bf16.gmra.mrb[0].mxu0 %v343
  %v1265 = vpop.f32.mrb[0].mxu0
  %v1266 = vadd.f32 0.0, %v1265
  %v1267 = vpop.f32.mrb[0].mxu0
  %v1268 = vpop.f32.mrb[0].mxu0
  %v1269 = vadd.f32 0.0, %v1268
  %v1270 = vpop.f32.mrb[0].mxu0
  %1271 = vmatprep.mubr.bf16.mxu0 0
  %1272 = vmatmul.mubr.bf16.gmra.mrb[0].mxu0 %v346
  %v1273 = vpop.f32.mrb[0].mxu0
  %v1274 = vadd.f32 0.0, %v1273
  %v1275 = vpop.f32.mrb[0].mxu0
  %v1276 = vpop.f32.mrb[0].mxu0
  %v1277 = vadd.f32 0.0, %v1276
  %v1278 = vpop.f32.mrb[0].mxu0
  %1279 = vmatprep.mubr.bf16.mxu0 0
  %1280 = vmatmul.mubr.bf16.gmra.mrb[0].mxu0 %v349
  %v1281 = vpop.f32.mrb[0].mxu0
  %v1282 = vadd.f32 0.0, %v1281
  %v1283 = vpop.f32.mrb[0].mxu0
  %v1284 = vpop.f32.mrb[0].mxu0
  %v1285 = vadd.f32 0.0, %v1284
  %v1286 = vpop.f32.mrb[0].mxu0
  %1287 = vmatprep.mubr.bf16.mxu0 0
  %1288 = vmatmul.mubr.bf16.gmra.mrb[0].mxu0 %v352
  %v1289 = vpop.f32.mrb[0].mxu0
  %v1290 = vadd.f32 0.0, %v1289
  %v1291 = vpop.f32.mrb[0].mxu0
  %v1292 = vpop.f32.mrb[0].mxu0
  %v1293 = vadd.f32 0.0, %v1292
  %v1294 = vpop.f32.mrb[0].mxu0
  %1295 = vmatprep.mubr.bf16.mxu0 0
  %1296 = vmatmul.mubr.bf16.gmra.mrb[0].mxu0 %v355
  %v1297 = vpop.f32.mrb[0].mxu0
  %v1298 = vadd.f32 0.0, %v1297
  %v1299 = vpop.f32.mrb[0].mxu0
  %v1300 = vpop.f32.mrb[0].mxu0
  %v1301 = vadd.f32 0.0, %v1300
  %v1302 = vpop.f32.mrb[0].mxu0
  %1303 = vmatprep.mubr.bf16.mxu0 0
  %1304 = vmatmul.mubr.bf16.gmra.mrb[0].mxu0 %v358
  %v1305 = vpop.f32.mrb[0].mxu0
  %v1306 = vadd.f32 0.0, %v1305
  %v1307 = vpop.f32.mrb[0].mxu0
  %v1308 = vpop.f32.mrb[0].mxu0
  %v1309 = vadd.f32 0.0, %v1308
  %v1310 = vpop.f32.mrb[0].mxu0
  %1311 = vmatprep.mubr.bf16.mxu0 0
  %1312 = vmatmul.mubr.bf16.gmra.mrb[0].mxu0 %v361
  %v1313 = vpop.f32.mrb[0].mxu0
  %v1314 = vadd.f32 0.0, %v1313
  %v1315 = vpop.f32.mrb[0].mxu0
  %v1316 = vpop.f32.mrb[0].mxu0
  %v1317 = vadd.f32 0.0, %v1316
  %v1318 = vpop.f32.mrb[0].mxu0
  %1319 = vmatprep.mubr.bf16.mxu0 0
  %1320 = vmatmul.mubr.bf16.gmra.mrb[0].mxu0 %v364
  %v1321 = vpop.f32.mrb[0].mxu0
  %v1322 = vadd.f32 0.0, %v1321
  %v1323 = vpop.f32.mrb[0].mxu0
  %v1324 = vpop.f32.mrb[0].mxu0
  %v1325 = vadd.f32 0.0, %v1324
  %v1326 = vpop.f32.mrb[0].mxu0
  %1327 = vmatprep.mubr.bf16.mxu0 0
  %1328 = vmatmul.mubr.bf16.gmra.mrb[0].mxu0 %v367
  %v1329 = vpop.f32.mrb[0].mxu0
  %v1330 = vadd.f32 0.0, %v1329
  %v1331 = vpop.f32.mrb[0].mxu0
  %v1332 = vpop.f32.mrb[0].mxu0
  %v1333 = vadd.f32 0.0, %v1332
  %v1334 = vpop.f32.mrb[0].mxu0
  %1335 = vmatprep.mubr.bf16.mxu0 0
  %1336 = vmatmul.mubr.bf16.gmra.mrb[0].mxu0 %v370
  %v1337 = vpop.f32.mrb[0].mxu0
  %v1338 = vadd.f32 0.0, %v1337
  %v1339 = vpop.f32.mrb[0].mxu0
  %v1340 = vpop.f32.mrb[0].mxu0
  %v1341 = vadd.f32 0.0, %v1340
  %v1342 = vpop.f32.mrb[0].mxu0
  %1343 = vmatprep.mubr.bf16.mxu0 0
  %1344 = vmatmul.mubr.bf16.gmra.mrb[0].mxu0 %v373
  %v1345 = vpop.f32.mrb[0].mxu0
  %v1346 = vadd.f32 0.0, %v1345
  %v1347 = vpop.f32.mrb[0].mxu0
  %v1348 = vpop.f32.mrb[0].mxu0
  %v1349 = vadd.f32 0.0, %v1348
  %v1350 = vpop.f32.mrb[0].mxu0
  %1351 = vdwg.mxu0
  %v1352 = vrot.slane %v1186, 4
  %v1353 = vadd.f32 %v1186, %v1352
  %v1354 = vrot.slane %v1353, 2
  %v1355 = vadd.f32 %v1353, %v1354
  %v1356 = vrot.slane %v1355, 1
  %v1357 = vadd.f32 %v1355, %v1356
  %v1358 = vmul.f32 %v1226, 0.4
  %v1359 = vmul.f32 %v1229, 0.4
  %v1360 = vmul.f32 %v1234, 0.4
  %v1361 = vmul.f32 %v1237, 0.4
  %v1362 = vmul.f32 %v1242, 0.4
  %v1363 = vmul.f32 %v1245, 0.4
  %v1364 = vmul.f32 %v1250, 0.4
  %v1365 = vmul.f32 %v1253, 0.4
  %v1366 = vmul.f32 %v1258, 0.4
  %v1367 = vmul.f32 %v1261, 0.4
  %v1368 = vmul.f32 %v1266, 0.4
  %v1369 = vmul.f32 %v1269, 0.4
  %v1370 = vmul.f32 %v1274, 0.4
  %v1371 = vmul.f32 %v1277, 0.4
  %v1372 = vmul.f32 %v1282, 0.4
  %v1373 = vmul.f32 %v1285, 0.4
  %v1374 = vmul.f32 %v1290, 0.4
  %v1375 = vmul.f32 %v1293, 0.4
  %v1376 = vmul.f32 %v1298, 0.4
  %v1377 = vmul.f32 %v1301, 0.4
  %v1378 = vmul.f32 %v1306, 0.4
  %v1379 = vmul.f32 %v1309, 0.4
  %v1380 = vmul.f32 %v1314, 0.4
  %v1381 = vmul.f32 %v1317, 0.4
  %v1382 = vmul.f32 %v1322, 0.4
  %v1383 = vmul.f32 %v1325, 0.4
  %v1384 = vmul.f32 %v1330, 0.4
  %v1385 = vmul.f32 %v1333, 0.4
  %v1386 = vmul.f32 %v1338, 0.4
  %v1387 = vmul.f32 %v1341, 0.4
  %v1388 = vmul.f32 %v1346, 0.4
  %v1389 = vmul.f32 %v1349, 0.4
  %v1390 = vsub.f32 %v984, %v1358
  %v1391 = vsub.f32 %v985, %v1359
  %v1392 = vsub.f32 %v986, %v1360
  %v1393 = vsub.f32 %v987, %v1361
  %v1394 = vsub.f32 %v988, %v1362
  %v1395 = vsub.f32 %v989, %v1363
  %v1396 = vsub.f32 %v990, %v1364
  %v1397 = vsub.f32 %v991, %v1365
  %v1398 = vsub.f32 %v992, %v1366
  %v1399 = vsub.f32 %v993, %v1367
  %v1400 = vsub.f32 %v994, %v1368
  %v1401 = vsub.f32 %v995, %v1369
  %v1402 = vsub.f32 %v996, %v1370
  %v1403 = vsub.f32 %v997, %v1371
  %v1404 = vsub.f32 %v998, %v1372
  %v1405 = vsub.f32 %v999, %v1373
  %v1406 = vsub.f32 %v1000, %v1374
  %v1407 = vsub.f32 %v1001, %v1375
  %v1408 = vsub.f32 %v1002, %v1376
  %v1409 = vsub.f32 %v1003, %v1377
  %v1410 = vsub.f32 %v1004, %v1378
  %v1411 = vsub.f32 %v1005, %v1379
  %v1412 = vsub.f32 %v1006, %v1380
  %v1413 = vsub.f32 %v1007, %v1381
  %v1414 = vsub.f32 %v1008, %v1382
  %v1415 = vsub.f32 %v1009, %v1383
  %v1416 = vsub.f32 %v1010, %v1384
  %v1417 = vsub.f32 %v1011, %v1385
  %v1418 = vsub.f32 %v1012, %v1386
  %v1419 = vsub.f32 %v1013, %v1387
  %v1420 = vsub.f32 %v1014, %v1388
  %v1421 = vsub.f32 %v1015, %v1389
  %v1422 = vmul.f32 %v1357, 0.4
  %v1423 = vsub.f32 %v1017, %v1422
  %v1424 = vpack.c.bf16 %v1391, %v1390
  %v1425 = vpack.c.bf16 %v1393, %v1392
  %v1426 = vpack.c.bf16 %v1395, %v1394
  %v1427 = vpack.c.bf16 %v1397, %v1396
  %v1428 = vpack.c.bf16 %v1399, %v1398
  %v1429 = vpack.c.bf16 %v1401, %v1400
  %v1430 = vpack.c.bf16 %v1403, %v1402
  %v1431 = vpack.c.bf16 %v1405, %v1404
  %v1432 = vpack.c.bf16 %v1407, %v1406
  %v1433 = vpack.c.bf16 %v1409, %v1408
  %v1434 = vpack.c.bf16 %v1411, %v1410
  %v1435 = vpack.c.bf16 %v1413, %v1412
  %v1436 = vpack.c.bf16 %v1415, %v1414
  %v1437 = vpack.c.bf16 %v1417, %v1416
  %v1438 = vpack.c.bf16 %v1419, %v1418
  %v1439 = vpack.c.bf16 %v1421, %v1420
  %v1441 = vlaneseq
  %v1442 = vshrl.u32 %v1441, 7
  %v1443 = vsub.s32 0, %v1442
  %v1444 = vrot.slane %v1423, %v1443
  %1446 = vmatprep.subr.bf16.mxu0 0
  %1447 = vmatpush1.bf16.msra.mxu0 %v1424
  %1448 = vmatprep.subr.bf16.mxu0 0
  %1449 = vmatpush1.bf16.msra.mxu0 %v1425
  %1450 = vmatprep.subr.bf16.mxu0 0
  %1451 = vmatpush1.bf16.msra.mxu0 %v1426
  %1452 = vmatprep.subr.bf16.mxu0 0
  %1453 = vmatpush1.bf16.msra.mxu0 %v1427
  %1454 = vmatprep.subr.bf16.mxu0 0
  %1455 = vmatpush1.bf16.msra.mxu0 %v1428
  %1456 = vmatprep.subr.bf16.mxu0 0
  %1457 = vmatpush1.bf16.msra.mxu0 %v1429
  %1458 = vmatprep.subr.bf16.mxu0 0
  %1459 = vmatpush1.bf16.msra.mxu0 %v1430
  %1460 = vmatprep.subr.bf16.mxu0 0
  %1461 = vmatpush1.bf16.msra.mxu0 %v1431
  %1462 = vmatprep.subr.bf16.mxu0 0
  %1463 = vmatpush1.bf16.msra.mxu0 %v1432
  %1464 = vmatprep.subr.bf16.mxu0 0
  %1465 = vmatpush1.bf16.msra.mxu0 %v1433
  %1466 = vmatprep.subr.bf16.mxu0 0
  %1467 = vmatpush1.bf16.msra.mxu0 %v1434
  %1468 = vmatprep.subr.bf16.mxu0 0
  %1469 = vmatpush1.bf16.msra.mxu0 %v1435
  %1470 = vmatprep.subr.bf16.mxu0 0
  %1471 = vmatpush1.bf16.msra.mxu0 %v1436
  %1472 = vmatprep.subr.bf16.mxu0 0
  %1473 = vmatpush1.bf16.msra.mxu0 %v1437
  %1474 = vmatprep.subr.bf16.mxu0 0
  %1475 = vmatpush1.bf16.msra.mxu0 %v1438
  %1476 = vmatprep.subr.bf16.mxu0 0
  %1477 = vmatpush1.bf16.msra.mxu0 %v1439
  %1478 = vmatprep.mubr.bf16.mxu0 %v135
  %1479 = vmatmul.mubr.bf16.gmra.mrb[0].mxu0 %v134
  %v1480 = vpop.f32.mrb[0].mxu0
  %v1481 = vadd.f32 %v1444, %v1480
  %v1482 = vpop.f32.mrb[0].mxu0
  %v1483 = vpop.f32.mrb[0].mxu0
  %v1484 = vpop.f32.mrb[0].mxu0
  %1485 = vdwg.mxu0
  %1486 = vmax.xlane.f32.xlu0 %v1481
  %v1487 = vpop.xlane.xlu0 %1486
  %v1488 = vsub.f32 %v1481, %v1487
  %v1489 = vmul.f32 %v1488, 1.442695
  %v1490 = vpow.pop %v1489
  %1491 = vadd.xlane.f32.xlu0 %v1490
  %v1492 = vpop.xlane.xlu0 %1491
  %v1493 = vlog2.pop %v1492
  %v1494 = vmul.f32 %v1493, 0.6931472
  %v1495 = vadd.f32 %v1487, %v1494
  %v1496 = vmul.f32 %v119, %v1481
  %1497 = vadd.xlane.f32.xlu0 %v1496
  %v1498 = vpop.xlane.xlu0 %1497
  %v1499 = vsub.f32 %v1495, %v1498
  %v1500 = vsel %vm192, %v1499, 0.0
  %1501 = vadd.xlane.f32.xlu0 %v1500
  %v1502 = vpop.xlane.xlu0 %1501
  %v1503 = vrot.slane %v1502, 4
  %v1504 = vadd.f32 %v1502, %v1503
  %v1505 = vrot.slane %v1504, 2
  %v1506 = vadd.f32 %v1504, %v1505
  %v1507 = vrot.slane %v1506, 1
  %v1508 = vadd.f32 %v1506, %v1507
  %s1509 = vtos %v1508
  %s1510 = smul.f32 %s1509, 0.125
  %vm1511 = vcmp.eq.f32.partialorder %v1481, %v1487
  %v1512 = vsel %vm1511, %v115, 128
  %v1513 = vand.u32 %v1512, 65535
  %v1514 = vshra.s32 %v1512, 16
  %v1515 = vcvt.s32.f32 %v1513
  %v1516 = vcvt.s32.f32 %v1514
  %1517 = vmin.xlane.f32.xlu0 %v1516
  %v1518 = vpop.xlane.xlu0 %1517
  %vm1519 = vcmp.eq.f32.partialorder %v1516, %v1518
  %v1520 = vsel %vm1519, %v1515, inf
  %1521 = vmin.xlane.f32.xlu0 %v1520
  %v1522 = vpop.xlane.xlu0 %1521
  %v1523 = vcvt.f32.s32 %v1522
  %v1524 = vcvt.f32.s32 %v1518
  %v1525 = vshll.u32 %v1524, 16
  %v1526 = vadd.s32 %v1525, %v1523
  %vm1527 = vcmp.eq.s32.totalorder %v1526, %v124
  %v1528 = vsel %vm1527, 1, 0
  %v1529 = vcvt.s32.f32 %v1528
  %v1530 = vsel %vm192, %v1529, 0.0
  %1531 = vadd.xlane.f32.xlu0 %v1530
  %v1532 = vpop.xlane.xlu0 %1531
  %v1533 = vrot.slane %v1532, 4
  %v1534 = vadd.f32 %v1532, %v1533
  %v1535 = vrot.slane %v1534, 2
  %v1536 = vadd.f32 %v1534, %v1535
  %v1537 = vrot.slane %v1536, 1
  %v1538 = vadd.f32 %v1536, %v1537
  %s1539 = vtos %v1538
  %s1540 = sadd.f32 %s1510, 0.0
  %s1541 = sadd.f32 %s1539, 0.0
  %v1542 = vrcp.pop %v1492
  %v1543 = vmul.f32 %v1490, %v1542
  %v1544 = vsub.f32 %v1543, %v119
  %v1545 = vmul.f32 %v1544, 0.125
  %v1546 = vpack.c.bf16 %v1545, %v1545
  %v1547 = vrot.slane %v1545, 4
  %v1548 = vadd.f32 %v1545, %v1547
  %v1549 = vrot.slane %v1548, 2
  %v1550 = vadd.f32 %v1548, %v1549
  %v1551 = vrot.slane %v1550, 1
  %v1552 = vadd.f32 %v1550, %v1551
  %v1553 = vadd.f32 %v1552, 0.0
  %s1554 = scalar_lea.vmem %s0, 8
  %v1555 = vld [vmem:[%s1554] sm:$0xff]
  %s1556 = scalar_lea.vmem %s1, 8
  %v1557 = vld [vmem:[%s1556] sm:$0xff]
  %s1558 = scalar_lea.vmem %s2, 8
  %v1559 = vld [vmem:[%s1558] sm:$0xff]
  %s1560 = scalar_lea.vmem %s3, 8
  %v1561 = vld [vmem:[%s1560] sm:$0xff]
  %v1562 = vmul.f32 %v1561, %v120
  %1563 = vadd.xlane.f32.xlu0 %v1562
  %v1564 = vpop.xlane.xlu0 %1563
  %v1565 = vcvt.f32.s32.to.zero.pseudo %v1564
  %v1567 = vunpack.c.l.b16 %v1559
  %v1568 = vunpack.c.h.b16 %v1559
  %v1569 = vpack.c.b16 %v1567, %v1567
  %v1570 = vpack.c.b16 %v1568, %v1568
  %1573 = vmatprep.subr.bf16.mxu0 0
  %1574 = vmatpush1.bf16.msra.mxu0 %v98
  %1575 = vmatprep.subr.bf16.mxu0 0
  %1576 = vmatpush1.bf16.msra.mxu0 %v99
  %1577 = vmatprep.subr.bf16.mxu0 0
  %1578 = vmatpush1.bf16.msra.mxu0 %v100
  %1579 = vmatprep.subr.bf16.mxu0 0
  %1580 = vmatpush1.bf16.msra.mxu0 %v101
  %1581 = vmatprep.subr.bf16.mxu0 0
  %1582 = vmatpush1.bf16.msra.mxu0 %v102
  %1583 = vmatprep.subr.bf16.mxu0 0
  %1584 = vmatpush1.bf16.msra.mxu0 %v103
  %1585 = vmatprep.subr.bf16.mxu0 0
  %1586 = vmatpush1.bf16.msra.mxu0 %v104
  %1587 = vmatprep.subr.bf16.mxu0 0
  %1588 = vmatpush1.bf16.msra.mxu0 %v105
  %1589 = vmatprep.subr.bf16.mxu0 0
  %1590 = vmatpush1.bf16.msra.mxu0 %v106
  %1591 = vmatprep.subr.bf16.mxu0 0
  %1592 = vmatpush1.bf16.msra.mxu0 %v107
  %1593 = vmatprep.subr.bf16.mxu0 0
  %1594 = vmatpush1.bf16.msra.mxu0 %v108
  %1595 = vmatprep.subr.bf16.mxu0 0
  %1596 = vmatpush1.bf16.msra.mxu0 %v109
  %1597 = vmatprep.subr.bf16.mxu0 0
  %1598 = vmatpush1.bf16.msra.mxu0 %v110
  %1599 = vmatprep.subr.bf16.mxu0 0
  %1600 = vmatpush1.bf16.msra.mxu0 %v111
  %1601 = vmatprep.subr.bf16.mxu0 0
  %1602 = vmatpush1.bf16.msra.mxu0 %v112
  %1603 = vmatprep.subr.bf16.mxu0 0
  %1604 = vmatpush1.bf16.msra.mxu0 %v113
  %1605 = vmatprep.mubr.bf16.mxu0 %v1570
  %1606 = vmatmul.mubr.bf16.gmra.mrb[0].mxu0 %v1569
  %v1607 = vpop.f32.mrb[0].mxu0
  %v1608 = vadd.f32 %v129, %v1607
  %v1609 = vpop.f32.mrb[0].mxu0
  %v1610 = vpop.f32.mrb[0].mxu0
  %v1611 = vpop.f32.mrb[0].mxu0
  %1612 = vdwg.mxu0
  %1613 = vmax.xlane.f32.xlu0 %v1608
  %v1614 = vpop.xlane.xlu0 %1613
  %v1615 = vsub.f32 %v1608, %v1614
  %v1616 = vmul.f32 %v1615, 1.442695
  %v1617 = vpow.pop %v1616
  %1618 = vadd.xlane.f32.xlu0 %v1617
  %v1619 = vpop.xlane.xlu0 %1618
  %v1620 = vlog2.pop %v1619
  %v1621 = vmul.f32 %v1620, 0.6931472
  %v1622 = vadd.f32 %v1614, %v1621
  %v1623 = vmul.f32 %v1561, %v1608
  %1624 = vadd.xlane.f32.xlu0 %v1623
  %v1625 = vpop.xlane.xlu0 %1624
  %v1626 = vsub.f32 %v1622, %v1625
  %v1627 = vsel %vm192, %v1626, 0.0
  %1628 = vadd.xlane.f32.xlu0 %v1627
  %v1629 = vpop.xlane.xlu0 %1628
  %v1630 = vrot.slane %v1629, 4
  %v1631 = vadd.f32 %v1629, %v1630
  %v1632 = vrot.slane %v1631, 2
  %v1633 = vadd.f32 %v1631, %v1632
  %v1634 = vrot.slane %v1633, 1
  %v1635 = vadd.f32 %v1633, %v1634
  %s1636 = vtos %v1635
  %s1637 = smul.f32 %s1636, 0.125
  %vm1638 = vcmp.eq.f32.partialorder %v1608, %v1614
  %v1639 = vsel %vm1638, %v115, 128
  %v1640 = vand.u32 %v1639, 65535
  %v1641 = vshra.s32 %v1639, 16
  %v1642 = vcvt.s32.f32 %v1640
  %v1643 = vcvt.s32.f32 %v1641
  %1644 = vmin.xlane.f32.xlu0 %v1643
  %v1645 = vpop.xlane.xlu0 %1644
  %vm1646 = vcmp.eq.f32.partialorder %v1643, %v1645
  %v1647 = vsel %vm1646, %v1642, inf
  %1648 = vmin.xlane.f32.xlu0 %v1647
  %v1649 = vpop.xlane.xlu0 %1648
  %v1650 = vcvt.f32.s32 %v1649
  %v1651 = vcvt.f32.s32 %v1645
  %v1652 = vshll.u32 %v1651, 16
  %v1653 = vadd.s32 %v1652, %v1650
  %vm1654 = vcmp.eq.s32.totalorder %v1653, %v1565
  %v1655 = vsel %vm1654, 1, 0
  %v1656 = vcvt.s32.f32 %v1655
  %v1657 = vsel %vm192, %v1656, 0.0
  %1658 = vadd.xlane.f32.xlu0 %v1657
  %v1659 = vpop.xlane.xlu0 %1658
  %v1660 = vrot.slane %v1659, 4
  %v1661 = vadd.f32 %v1659, %v1660
  %v1662 = vrot.slane %v1661, 2
  %v1663 = vadd.f32 %v1661, %v1662
  %v1664 = vrot.slane %v1663, 1
  %v1665 = vadd.f32 %v1663, %v1664
  %s1666 = vtos %v1665
  %s1667 = sadd.f32 %s233, %s1637
  %s1668 = sadd.f32 %s234, %s1666
  %v1670 = vunpack.c.l.b16 %v1555
  %v1671 = vunpack.c.h.b16 %v1555
  %v1672 = vpack.c.b16 %v1670, %v1670
  %v1673 = vpack.c.b16 %v1671, %v1671
  %1676 = vmatprep.subr.bf16.mxu0 0
  %1677 = vmatpush1.bf16.msra.mxu0 %v98
  %1678 = vmatprep.subr.bf16.mxu0 0
  %1679 = vmatpush1.bf16.msra.mxu0 %v99
  %1680 = vmatprep.subr.bf16.mxu0 0
  %1681 = vmatpush1.bf16.msra.mxu0 %v100
  %1682 = vmatprep.subr.bf16.mxu0 0
  %1683 = vmatpush1.bf16.msra.mxu0 %v101
  %1684 = vmatprep.subr.bf16.mxu0 0
  %1685 = vmatpush1.bf16.msra.mxu0 %v102
  %1686 = vmatprep.subr.bf16.mxu0 0
  %1687 = vmatpush1.bf16.msra.mxu0 %v103
  %1688 = vmatprep.subr.bf16.mxu0 0
  %1689 = vmatpush1.bf16.msra.mxu0 %v104
  %1690 = vmatprep.subr.bf16.mxu0 0
  %1691 = vmatpush1.bf16.msra.mxu0 %v105
  %1692 = vmatprep.subr.bf16.mxu0 0
  %1693 = vmatpush1.bf16.msra.mxu0 %v106
  %1694 = vmatprep.subr.bf16.mxu0 0
  %1695 = vmatpush1.bf16.msra.mxu0 %v107
  %1696 = vmatprep.subr.bf16.mxu0 0
  %1697 = vmatpush1.bf16.msra.mxu0 %v108
  %1698 = vmatprep.subr.bf16.mxu0 0
  %1699 = vmatpush1.bf16.msra.mxu0 %v109
  %1700 = vmatprep.subr.bf16.mxu0 0
  %1701 = vmatpush1.bf16.msra.mxu0 %v110
  %1702 = vmatprep.subr.bf16.mxu0 0
  %1703 = vmatpush1.bf16.msra.mxu0 %v111
  %1704 = vmatprep.subr.bf16.mxu0 0
  %1705 = vmatpush1.bf16.msra.mxu0 %v112
  %1706 = vmatprep.subr.bf16.mxu0 0
  %1707 = vmatpush1.bf16.msra.mxu0 %v113
  %1708 = vmatprep.mubr.bf16.mxu0 %v1673
  %1709 = vmatmul.mubr.bf16.gmra.mrb[0].mxu0 %v1672
  %v1710 = vpop.f32.mrb[0].mxu0
  %v1711 = vadd.f32 %v129, %v1710
  %v1712 = vpop.f32.mrb[0].mxu0
  %v1713 = vpop.f32.mrb[0].mxu0
  %v1714 = vpop.f32.mrb[0].mxu0
  %1715 = vdwg.mxu0
  %1716 = vmax.xlane.f32.xlu0 %v1711
  %v1717 = vpop.xlane.xlu0 %1716
  %v1718 = vsub.f32 %v1711, %v1717
  %v1719 = vmul.f32 %v1718, 1.442695
  %v1720 = vpow.pop %v1719
  %1721 = vadd.xlane.f32.xlu0 %v1720
  %v1722 = vpop.xlane.xlu0 %1721
  %v1723 = vrcp.pop %v1722
  %v1724 = vmul.f32 %v1720, %v1723
  %v1725 = vsub.f32 %v1724, %v1557
  %v1726 = vmul.f32 %v1725, 0.125
  %v1727 = vpack.c.bf16 %v1726, %v1726
  %1728 = vxpose.xlu0.c.b16.start [1/8] %v1672, 128
  %1729 = vxpose.xlu0.c.b16.cont [2/8] 0, 128
  %1730 = vxpose.xlu0.c.b16.cont [3/8] 0, 128
  %1731 = vxpose.xlu0.c.b16.cont [4/8] 0, 128
  %1732 = vxpose.xlu0.c.b16.cont [5/8] 0, 128
  %1733 = vxpose.xlu0.c.b16.cont [6/8] 0, 128
  %1734 = vxpose.xlu0.c.b16.cont [7/8] 0, 128
  %1735 = vxpose.xlu0.c.b16.end [8/8] 0, 128
  %v1736 = vpop.trf.xlu0
  %v1737 = vpop.trf.xlu0
  %v1738 = vpop.trf.xlu0
  %v1739 = vpop.trf.xlu0
  %v1740 = vpop.trf.xlu0
  %v1741 = vpop.trf.xlu0
  %v1742 = vpop.trf.xlu0
  %v1743 = vpop.trf.xlu0
  %1744 = vxpose.xlu0.c.b16.start [1/8] %v1673, 128
  %1745 = vxpose.xlu0.c.b16.cont [2/8] 0, 128
  %1746 = vxpose.xlu0.c.b16.cont [3/8] 0, 128
  %1747 = vxpose.xlu0.c.b16.cont [4/8] 0, 128
  %1748 = vxpose.xlu0.c.b16.cont [5/8] 0, 128
  %1749 = vxpose.xlu0.c.b16.cont [6/8] 0, 128
  %1750 = vxpose.xlu0.c.b16.cont [7/8] 0, 128
  %1751 = vxpose.xlu0.c.b16.end [8/8] 0, 128
  %v1752 = vpop.trf.xlu0
  %v1753 = vpop.trf.xlu0
  %v1754 = vpop.trf.xlu0
  %v1755 = vpop.trf.xlu0
  %v1756 = vpop.trf.xlu0
  %v1757 = vpop.trf.xlu0
  %v1758 = vpop.trf.xlu0
  %v1759 = vpop.trf.xlu0
  %v1761 = vsel %vm326, %v1736, 0
  %v1764 = vsel %vm326, %v1737, 0
  %v1767 = vsel %vm326, %v1738, 0
  %v1770 = vsel %vm326, %v1739, 0
  %v1773 = vsel %vm326, %v1740, 0
  %v1776 = vsel %vm326, %v1741, 0
  %v1779 = vsel %vm326, %v1742, 0
  %v1782 = vsel %vm326, %v1743, 0
  %v1785 = vsel %vm326, %v1752, 0
  %v1788 = vsel %vm326, %v1753, 0
  %v1791 = vsel %vm326, %v1754, 0
  %v1794 = vsel %vm326, %v1755, 0
  %v1797 = vsel %vm326, %v1756, 0
  %v1800 = vsel %vm326, %v1757, 0
  %v1803 = vsel %vm326, %v1758, 0
  %v1806 = vsel %vm326, %v1759, 0
  %v1809 = vsel %vm375, %v1727, 0
  %1811 = vmatprep.subr.bf16.mxu0 0
  %1812 = vmatpush1.bf16.msra.mxu0 %v1809
  %1813 = vmatprep.subr.bf16.mxu0 0
  %1814 = vmatpush1.bf16.msra.mxu0 0
  %1815 = vmatprep.subr.bf16.mxu0 0
  %1816 = vmatpush1.bf16.msra.mxu0 0
  %1817 = vmatprep.subr.bf16.mxu0 0
  %1818 = vmatpush1.bf16.msra.mxu0 0
  %1819 = vmatprep.subr.bf16.mxu0 0
  %1820 = vmatpush1.bf16.msra.mxu0 0
  %1821 = vmatprep.subr.bf16.mxu0 0
  %1822 = vmatpush1.bf16.msra.mxu0 0
  %1823 = vmatprep.subr.bf16.mxu0 0
  %1824 = vmatpush1.bf16.msra.mxu0 0
  %1825 = vmatprep.subr.bf16.mxu0 0
  %1826 = vmatpush1.bf16.msra.mxu0 0
  %1827 = vmatprep.subr.bf16.mxu0 0
  %1828 = vmatpush1.bf16.msra.mxu0 0
  %1829 = vmatprep.subr.bf16.mxu0 0
  %1830 = vmatpush1.bf16.msra.mxu0 0
  %1831 = vmatprep.subr.bf16.mxu0 0
  %1832 = vmatpush1.bf16.msra.mxu0 0
  %1833 = vmatprep.subr.bf16.mxu0 0
  %1834 = vmatpush1.bf16.msra.mxu0 0
  %1835 = vmatprep.subr.bf16.mxu0 0
  %1836 = vmatpush1.bf16.msra.mxu0 0
  %1837 = vmatprep.subr.bf16.mxu0 0
  %1838 = vmatpush1.bf16.msra.mxu0 0
  %1839 = vmatprep.subr.bf16.mxu0 0
  %1840 = vmatpush1.bf16.msra.mxu0 0
  %1841 = vmatprep.subr.bf16.mxu0 0
  %1842 = vmatpush1.bf16.msra.mxu0 0
  %1843 = vmatprep.mubr.bf16.mxu0 0
  %1844 = vmatmul.mubr.bf16.gmra.mrb[0].mxu0 %v1761
  %v1845 = vpop.f32.mrb[0].mxu0
  %v1846 = vadd.f32 0.0, %v1845
  %v1847 = vpop.f32.mrb[0].mxu0
  %v1848 = vpop.f32.mrb[0].mxu0
  %v1849 = vadd.f32 0.0, %v1848
  %v1850 = vpop.f32.mrb[0].mxu0
  %1851 = vmatprep.mubr.bf16.mxu0 0
  %1852 = vmatmul.mubr.bf16.gmra.mrb[0].mxu0 %v1764
  %v1853 = vpop.f32.mrb[0].mxu0
  %v1854 = vadd.f32 0.0, %v1853
  %v1855 = vpop.f32.mrb[0].mxu0
  %v1856 = vpop.f32.mrb[0].mxu0
  %v1857 = vadd.f32 0.0, %v1856
  %v1858 = vpop.f32.mrb[0].mxu0
  %1859 = vmatprep.mubr.bf16.mxu0 0
  %1860 = vmatmul.mubr.bf16.gmra.mrb[0].mxu0 %v1767
  %v1861 = vpop.f32.mrb[0].mxu0
  %v1862 = vadd.f32 0.0, %v1861
  %v1863 = vpop.f32.mrb[0].mxu0
  %v1864 = vpop.f32.mrb[0].mxu0
  %v1865 = vadd.f32 0.0, %v1864
  %v1866 = vpop.f32.mrb[0].mxu0
  %1867 = vmatprep.mubr.bf16.mxu0 0
  %1868 = vmatmul.mubr.bf16.gmra.mrb[0].mxu0 %v1770
  %v1869 = vpop.f32.mrb[0].mxu0
  %v1870 = vadd.f32 0.0, %v1869
  %v1871 = vpop.f32.mrb[0].mxu0
  %v1872 = vpop.f32.mrb[0].mxu0
  %v1873 = vadd.f32 0.0, %v1872
  %v1874 = vpop.f32.mrb[0].mxu0
  %1875 = vmatprep.mubr.bf16.mxu0 0
  %1876 = vmatmul.mubr.bf16.gmra.mrb[0].mxu0 %v1773
  %v1877 = vpop.f32.mrb[0].mxu0
  %v1878 = vadd.f32 0.0, %v1877
  %v1879 = vpop.f32.mrb[0].mxu0
  %v1880 = vpop.f32.mrb[0].mxu0
  %v1881 = vadd.f32 0.0, %v1880
  %v1882 = vpop.f32.mrb[0].mxu0
  %1883 = vmatprep.mubr.bf16.mxu0 0
  %1884 = vmatmul.mubr.bf16.gmra.mrb[0].mxu0 %v1776
  %v1885 = vpop.f32.mrb[0].mxu0
  %v1886 = vadd.f32 0.0, %v1885
  %v1887 = vpop.f32.mrb[0].mxu0
  %v1888 = vpop.f32.mrb[0].mxu0
  %v1889 = vadd.f32 0.0, %v1888
  %v1890 = vpop.f32.mrb[0].mxu0
  %1891 = vmatprep.mubr.bf16.mxu0 0
  %1892 = vmatmul.mubr.bf16.gmra.mrb[0].mxu0 %v1779
  %v1893 = vpop.f32.mrb[0].mxu0
  %v1894 = vadd.f32 0.0, %v1893
  %v1895 = vpop.f32.mrb[0].mxu0
  %v1896 = vpop.f32.mrb[0].mxu0
  %v1897 = vadd.f32 0.0, %v1896
  %v1898 = vpop.f32.mrb[0].mxu0
  %1899 = vmatprep.mubr.bf16.mxu0 0
  %1900 = vmatmul.mubr.bf16.gmra.mrb[0].mxu0 %v1782
  %v1901 = vpop.f32.mrb[0].mxu0
  %v1902 = vadd.f32 0.0, %v1901
  %v1903 = vpop.f32.mrb[0].mxu0
  %v1904 = vpop.f32.mrb[0].mxu0
  %v1905 = vadd.f32 0.0, %v1904
  %v1906 = vpop.f32.mrb[0].mxu0
  %1907 = vmatprep.mubr.bf16.mxu0 0
  %1908 = vmatmul.mubr.bf16.gmra.mrb[0].mxu0 %v1785
  %v1909 = vpop.f32.mrb[0].mxu0
  %v1910 = vadd.f32 0.0, %v1909
  %v1911 = vpop.f32.mrb[0].mxu0
  %v1912 = vpop.f32.mrb[0].mxu0
  %v1913 = vadd.f32 0.0, %v1912
  %v1914 = vpop.f32.mrb[0].mxu0
  %1915 = vmatprep.mubr.bf16.mxu0 0
  %1916 = vmatmul.mubr.bf16.gmra.mrb[0].mxu0 %v1788
  %v1917 = vpop.f32.mrb[0].mxu0
  %v1918 = vadd.f32 0.0, %v1917
  %v1919 = vpop.f32.mrb[0].mxu0
  %v1920 = vpop.f32.mrb[0].mxu0
  %v1921 = vadd.f32 0.0, %v1920
  %v1922 = vpop.f32.mrb[0].mxu0
  %1923 = vmatprep.mubr.bf16.mxu0 0
  %1924 = vmatmul.mubr.bf16.gmra.mrb[0].mxu0 %v1791
  %v1925 = vpop.f32.mrb[0].mxu0
  %v1926 = vadd.f32 0.0, %v1925
  %v1927 = vpop.f32.mrb[0].mxu0
  %v1928 = vpop.f32.mrb[0].mxu0
  %v1929 = vadd.f32 0.0, %v1928
  %v1930 = vpop.f32.mrb[0].mxu0
  %1931 = vmatprep.mubr.bf16.mxu0 0
  %1932 = vmatmul.mubr.bf16.gmra.mrb[0].mxu0 %v1794
  %v1933 = vpop.f32.mrb[0].mxu0
  %v1934 = vadd.f32 0.0, %v1933
  %v1935 = vpop.f32.mrb[0].mxu0
  %v1936 = vpop.f32.mrb[0].mxu0
  %v1937 = vadd.f32 0.0, %v1936
  %v1938 = vpop.f32.mrb[0].mxu0
  %1939 = vmatprep.mubr.bf16.mxu0 0
  %1940 = vmatmul.mubr.bf16.gmra.mrb[0].mxu0 %v1797
  %v1941 = vpop.f32.mrb[0].mxu0
  %v1942 = vadd.f32 0.0, %v1941
  %v1943 = vpop.f32.mrb[0].mxu0
  %v1944 = vpop.f32.mrb[0].mxu0
  %v1945 = vadd.f32 0.0, %v1944
  %v1946 = vpop.f32.mrb[0].mxu0
  %1947 = vmatprep.mubr.bf16.mxu0 0
  %1948 = vmatmul.mubr.bf16.gmra.mrb[0].mxu0 %v1800
  %v1949 = vpop.f32.mrb[0].mxu0
  %v1950 = vadd.f32 0.0, %v1949
  %v1951 = vpop.f32.mrb[0].mxu0
  %v1952 = vpop.f32.mrb[0].mxu0
  %v1953 = vadd.f32 0.0, %v1952
  %v1954 = vpop.f32.mrb[0].mxu0
  %1955 = vmatprep.mubr.bf16.mxu0 0
  %1956 = vmatmul.mubr.bf16.gmra.mrb[0].mxu0 %v1803
  %v1957 = vpop.f32.mrb[0].mxu0
  %v1958 = vadd.f32 0.0, %v1957
  %v1959 = vpop.f32.mrb[0].mxu0
  %v1960 = vpop.f32.mrb[0].mxu0
  %v1961 = vadd.f32 0.0, %v1960
  %v1962 = vpop.f32.mrb[0].mxu0
  %1963 = vmatprep.mubr.bf16.mxu0 0
  %1964 = vmatmul.mubr.bf16.gmra.mrb[0].mxu0 %v1806
  %v1965 = vpop.f32.mrb[0].mxu0
  %v1966 = vadd.f32 0.0, %v1965
  %v1967 = vpop.f32.mrb[0].mxu0
  %v1968 = vpop.f32.mrb[0].mxu0
  %v1969 = vadd.f32 0.0, %v1968
  %v1970 = vpop.f32.mrb[0].mxu0
  %1971 = vdwg.mxu0
  %v1972 = vrot.slane %v1726, 4
  %v1973 = vadd.f32 %v1726, %v1972
  %v1974 = vrot.slane %v1973, 2
  %v1975 = vadd.f32 %v1973, %v1974
  %v1976 = vrot.slane %v1975, 1
  %v1977 = vadd.f32 %v1975, %v1976
  %v1978 = vmul.f32 %v1846, 0.4
  %v1979 = vmul.f32 %v1849, 0.4
  %v1980 = vmul.f32 %v1854, 0.4
  %v1981 = vmul.f32 %v1857, 0.4
  %v1982 = vmul.f32 %v1862, 0.4
  %v1983 = vmul.f32 %v1865, 0.4
  %v1984 = vmul.f32 %v1870, 0.4
  %v1985 = vmul.f32 %v1873, 0.4
  %v1986 = vmul.f32 %v1878, 0.4
  %v1987 = vmul.f32 %v1881, 0.4
  %v1988 = vmul.f32 %v1886, 0.4
  %v1989 = vmul.f32 %v1889, 0.4
  %v1990 = vmul.f32 %v1894, 0.4
  %v1991 = vmul.f32 %v1897, 0.4
  %v1992 = vmul.f32 %v1902, 0.4
  %v1993 = vmul.f32 %v1905, 0.4
  %v1994 = vmul.f32 %v1910, 0.4
  %v1995 = vmul.f32 %v1913, 0.4
  %v1996 = vmul.f32 %v1918, 0.4
  %v1997 = vmul.f32 %v1921, 0.4
  %v1998 = vmul.f32 %v1926, 0.4
  %v1999 = vmul.f32 %v1929, 0.4
  %v2000 = vmul.f32 %v1934, 0.4
  %v2001 = vmul.f32 %v1937, 0.4
  %v2002 = vmul.f32 %v1942, 0.4
  %v2003 = vmul.f32 %v1945, 0.4
  %v2004 = vmul.f32 %v1950, 0.4
  %v2005 = vmul.f32 %v1953, 0.4
  %v2006 = vmul.f32 %v1958, 0.4
  %v2007 = vmul.f32 %v1961, 0.4
  %v2008 = vmul.f32 %v1966, 0.4
  %v2009 = vmul.f32 %v1969, 0.4
  %v2010 = vsub.f32 %v65, %v1978
  %v2011 = vsub.f32 %v66, %v1979
  %v2012 = vsub.f32 %v67, %v1980
  %v2013 = vsub.f32 %v68, %v1981
  %v2014 = vsub.f32 %v69, %v1982
  %v2015 = vsub.f32 %v70, %v1983
  %v2016 = vsub.f32 %v71, %v1984
  %v2017 = vsub.f32 %v72, %v1985
  %v2018 = vsub.f32 %v73, %v1986
  %v2019 = vsub.f32 %v74, %v1987
  %v2020 = vsub.f32 %v75, %v1988
  %v2021 = vsub.f32 %v76, %v1989
  %v2022 = vsub.f32 %v77, %v1990
  %v2023 = vsub.f32 %v78, %v1991
  %v2024 = vsub.f32 %v79, %v1992
  %v2025 = vsub.f32 %v80, %v1993
  %v2026 = vsub.f32 %v81, %v1994
  %v2027 = vsub.f32 %v82, %v1995
  %v2028 = vsub.f32 %v83, %v1996
  %v2029 = vsub.f32 %v84, %v1997
  %v2030 = vsub.f32 %v85, %v1998
  %v2031 = vsub.f32 %v86, %v1999
  %v2032 = vsub.f32 %v87, %v2000
  %v2033 = vsub.f32 %v88, %v2001
  %v2034 = vsub.f32 %v89, %v2002
  %v2035 = vsub.f32 %v90, %v2003
  %v2036 = vsub.f32 %v91, %v2004
  %v2037 = vsub.f32 %v92, %v2005
  %v2038 = vsub.f32 %v93, %v2006
  %v2039 = vsub.f32 %v94, %v2007
  %v2040 = vsub.f32 %v95, %v2008
  %v2041 = vsub.f32 %v96, %v2009
  %v2042 = vmul.f32 %v1977, 0.4
  %v2043 = vsub.f32 %v97, %v2042
  %v2044 = vpack.c.bf16 %v2011, %v2010
  %v2045 = vpack.c.bf16 %v2013, %v2012
  %v2046 = vpack.c.bf16 %v2015, %v2014
  %v2047 = vpack.c.bf16 %v2017, %v2016
  %v2048 = vpack.c.bf16 %v2019, %v2018
  %v2049 = vpack.c.bf16 %v2021, %v2020
  %v2050 = vpack.c.bf16 %v2023, %v2022
  %v2051 = vpack.c.bf16 %v2025, %v2024
  %v2052 = vpack.c.bf16 %v2027, %v2026
  %v2053 = vpack.c.bf16 %v2029, %v2028
  %v2054 = vpack.c.bf16 %v2031, %v2030
  %v2055 = vpack.c.bf16 %v2033, %v2032
  %v2056 = vpack.c.bf16 %v2035, %v2034
  %v2057 = vpack.c.bf16 %v2037, %v2036
  %v2058 = vpack.c.bf16 %v2039, %v2038
  %v2059 = vpack.c.bf16 %v2041, %v2040
  %v2061 = vlaneseq
  %v2062 = vshrl.u32 %v2061, 7
  %v2063 = vsub.s32 0, %v2062
  %v2064 = vrot.slane %v2043, %v2063
  %2066 = vmatprep.subr.bf16.mxu0 0
  %2067 = vmatpush1.bf16.msra.mxu0 %v2044
  %2068 = vmatprep.subr.bf16.mxu0 0
  %2069 = vmatpush1.bf16.msra.mxu0 %v2045
  %2070 = vmatprep.subr.bf16.mxu0 0
  %2071 = vmatpush1.bf16.msra.mxu0 %v2046
  %2072 = vmatprep.subr.bf16.mxu0 0
  %2073 = vmatpush1.bf16.msra.mxu0 %v2047
  %2074 = vmatprep.subr.bf16.mxu0 0
  %2075 = vmatpush1.bf16.msra.mxu0 %v2048
  %2076 = vmatprep.subr.bf16.mxu0 0
  %2077 = vmatpush1.bf16.msra.mxu0 %v2049
  %2078 = vmatprep.subr.bf16.mxu0 0
  %2079 = vmatpush1.bf16.msra.mxu0 %v2050
  %2080 = vmatprep.subr.bf16.mxu0 0
  %2081 = vmatpush1.bf16.msra.mxu0 %v2051
  %2082 = vmatprep.subr.bf16.mxu0 0
  %2083 = vmatpush1.bf16.msra.mxu0 %v2052
  %2084 = vmatprep.subr.bf16.mxu0 0
  %2085 = vmatpush1.bf16.msra.mxu0 %v2053
  %2086 = vmatprep.subr.bf16.mxu0 0
  %2087 = vmatpush1.bf16.msra.mxu0 %v2054
  %2088 = vmatprep.subr.bf16.mxu0 0
  %2089 = vmatpush1.bf16.msra.mxu0 %v2055
  %2090 = vmatprep.subr.bf16.mxu0 0
  %2091 = vmatpush1.bf16.msra.mxu0 %v2056
  %2092 = vmatprep.subr.bf16.mxu0 0
  %2093 = vmatpush1.bf16.msra.mxu0 %v2057
  %2094 = vmatprep.subr.bf16.mxu0 0
  %2095 = vmatpush1.bf16.msra.mxu0 %v2058
  %2096 = vmatprep.subr.bf16.mxu0 0
  %2097 = vmatpush1.bf16.msra.mxu0 %v2059
  %2098 = vmatprep.mubr.bf16.mxu0 %v1570
  %2099 = vmatmul.mubr.bf16.gmra.mrb[0].mxu0 %v1569
  %v2100 = vpop.f32.mrb[0].mxu0
  %v2101 = vadd.f32 %v2064, %v2100
  %v2102 = vpop.f32.mrb[0].mxu0
  %v2103 = vpop.f32.mrb[0].mxu0
  %v2104 = vpop.f32.mrb[0].mxu0
  %2105 = vdwg.mxu0
  %2106 = vmax.xlane.f32.xlu0 %v2101
  %v2107 = vpop.xlane.xlu0 %2106
  %v2108 = vsub.f32 %v2101, %v2107
  %v2109 = vmul.f32 %v2108, 1.442695
  %v2110 = vpow.pop %v2109
  %2111 = vadd.xlane.f32.xlu0 %v2110
  %v2112 = vpop.xlane.xlu0 %2111
  %v2113 = vlog2.pop %v2112
  %v2114 = vmul.f32 %v2113, 0.6931472
  %v2115 = vadd.f32 %v2107, %v2114
  %v2116 = vmul.f32 %v1561, %v2101
  %2117 = vadd.xlane.f32.xlu0 %v2116
  %v2118 = vpop.xlane.xlu0 %2117
  %v2119 = vsub.f32 %v2115, %v2118
  %v2120 = vsel %vm192, %v2119, 0.0
  %2121 = vadd.xlane.f32.xlu0 %v2120
  %v2122 = vpop.xlane.xlu0 %2121
  %v2123 = vrot.slane %v2122, 4
  %v2124 = vadd.f32 %v2122, %v2123
  %v2125 = vrot.slane %v2124, 2
  %v2126 = vadd.f32 %v2124, %v2125
  %v2127 = vrot.slane %v2126, 1
  %v2128 = vadd.f32 %v2126, %v2127
  %s2129 = vtos %v2128
  %s2130 = smul.f32 %s2129, 0.125
  %vm2131 = vcmp.eq.f32.partialorder %v2101, %v2107
  %v2132 = vsel %vm2131, %v115, 128
  %v2133 = vand.u32 %v2132, 65535
  %v2134 = vshra.s32 %v2132, 16
  %v2135 = vcvt.s32.f32 %v2133
  %v2136 = vcvt.s32.f32 %v2134
  %2137 = vmin.xlane.f32.xlu0 %v2136
  %v2138 = vpop.xlane.xlu0 %2137
  %vm2139 = vcmp.eq.f32.partialorder %v2136, %v2138
  %v2140 = vsel %vm2139, %v2135, inf
  %2141 = vmin.xlane.f32.xlu0 %v2140
  %v2142 = vpop.xlane.xlu0 %2141
  %v2143 = vcvt.f32.s32 %v2142
  %v2144 = vcvt.f32.s32 %v2138
  %v2145 = vshll.u32 %v2144, 16
  %v2146 = vadd.s32 %v2145, %v2143
  %vm2147 = vcmp.eq.s32.totalorder %v2146, %v1565
  %v2148 = vsel %vm2147, 1, 0
  %v2149 = vcvt.s32.f32 %v2148
  %v2150 = vsel %vm192, %v2149, 0.0
  %2151 = vadd.xlane.f32.xlu0 %v2150
  %v2152 = vpop.xlane.xlu0 %2151
  %v2153 = vrot.slane %v2152, 4
  %v2154 = vadd.f32 %v2152, %v2153
  %v2155 = vrot.slane %v2154, 2
  %v2156 = vadd.f32 %v2154, %v2155
  %v2157 = vrot.slane %v2156, 1
  %v2158 = vadd.f32 %v2156, %v2157
  %s2159 = vtos %v2158
  %s2160 = sadd.f32 %s728, %s2130
  %s2161 = sadd.f32 %s729, %s2159
  %2162 = vmatprep.subr.bf16.mxu0 0
  %2163 = vmatpush1.bf16.msra.mxu0 %v2044
  %2164 = vmatprep.subr.bf16.mxu0 0
  %2165 = vmatpush1.bf16.msra.mxu0 %v2045
  %2166 = vmatprep.subr.bf16.mxu0 0
  %2167 = vmatpush1.bf16.msra.mxu0 %v2046
  %2168 = vmatprep.subr.bf16.mxu0 0
  %2169 = vmatpush1.bf16.msra.mxu0 %v2047
  %2170 = vmatprep.subr.bf16.mxu0 0
  %2171 = vmatpush1.bf16.msra.mxu0 %v2048
  %2172 = vmatprep.subr.bf16.mxu0 0
  %2173 = vmatpush1.bf16.msra.mxu0 %v2049
  %2174 = vmatprep.subr.bf16.mxu0 0
  %2175 = vmatpush1.bf16.msra.mxu0 %v2050
  %2176 = vmatprep.subr.bf16.mxu0 0
  %2177 = vmatpush1.bf16.msra.mxu0 %v2051
  %2178 = vmatprep.subr.bf16.mxu0 0
  %2179 = vmatpush1.bf16.msra.mxu0 %v2052
  %2180 = vmatprep.subr.bf16.mxu0 0
  %2181 = vmatpush1.bf16.msra.mxu0 %v2053
  %2182 = vmatprep.subr.bf16.mxu0 0
  %2183 = vmatpush1.bf16.msra.mxu0 %v2054
  %2184 = vmatprep.subr.bf16.mxu0 0
  %2185 = vmatpush1.bf16.msra.mxu0 %v2055
  %2186 = vmatprep.subr.bf16.mxu0 0
  %2187 = vmatpush1.bf16.msra.mxu0 %v2056
  %2188 = vmatprep.subr.bf16.mxu0 0
  %2189 = vmatpush1.bf16.msra.mxu0 %v2057
  %2190 = vmatprep.subr.bf16.mxu0 0
  %2191 = vmatpush1.bf16.msra.mxu0 %v2058
  %2192 = vmatprep.subr.bf16.mxu0 0
  %2193 = vmatpush1.bf16.msra.mxu0 %v2059
  %2194 = vmatprep.mubr.bf16.mxu0 %v1673
  %2195 = vmatmul.mubr.bf16.gmra.mrb[0].mxu0 %v1672
  %v2196 = vpop.f32.mrb[0].mxu0
  %v2197 = vadd.f32 %v2064, %v2196
  %v2198 = vpop.f32.mrb[0].mxu0
  %v2199 = vpop.f32.mrb[0].mxu0
  %v2200 = vpop.f32.mrb[0].mxu0
  %2201 = vdwg.mxu0
  %2202 = vmax.xlane.f32.xlu0 %v2197
  %v2203 = vpop.xlane.xlu0 %2202
  %v2204 = vsub.f32 %v2197, %v2203
  %v2205 = vmul.f32 %v2204, 1.442695
  %v2206 = vpow.pop %v2205
  %2207 = vadd.xlane.f32.xlu0 %v2206
  %v2208 = vpop.xlane.xlu0 %2207
  %v2209 = vrcp.pop %v2208
  %v2210 = vmul.f32 %v2206, %v2209
  %v2211 = vsub.f32 %v2210, %v1557
  %v2212 = vmul.f32 %v2211, 0.125
  %v2213 = vpack.c.bf16 %v2212, %v2212
  %v2215 = vsel %vm375, %v2213, 0
  %2217 = vmatprep.subr.bf16.mxu0 0
  %2218 = vmatpush1.bf16.msra.mxu0 %v2215
  %2219 = vmatprep.subr.bf16.mxu0 0
  %2220 = vmatpush1.bf16.msra.mxu0 0
  %2221 = vmatprep.subr.bf16.mxu0 0
  %2222 = vmatpush1.bf16.msra.mxu0 0
  %2223 = vmatprep.subr.bf16.mxu0 0
  %2224 = vmatpush1.bf16.msra.mxu0 0
  %2225 = vmatprep.subr.bf16.mxu0 0
  %2226 = vmatpush1.bf16.msra.mxu0 0
  %2227 = vmatprep.subr.bf16.mxu0 0
  %2228 = vmatpush1.bf16.msra.mxu0 0
  %2229 = vmatprep.subr.bf16.mxu0 0
  %2230 = vmatpush1.bf16.msra.mxu0 0
  %2231 = vmatprep.subr.bf16.mxu0 0
  %2232 = vmatpush1.bf16.msra.mxu0 0
  %2233 = vmatprep.subr.bf16.mxu0 0
  %2234 = vmatpush1.bf16.msra.mxu0 0
  %2235 = vmatprep.subr.bf16.mxu0 0
  %2236 = vmatpush1.bf16.msra.mxu0 0
  %2237 = vmatprep.subr.bf16.mxu0 0
  %2238 = vmatpush1.bf16.msra.mxu0 0
  %2239 = vmatprep.subr.bf16.mxu0 0
  %2240 = vmatpush1.bf16.msra.mxu0 0
  %2241 = vmatprep.subr.bf16.mxu0 0
  %2242 = vmatpush1.bf16.msra.mxu0 0
  %2243 = vmatprep.subr.bf16.mxu0 0
  %2244 = vmatpush1.bf16.msra.mxu0 0
  %2245 = vmatprep.subr.bf16.mxu0 0
  %2246 = vmatpush1.bf16.msra.mxu0 0
  %2247 = vmatprep.subr.bf16.mxu0 0
  %2248 = vmatpush1.bf16.msra.mxu0 0
  %2249 = vmatprep.mubr.bf16.mxu0 0
  %2250 = vmatmul.mubr.bf16.gmra.mrb[0].mxu0 %v1761
  %v2251 = vpop.f32.mrb[0].mxu0
  %v2252 = vadd.f32 0.0, %v2251
  %v2253 = vpop.f32.mrb[0].mxu0
  %v2254 = vpop.f32.mrb[0].mxu0
  %v2255 = vadd.f32 0.0, %v2254
  %v2256 = vpop.f32.mrb[0].mxu0
  %2257 = vmatprep.mubr.bf16.mxu0 0
  %2258 = vmatmul.mubr.bf16.gmra.mrb[0].mxu0 %v1764
  %v2259 = vpop.f32.mrb[0].mxu0
  %v2260 = vadd.f32 0.0, %v2259
  %v2261 = vpop.f32.mrb[0].mxu0
  %v2262 = vpop.f32.mrb[0].mxu0
  %v2263 = vadd.f32 0.0, %v2262
  %v2264 = vpop.f32.mrb[0].mxu0
  %2265 = vmatprep.mubr.bf16.mxu0 0
  %2266 = vmatmul.mubr.bf16.gmra.mrb[0].mxu0 %v1767
  %v2267 = vpop.f32.mrb[0].mxu0
  %v2268 = vadd.f32 0.0, %v2267
  %v2269 = vpop.f32.mrb[0].mxu0
  %v2270 = vpop.f32.mrb[0].mxu0
  %v2271 = vadd.f32 0.0, %v2270
  %v2272 = vpop.f32.mrb[0].mxu0
  %2273 = vmatprep.mubr.bf16.mxu0 0
  %2274 = vmatmul.mubr.bf16.gmra.mrb[0].mxu0 %v1770
  %v2275 = vpop.f32.mrb[0].mxu0
  %v2276 = vadd.f32 0.0, %v2275
  %v2277 = vpop.f32.mrb[0].mxu0
  %v2278 = vpop.f32.mrb[0].mxu0
  %v2279 = vadd.f32 0.0, %v2278
  %v2280 = vpop.f32.mrb[0].mxu0
  %2281 = vmatprep.mubr.bf16.mxu0 0
  %2282 = vmatmul.mubr.bf16.gmra.mrb[0].mxu0 %v1773
  %v2283 = vpop.f32.mrb[0].mxu0
  %v2284 = vadd.f32 0.0, %v2283
  %v2285 = vpop.f32.mrb[0].mxu0
  %v2286 = vpop.f32.mrb[0].mxu0
  %v2287 = vadd.f32 0.0, %v2286
  %v2288 = vpop.f32.mrb[0].mxu0
  %2289 = vmatprep.mubr.bf16.mxu0 0
  %2290 = vmatmul.mubr.bf16.gmra.mrb[0].mxu0 %v1776
  %v2291 = vpop.f32.mrb[0].mxu0
  %v2292 = vadd.f32 0.0, %v2291
  %v2293 = vpop.f32.mrb[0].mxu0
  %v2294 = vpop.f32.mrb[0].mxu0
  %v2295 = vadd.f32 0.0, %v2294
  %v2296 = vpop.f32.mrb[0].mxu0
  %2297 = vmatprep.mubr.bf16.mxu0 0
  %2298 = vmatmul.mubr.bf16.gmra.mrb[0].mxu0 %v1779
  %v2299 = vpop.f32.mrb[0].mxu0
  %v2300 = vadd.f32 0.0, %v2299
  %v2301 = vpop.f32.mrb[0].mxu0
  %v2302 = vpop.f32.mrb[0].mxu0
  %v2303 = vadd.f32 0.0, %v2302
  %v2304 = vpop.f32.mrb[0].mxu0
  %2305 = vmatprep.mubr.bf16.mxu0 0
  %2306 = vmatmul.mubr.bf16.gmra.mrb[0].mxu0 %v1782
  %v2307 = vpop.f32.mrb[0].mxu0
  %v2308 = vadd.f32 0.0, %v2307
  %v2309 = vpop.f32.mrb[0].mxu0
  %v2310 = vpop.f32.mrb[0].mxu0
  %v2311 = vadd.f32 0.0, %v2310
  %v2312 = vpop.f32.mrb[0].mxu0
  %2313 = vmatprep.mubr.bf16.mxu0 0
  %2314 = vmatmul.mubr.bf16.gmra.mrb[0].mxu0 %v1785
  %v2315 = vpop.f32.mrb[0].mxu0
  %v2316 = vadd.f32 0.0, %v2315
  %v2317 = vpop.f32.mrb[0].mxu0
  %v2318 = vpop.f32.mrb[0].mxu0
  %v2319 = vadd.f32 0.0, %v2318
  %v2320 = vpop.f32.mrb[0].mxu0
  %2321 = vmatprep.mubr.bf16.mxu0 0
  %2322 = vmatmul.mubr.bf16.gmra.mrb[0].mxu0 %v1788
  %v2323 = vpop.f32.mrb[0].mxu0
  %v2324 = vadd.f32 0.0, %v2323
  %v2325 = vpop.f32.mrb[0].mxu0
  %v2326 = vpop.f32.mrb[0].mxu0
  %v2327 = vadd.f32 0.0, %v2326
  %v2328 = vpop.f32.mrb[0].mxu0
  %2329 = vmatprep.mubr.bf16.mxu0 0
  %2330 = vmatmul.mubr.bf16.gmra.mrb[0].mxu0 %v1791
  %v2331 = vpop.f32.mrb[0].mxu0
  %v2332 = vadd.f32 0.0, %v2331
  %v2333 = vpop.f32.mrb[0].mxu0
  %v2334 = vpop.f32.mrb[0].mxu0
  %v2335 = vadd.f32 0.0, %v2334
  %v2336 = vpop.f32.mrb[0].mxu0
  %2337 = vmatprep.mubr.bf16.mxu0 0
  %2338 = vmatmul.mubr.bf16.gmra.mrb[0].mxu0 %v1794
  %v2339 = vpop.f32.mrb[0].mxu0
  %v2340 = vadd.f32 0.0, %v2339
  %v2341 = vpop.f32.mrb[0].mxu0
  %v2342 = vpop.f32.mrb[0].mxu0
  %v2343 = vadd.f32 0.0, %v2342
  %v2344 = vpop.f32.mrb[0].mxu0
  %2345 = vmatprep.mubr.bf16.mxu0 0
  %2346 = vmatmul.mubr.bf16.gmra.mrb[0].mxu0 %v1797
  %v2347 = vpop.f32.mrb[0].mxu0
  %v2348 = vadd.f32 0.0, %v2347
  %v2349 = vpop.f32.mrb[0].mxu0
  %v2350 = vpop.f32.mrb[0].mxu0
  %v2351 = vadd.f32 0.0, %v2350
  %v2352 = vpop.f32.mrb[0].mxu0
  %2353 = vmatprep.mubr.bf16.mxu0 0
  %2354 = vmatmul.mubr.bf16.gmra.mrb[0].mxu0 %v1800
  %v2355 = vpop.f32.mrb[0].mxu0
  %v2356 = vadd.f32 0.0, %v2355
  %v2357 = vpop.f32.mrb[0].mxu0
  %v2358 = vpop.f32.mrb[0].mxu0
  %v2359 = vadd.f32 0.0, %v2358
  %v2360 = vpop.f32.mrb[0].mxu0
  %2361 = vmatprep.mubr.bf16.mxu0 0
  %2362 = vmatmul.mubr.bf16.gmra.mrb[0].mxu0 %v1803
  %v2363 = vpop.f32.mrb[0].mxu0
  %v2364 = vadd.f32 0.0, %v2363
  %v2365 = vpop.f32.mrb[0].mxu0
  %v2366 = vpop.f32.mrb[0].mxu0
  %v2367 = vadd.f32 0.0, %v2366
  %v2368 = vpop.f32.mrb[0].mxu0
  %2369 = vmatprep.mubr.bf16.mxu0 0
  %2370 = vmatmul.mubr.bf16.gmra.mrb[0].mxu0 %v1806
  %v2371 = vpop.f32.mrb[0].mxu0
  %v2372 = vadd.f32 0.0, %v2371
  %v2373 = vpop.f32.mrb[0].mxu0
  %v2374 = vpop.f32.mrb[0].mxu0
  %v2375 = vadd.f32 0.0, %v2374
  %v2376 = vpop.f32.mrb[0].mxu0
  %2377 = vdwg.mxu0
  %v2378 = vrot.slane %v2212, 4
  %v2379 = vadd.f32 %v2212, %v2378
  %v2380 = vrot.slane %v2379, 2
  %v2381 = vadd.f32 %v2379, %v2380
  %v2382 = vrot.slane %v2381, 1
  %v2383 = vadd.f32 %v2381, %v2382
  %v2384 = vmul.f32 %v2252, 0.4
  %v2385 = vmul.f32 %v2255, 0.4
  %v2386 = vmul.f32 %v2260, 0.4
  %v2387 = vmul.f32 %v2263, 0.4
  %v2388 = vmul.f32 %v2268, 0.4
  %v2389 = vmul.f32 %v2271, 0.4
  %v2390 = vmul.f32 %v2276, 0.4
  %v2391 = vmul.f32 %v2279, 0.4
  %v2392 = vmul.f32 %v2284, 0.4
  %v2393 = vmul.f32 %v2287, 0.4
  %v2394 = vmul.f32 %v2292, 0.4
  %v2395 = vmul.f32 %v2295, 0.4
  %v2396 = vmul.f32 %v2300, 0.4
  %v2397 = vmul.f32 %v2303, 0.4
  %v2398 = vmul.f32 %v2308, 0.4
  %v2399 = vmul.f32 %v2311, 0.4
  %v2400 = vmul.f32 %v2316, 0.4
  %v2401 = vmul.f32 %v2319, 0.4
  %v2402 = vmul.f32 %v2324, 0.4
  %v2403 = vmul.f32 %v2327, 0.4
  %v2404 = vmul.f32 %v2332, 0.4
  %v2405 = vmul.f32 %v2335, 0.4
  %v2406 = vmul.f32 %v2340, 0.4
  %v2407 = vmul.f32 %v2343, 0.4
  %v2408 = vmul.f32 %v2348, 0.4
  %v2409 = vmul.f32 %v2351, 0.4
  %v2410 = vmul.f32 %v2356, 0.4
  %v2411 = vmul.f32 %v2359, 0.4
  %v2412 = vmul.f32 %v2364, 0.4
  %v2413 = vmul.f32 %v2367, 0.4
  %v2414 = vmul.f32 %v2372, 0.4
  %v2415 = vmul.f32 %v2375, 0.4
  %v2416 = vsub.f32 %v2010, %v2384
  %v2417 = vsub.f32 %v2011, %v2385
  %v2418 = vsub.f32 %v2012, %v2386
  %v2419 = vsub.f32 %v2013, %v2387
  %v2420 = vsub.f32 %v2014, %v2388
  %v2421 = vsub.f32 %v2015, %v2389
  %v2422 = vsub.f32 %v2016, %v2390
  %v2423 = vsub.f32 %v2017, %v2391
  %v2424 = vsub.f32 %v2018, %v2392
  %v2425 = vsub.f32 %v2019, %v2393
  %v2426 = vsub.f32 %v2020, %v2394
  %v2427 = vsub.f32 %v2021, %v2395
  %v2428 = vsub.f32 %v2022, %v2396
  %v2429 = vsub.f32 %v2023, %v2397
  %v2430 = vsub.f32 %v2024, %v2398
  %v2431 = vsub.f32 %v2025, %v2399
  %v2432 = vsub.f32 %v2026, %v2400
  %v2433 = vsub.f32 %v2027, %v2401
  %v2434 = vsub.f32 %v2028, %v2402
  %v2435 = vsub.f32 %v2029, %v2403
  %v2436 = vsub.f32 %v2030, %v2404
  %v2437 = vsub.f32 %v2031, %v2405
  %v2438 = vsub.f32 %v2032, %v2406
  %v2439 = vsub.f32 %v2033, %v2407
  %v2440 = vsub.f32 %v2034, %v2408
  %v2441 = vsub.f32 %v2035, %v2409
  %v2442 = vsub.f32 %v2036, %v2410
  %v2443 = vsub.f32 %v2037, %v2411
  %v2444 = vsub.f32 %v2038, %v2412
  %v2445 = vsub.f32 %v2039, %v2413
  %v2446 = vsub.f32 %v2040, %v2414
  %v2447 = vsub.f32 %v2041, %v2415
  %v2448 = vmul.f32 %v2383, 0.4
  %v2449 = vsub.f32 %v2043, %v2448
  %v2450 = vpack.c.bf16 %v2417, %v2416
  %v2451 = vpack.c.bf16 %v2419, %v2418
  %v2452 = vpack.c.bf16 %v2421, %v2420
  %v2453 = vpack.c.bf16 %v2423, %v2422
  %v2454 = vpack.c.bf16 %v2425, %v2424
  %v2455 = vpack.c.bf16 %v2427, %v2426
  %v2456 = vpack.c.bf16 %v2429, %v2428
  %v2457 = vpack.c.bf16 %v2431, %v2430
  %v2458 = vpack.c.bf16 %v2433, %v2432
  %v2459 = vpack.c.bf16 %v2435, %v2434
  %v2460 = vpack.c.bf16 %v2437, %v2436
  %v2461 = vpack.c.bf16 %v2439, %v2438
  %v2462 = vpack.c.bf16 %v2441, %v2440
  %v2463 = vpack.c.bf16 %v2443, %v2442
  %v2464 = vpack.c.bf16 %v2445, %v2444
  %v2465 = vpack.c.bf16 %v2447, %v2446
  %v2467 = vlaneseq
  %v2468 = vshrl.u32 %v2467, 7
  %v2469 = vsub.s32 0, %v2468
  %v2470 = vrot.slane %v2449, %v2469
  %2472 = vmatprep.subr.bf16.mxu0 0
  %2473 = vmatpush1.bf16.msra.mxu0 %v2450
  %2474 = vmatprep.subr.bf16.mxu0 0
  %2475 = vmatpush1.bf16.msra.mxu0 %v2451
  %2476 = vmatprep.subr.bf16.mxu0 0
  %2477 = vmatpush1.bf16.msra.mxu0 %v2452
  %2478 = vmatprep.subr.bf16.mxu0 0
  %2479 = vmatpush1.bf16.msra.mxu0 %v2453
  %2480 = vmatprep.subr.bf16.mxu0 0
  %2481 = vmatpush1.bf16.msra.mxu0 %v2454
  %2482 = vmatprep.subr.bf16.mxu0 0
  %2483 = vmatpush1.bf16.msra.mxu0 %v2455
  %2484 = vmatprep.subr.bf16.mxu0 0
  %2485 = vmatpush1.bf16.msra.mxu0 %v2456
  %2486 = vmatprep.subr.bf16.mxu0 0
  %2487 = vmatpush1.bf16.msra.mxu0 %v2457
  %2488 = vmatprep.subr.bf16.mxu0 0
  %2489 = vmatpush1.bf16.msra.mxu0 %v2458
  %2490 = vmatprep.subr.bf16.mxu0 0
  %2491 = vmatpush1.bf16.msra.mxu0 %v2459
  %2492 = vmatprep.subr.bf16.mxu0 0
  %2493 = vmatpush1.bf16.msra.mxu0 %v2460
  %2494 = vmatprep.subr.bf16.mxu0 0
  %2495 = vmatpush1.bf16.msra.mxu0 %v2461
  %2496 = vmatprep.subr.bf16.mxu0 0
  %2497 = vmatpush1.bf16.msra.mxu0 %v2462
  %2498 = vmatprep.subr.bf16.mxu0 0
  %2499 = vmatpush1.bf16.msra.mxu0 %v2463
  %2500 = vmatprep.subr.bf16.mxu0 0
  %2501 = vmatpush1.bf16.msra.mxu0 %v2464
  %2502 = vmatprep.subr.bf16.mxu0 0
  %2503 = vmatpush1.bf16.msra.mxu0 %v2465
  %2504 = vmatprep.mubr.bf16.mxu0 %v1570
  %2505 = vmatmul.mubr.bf16.gmra.mrb[0].mxu0 %v1569
  %v2506 = vpop.f32.mrb[0].mxu0
  %v2507 = vadd.f32 %v2470, %v2506
  %v2508 = vpop.f32.mrb[0].mxu0
  %v2509 = vpop.f32.mrb[0].mxu0
  %v2510 = vpop.f32.mrb[0].mxu0
  %2511 = vdwg.mxu0
  %2512 = vmax.xlane.f32.xlu0 %v2507
  %v2513 = vpop.xlane.xlu0 %2512
  %v2514 = vsub.f32 %v2507, %v2513
  %v2515 = vmul.f32 %v2514, 1.442695
  %v2516 = vpow.pop %v2515
  %2517 = vadd.xlane.f32.xlu0 %v2516
  %v2518 = vpop.xlane.xlu0 %2517
  %v2519 = vlog2.pop %v2518
  %v2520 = vmul.f32 %v2519, 0.6931472
  %v2521 = vadd.f32 %v2513, %v2520
  %v2522 = vmul.f32 %v1561, %v2507
  %2523 = vadd.xlane.f32.xlu0 %v2522
  %v2524 = vpop.xlane.xlu0 %2523
  %v2525 = vsub.f32 %v2521, %v2524
  %v2526 = vsel %vm192, %v2525, 0.0
  %2527 = vadd.xlane.f32.xlu0 %v2526
  %v2528 = vpop.xlane.xlu0 %2527
  %v2529 = vrot.slane %v2528, 4
  %v2530 = vadd.f32 %v2528, %v2529
  %v2531 = vrot.slane %v2530, 2
  %v2532 = vadd.f32 %v2530, %v2531
  %v2533 = vrot.slane %v2532, 1
  %v2534 = vadd.f32 %v2532, %v2533
  %s2535 = vtos %v2534
  %s2536 = smul.f32 %s2535, 0.125
  %vm2537 = vcmp.eq.f32.partialorder %v2507, %v2513
  %v2538 = vsel %vm2537, %v115, 128
  %v2539 = vand.u32 %v2538, 65535
  %v2540 = vshra.s32 %v2538, 16
  %v2541 = vcvt.s32.f32 %v2539
  %v2542 = vcvt.s32.f32 %v2540
  %2543 = vmin.xlane.f32.xlu0 %v2542
  %v2544 = vpop.xlane.xlu0 %2543
  %vm2545 = vcmp.eq.f32.partialorder %v2542, %v2544
  %v2546 = vsel %vm2545, %v2541, inf
  %2547 = vmin.xlane.f32.xlu0 %v2546
  %v2548 = vpop.xlane.xlu0 %2547
  %v2549 = vcvt.f32.s32 %v2548
  %v2550 = vcvt.f32.s32 %v2544
  %v2551 = vshll.u32 %v2550, 16
  %v2552 = vadd.s32 %v2551, %v2549
  %vm2553 = vcmp.eq.s32.totalorder %v2552, %v1565
  %v2554 = vsel %vm2553, 1, 0
  %v2555 = vcvt.s32.f32 %v2554
  %v2556 = vsel %vm192, %v2555, 0.0
  %2557 = vadd.xlane.f32.xlu0 %v2556
  %v2558 = vpop.xlane.xlu0 %2557
  %v2559 = vrot.slane %v2558, 4
  %v2560 = vadd.f32 %v2558, %v2559
  %v2561 = vrot.slane %v2560, 2
  %v2562 = vadd.f32 %v2560, %v2561
  %v2563 = vrot.slane %v2562, 1
  %v2564 = vadd.f32 %v2562, %v2563
  %s2565 = vtos %v2564
  %s2566 = sadd.f32 %s1134, %s2536
  %s2567 = sadd.f32 %s1135, %s2565
  %2568 = vmatprep.subr.bf16.mxu0 0
  %2569 = vmatpush1.bf16.msra.mxu0 %v2450
  %2570 = vmatprep.subr.bf16.mxu0 0
  %2571 = vmatpush1.bf16.msra.mxu0 %v2451
  %2572 = vmatprep.subr.bf16.mxu0 0
  %2573 = vmatpush1.bf16.msra.mxu0 %v2452
  %2574 = vmatprep.subr.bf16.mxu0 0
  %2575 = vmatpush1.bf16.msra.mxu0 %v2453
  %2576 = vmatprep.subr.bf16.mxu0 0
  %2577 = vmatpush1.bf16.msra.mxu0 %v2454
  %2578 = vmatprep.subr.bf16.mxu0 0
  %2579 = vmatpush1.bf16.msra.mxu0 %v2455
  %2580 = vmatprep.subr.bf16.mxu0 0
  %2581 = vmatpush1.bf16.msra.mxu0 %v2456
  %2582 = vmatprep.subr.bf16.mxu0 0
  %2583 = vmatpush1.bf16.msra.mxu0 %v2457
  %2584 = vmatprep.subr.bf16.mxu0 0
  %2585 = vmatpush1.bf16.msra.mxu0 %v2458
  %2586 = vmatprep.subr.bf16.mxu0 0
  %2587 = vmatpush1.bf16.msra.mxu0 %v2459
  %2588 = vmatprep.subr.bf16.mxu0 0
  %2589 = vmatpush1.bf16.msra.mxu0 %v2460
  %2590 = vmatprep.subr.bf16.mxu0 0
  %2591 = vmatpush1.bf16.msra.mxu0 %v2461
  %2592 = vmatprep.subr.bf16.mxu0 0
  %2593 = vmatpush1.bf16.msra.mxu0 %v2462
  %2594 = vmatprep.subr.bf16.mxu0 0
  %2595 = vmatpush1.bf16.msra.mxu0 %v2463
  %2596 = vmatprep.subr.bf16.mxu0 0
  %2597 = vmatpush1.bf16.msra.mxu0 %v2464
  %2598 = vmatprep.subr.bf16.mxu0 0
  %2599 = vmatpush1.bf16.msra.mxu0 %v2465
  %2600 = vmatprep.mubr.bf16.mxu0 %v1673
  %2601 = vmatmul.mubr.bf16.gmra.mrb[0].mxu0 %v1672
  %v2602 = vpop.f32.mrb[0].mxu0
  %v2603 = vadd.f32 %v2470, %v2602
  %v2604 = vpop.f32.mrb[0].mxu0
  %v2605 = vpop.f32.mrb[0].mxu0
  %v2606 = vpop.f32.mrb[0].mxu0
  %2607 = vdwg.mxu0
  %2608 = vmax.xlane.f32.xlu0 %v2603
  %v2609 = vpop.xlane.xlu0 %2608
  %v2610 = vsub.f32 %v2603, %v2609
  %v2611 = vmul.f32 %v2610, 1.442695
  %v2612 = vpow.pop %v2611
  %2613 = vadd.xlane.f32.xlu0 %v2612
  %v2614 = vpop.xlane.xlu0 %2613
  %v2615 = vrcp.pop %v2614
  %v2616 = vmul.f32 %v2612, %v2615
  %v2617 = vsub.f32 %v2616, %v1557
  %v2618 = vmul.f32 %v2617, 0.125
  %v2619 = vpack.c.bf16 %v2618, %v2618
  %v2621 = vsel %vm375, %v2619, 0
  %2623 = vmatprep.subr.bf16.mxu0 0
  %2624 = vmatpush1.bf16.msra.mxu0 %v2621
  %2625 = vmatprep.subr.bf16.mxu0 0
  %2626 = vmatpush1.bf16.msra.mxu0 0
  %2627 = vmatprep.subr.bf16.mxu0 0
  %2628 = vmatpush1.bf16.msra.mxu0 0
  %2629 = vmatprep.subr.bf16.mxu0 0
  %2630 = vmatpush1.bf16.msra.mxu0 0
  %2631 = vmatprep.subr.bf16.mxu0 0
  %2632 = vmatpush1.bf16.msra.mxu0 0
  %2633 = vmatprep.subr.bf16.mxu0 0
  %2634 = vmatpush1.bf16.msra.mxu0 0
  %2635 = vmatprep.subr.bf16.mxu0 0
  %2636 = vmatpush1.bf16.msra.mxu0 0
  %2637 = vmatprep.subr.bf16.mxu0 0
  %2638 = vmatpush1.bf16.msra.mxu0 0
  %2639 = vmatprep.subr.bf16.mxu0 0
  %2640 = vmatpush1.bf16.msra.mxu0 0
  %2641 = vmatprep.subr.bf16.mxu0 0
  %2642 = vmatpush1.bf16.msra.mxu0 0
  %2643 = vmatprep.subr.bf16.mxu0 0
  %2644 = vmatpush1.bf16.msra.mxu0 0
  %2645 = vmatprep.subr.bf16.mxu0 0
  %2646 = vmatpush1.bf16.msra.mxu0 0
  %2647 = vmatprep.subr.bf16.mxu0 0
  %2648 = vmatpush1.bf16.msra.mxu0 0
  %2649 = vmatprep.subr.bf16.mxu0 0
  %2650 = vmatpush1.bf16.msra.mxu0 0
  %2651 = vmatprep.subr.bf16.mxu0 0
  %2652 = vmatpush1.bf16.msra.mxu0 0
  %2653 = vmatprep.subr.bf16.mxu0 0
  %2654 = vmatpush1.bf16.msra.mxu0 0
  %2655 = vmatprep.mubr.bf16.mxu0 0
  %2656 = vmatmul.mubr.bf16.gmra.mrb[0].mxu0 %v1761
  %v2657 = vpop.f32.mrb[0].mxu0
  %v2658 = vadd.f32 0.0, %v2657
  %v2659 = vpop.f32.mrb[0].mxu0
  %v2660 = vpop.f32.mrb[0].mxu0
  %v2661 = vadd.f32 0.0, %v2660
  %v2662 = vpop.f32.mrb[0].mxu0
  %2663 = vmatprep.mubr.bf16.mxu0 0
  %2664 = vmatmul.mubr.bf16.gmra.mrb[0].mxu0 %v1764
  %v2665 = vpop.f32.mrb[0].mxu0
  %v2666 = vadd.f32 0.0, %v2665
  %v2667 = vpop.f32.mrb[0].mxu0
  %v2668 = vpop.f32.mrb[0].mxu0
  %v2669 = vadd.f32 0.0, %v2668
  %v2670 = vpop.f32.mrb[0].mxu0
  %2671 = vmatprep.mubr.bf16.mxu0 0
  %2672 = vmatmul.mubr.bf16.gmra.mrb[0].mxu0 %v1767
  %v2673 = vpop.f32.mrb[0].mxu0
  %v2674 = vadd.f32 0.0, %v2673
  %v2675 = vpop.f32.mrb[0].mxu0
  %v2676 = vpop.f32.mrb[0].mxu0
  %v2677 = vadd.f32 0.0, %v2676
  %v2678 = vpop.f32.mrb[0].mxu0
  %2679 = vmatprep.mubr.bf16.mxu0 0
  %2680 = vmatmul.mubr.bf16.gmra.mrb[0].mxu0 %v1770
  %v2681 = vpop.f32.mrb[0].mxu0
  %v2682 = vadd.f32 0.0, %v2681
  %v2683 = vpop.f32.mrb[0].mxu0
  %v2684 = vpop.f32.mrb[0].mxu0
  %v2685 = vadd.f32 0.0, %v2684
  %v2686 = vpop.f32.mrb[0].mxu0
  %2687 = vmatprep.mubr.bf16.mxu0 0
  %2688 = vmatmul.mubr.bf16.gmra.mrb[0].mxu0 %v1773
  %v2689 = vpop.f32.mrb[0].mxu0
  %v2690 = vadd.f32 0.0, %v2689
  %v2691 = vpop.f32.mrb[0].mxu0
  %v2692 = vpop.f32.mrb[0].mxu0
  %v2693 = vadd.f32 0.0, %v2692
  %v2694 = vpop.f32.mrb[0].mxu0
  %2695 = vmatprep.mubr.bf16.mxu0 0
  %2696 = vmatmul.mubr.bf16.gmra.mrb[0].mxu0 %v1776
  %v2697 = vpop.f32.mrb[0].mxu0
  %v2698 = vadd.f32 0.0, %v2697
  %v2699 = vpop.f32.mrb[0].mxu0
  %v2700 = vpop.f32.mrb[0].mxu0
  %v2701 = vadd.f32 0.0, %v2700
  %v2702 = vpop.f32.mrb[0].mxu0
  %2703 = vmatprep.mubr.bf16.mxu0 0
  %2704 = vmatmul.mubr.bf16.gmra.mrb[0].mxu0 %v1779
  %v2705 = vpop.f32.mrb[0].mxu0
  %v2706 = vadd.f32 0.0, %v2705
  %v2707 = vpop.f32.mrb[0].mxu0
  %v2708 = vpop.f32.mrb[0].mxu0
  %v2709 = vadd.f32 0.0, %v2708
  %v2710 = vpop.f32.mrb[0].mxu0
  %2711 = vmatprep.mubr.bf16.mxu0 0
  %2712 = vmatmul.mubr.bf16.gmra.mrb[0].mxu0 %v1782
  %v2713 = vpop.f32.mrb[0].mxu0
  %v2714 = vadd.f32 0.0, %v2713
  %v2715 = vpop.f32.mrb[0].mxu0
  %v2716 = vpop.f32.mrb[0].mxu0
  %v2717 = vadd.f32 0.0, %v2716
  %v2718 = vpop.f32.mrb[0].mxu0
  %2719 = vmatprep.mubr.bf16.mxu0 0
  %2720 = vmatmul.mubr.bf16.gmra.mrb[0].mxu0 %v1785
  %v2721 = vpop.f32.mrb[0].mxu0
  %v2722 = vadd.f32 0.0, %v2721
  %v2723 = vpop.f32.mrb[0].mxu0
  %v2724 = vpop.f32.mrb[0].mxu0
  %v2725 = vadd.f32 0.0, %v2724
  %v2726 = vpop.f32.mrb[0].mxu0
  %2727 = vmatprep.mubr.bf16.mxu0 0
  %2728 = vmatmul.mubr.bf16.gmra.mrb[0].mxu0 %v1788
  %v2729 = vpop.f32.mrb[0].mxu0
  %v2730 = vadd.f32 0.0, %v2729
  %v2731 = vpop.f32.mrb[0].mxu0
  %v2732 = vpop.f32.mrb[0].mxu0
  %v2733 = vadd.f32 0.0, %v2732
  %v2734 = vpop.f32.mrb[0].mxu0
  %2735 = vmatprep.mubr.bf16.mxu0 0
  %2736 = vmatmul.mubr.bf16.gmra.mrb[0].mxu0 %v1791
  %v2737 = vpop.f32.mrb[0].mxu0
  %v2738 = vadd.f32 0.0, %v2737
  %v2739 = vpop.f32.mrb[0].mxu0
  %v2740 = vpop.f32.mrb[0].mxu0
  %v2741 = vadd.f32 0.0, %v2740
  %v2742 = vpop.f32.mrb[0].mxu0
  %2743 = vmatprep.mubr.bf16.mxu0 0
  %2744 = vmatmul.mubr.bf16.gmra.mrb[0].mxu0 %v1794
  %v2745 = vpop.f32.mrb[0].mxu0
  %v2746 = vadd.f32 0.0, %v2745
  %v2747 = vpop.f32.mrb[0].mxu0
  %v2748 = vpop.f32.mrb[0].mxu0
  %v2749 = vadd.f32 0.0, %v2748
  %v2750 = vpop.f32.mrb[0].mxu0
  %2751 = vmatprep.mubr.bf16.mxu0 0
  %2752 = vmatmul.mubr.bf16.gmra.mrb[0].mxu0 %v1797
  %v2753 = vpop.f32.mrb[0].mxu0
  %v2754 = vadd.f32 0.0, %v2753
  %v2755 = vpop.f32.mrb[0].mxu0
  %v2756 = vpop.f32.mrb[0].mxu0
  %v2757 = vadd.f32 0.0, %v2756
  %v2758 = vpop.f32.mrb[0].mxu0
  %2759 = vmatprep.mubr.bf16.mxu0 0
  %2760 = vmatmul.mubr.bf16.gmra.mrb[0].mxu0 %v1800
  %v2761 = vpop.f32.mrb[0].mxu0
  %v2762 = vadd.f32 0.0, %v2761
  %v2763 = vpop.f32.mrb[0].mxu0
  %v2764 = vpop.f32.mrb[0].mxu0
  %v2765 = vadd.f32 0.0, %v2764
  %v2766 = vpop.f32.mrb[0].mxu0
  %2767 = vmatprep.mubr.bf16.mxu0 0
  %2768 = vmatmul.mubr.bf16.gmra.mrb[0].mxu0 %v1803
  %v2769 = vpop.f32.mrb[0].mxu0
  %v2770 = vadd.f32 0.0, %v2769
  %v2771 = vpop.f32.mrb[0].mxu0
  %v2772 = vpop.f32.mrb[0].mxu0
  %v2773 = vadd.f32 0.0, %v2772
  %v2774 = vpop.f32.mrb[0].mxu0
  %2775 = vmatprep.mubr.bf16.mxu0 0
  %2776 = vmatmul.mubr.bf16.gmra.mrb[0].mxu0 %v1806
  %v2777 = vpop.f32.mrb[0].mxu0
  %v2778 = vadd.f32 0.0, %v2777
  %v2779 = vpop.f32.mrb[0].mxu0
  %v2780 = vpop.f32.mrb[0].mxu0
  %v2781 = vadd.f32 0.0, %v2780
  %v2782 = vpop.f32.mrb[0].mxu0
  %2783 = vdwg.mxu0
  %v2784 = vrot.slane %v2618, 4
  %v2785 = vadd.f32 %v2618, %v2784
  %v2786 = vrot.slane %v2785, 2
  %v2787 = vadd.f32 %v2785, %v2786
  %v2788 = vrot.slane %v2787, 1
  %v2789 = vadd.f32 %v2787, %v2788
  %v2790 = vmul.f32 %v2658, 0.4
  %v2791 = vmul.f32 %v2661, 0.4
  %v2792 = vmul.f32 %v2666, 0.4
  %v2793 = vmul.f32 %v2669, 0.4
  %v2794 = vmul.f32 %v2674, 0.4
  %v2795 = vmul.f32 %v2677, 0.4
  %v2796 = vmul.f32 %v2682, 0.4
  %v2797 = vmul.f32 %v2685, 0.4
  %v2798 = vmul.f32 %v2690, 0.4
  %v2799 = vmul.f32 %v2693, 0.4
  %v2800 = vmul.f32 %v2698, 0.4
  %v2801 = vmul.f32 %v2701, 0.4
  %v2802 = vmul.f32 %v2706, 0.4
  %v2803 = vmul.f32 %v2709, 0.4
  %v2804 = vmul.f32 %v2714, 0.4
  %v2805 = vmul.f32 %v2717, 0.4
  %v2806 = vmul.f32 %v2722, 0.4
  %v2807 = vmul.f32 %v2725, 0.4
  %v2808 = vmul.f32 %v2730, 0.4
  %v2809 = vmul.f32 %v2733, 0.4
  %v2810 = vmul.f32 %v2738, 0.4
  %v2811 = vmul.f32 %v2741, 0.4
  %v2812 = vmul.f32 %v2746, 0.4
  %v2813 = vmul.f32 %v2749, 0.4
  %v2814 = vmul.f32 %v2754, 0.4
  %v2815 = vmul.f32 %v2757, 0.4
  %v2816 = vmul.f32 %v2762, 0.4
  %v2817 = vmul.f32 %v2765, 0.4
  %v2818 = vmul.f32 %v2770, 0.4
  %v2819 = vmul.f32 %v2773, 0.4
  %v2820 = vmul.f32 %v2778, 0.4
  %v2821 = vmul.f32 %v2781, 0.4
  %v2822 = vsub.f32 %v2416, %v2790
  %v2823 = vsub.f32 %v2417, %v2791
  %v2824 = vsub.f32 %v2418, %v2792
  %v2825 = vsub.f32 %v2419, %v2793
  %v2826 = vsub.f32 %v2420, %v2794
  %v2827 = vsub.f32 %v2421, %v2795
  %v2828 = vsub.f32 %v2422, %v2796
  %v2829 = vsub.f32 %v2423, %v2797
  %v2830 = vsub.f32 %v2424, %v2798
  %v2831 = vsub.f32 %v2425, %v2799
  %v2832 = vsub.f32 %v2426, %v2800
  %v2833 = vsub.f32 %v2427, %v2801
  %v2834 = vsub.f32 %v2428, %v2802
  %v2835 = vsub.f32 %v2429, %v2803
  %v2836 = vsub.f32 %v2430, %v2804
  %v2837 = vsub.f32 %v2431, %v2805
  %v2838 = vsub.f32 %v2432, %v2806
  %v2839 = vsub.f32 %v2433, %v2807
  %v2840 = vsub.f32 %v2434, %v2808
  %v2841 = vsub.f32 %v2435, %v2809
  %v2842 = vsub.f32 %v2436, %v2810
  %v2843 = vsub.f32 %v2437, %v2811
  %v2844 = vsub.f32 %v2438, %v2812
  %v2845 = vsub.f32 %v2439, %v2813
  %v2846 = vsub.f32 %v2440, %v2814
  %v2847 = vsub.f32 %v2441, %v2815
  %v2848 = vsub.f32 %v2442, %v2816
  %v2849 = vsub.f32 %v2443, %v2817
  %v2850 = vsub.f32 %v2444, %v2818
  %v2851 = vsub.f32 %v2445, %v2819
  %v2852 = vsub.f32 %v2446, %v2820
  %v2853 = vsub.f32 %v2447, %v2821
  %v2854 = vmul.f32 %v2789, 0.4
  %v2855 = vsub.f32 %v2449, %v2854
  %v2856 = vpack.c.bf16 %v2823, %v2822
  %v2857 = vpack.c.bf16 %v2825, %v2824
  %v2858 = vpack.c.bf16 %v2827, %v2826
  %v2859 = vpack.c.bf16 %v2829, %v2828
  %v2860 = vpack.c.bf16 %v2831, %v2830
  %v2861 = vpack.c.bf16 %v2833, %v2832
  %v2862 = vpack.c.bf16 %v2835, %v2834
  %v2863 = vpack.c.bf16 %v2837, %v2836
  %v2864 = vpack.c.bf16 %v2839, %v2838
  %v2865 = vpack.c.bf16 %v2841, %v2840
  %v2866 = vpack.c.bf16 %v2843, %v2842
  %v2867 = vpack.c.bf16 %v2845, %v2844
  %v2868 = vpack.c.bf16 %v2847, %v2846
  %v2869 = vpack.c.bf16 %v2849, %v2848
  %v2870 = vpack.c.bf16 %v2851, %v2850
  %v2871 = vpack.c.bf16 %v2853, %v2852
  %v2873 = vlaneseq
  %v2874 = vshrl.u32 %v2873, 7
  %v2875 = vsub.s32 0, %v2874
  %v2876 = vrot.slane %v2855, %v2875
  %2878 = vmatprep.subr.bf16.mxu0 0
  %2879 = vmatpush1.bf16.msra.mxu0 %v2856
  %2880 = vmatprep.subr.bf16.mxu0 0
  %2881 = vmatpush1.bf16.msra.mxu0 %v2857
  %2882 = vmatprep.subr.bf16.mxu0 0
  %2883 = vmatpush1.bf16.msra.mxu0 %v2858
  %2884 = vmatprep.subr.bf16.mxu0 0
  %2885 = vmatpush1.bf16.msra.mxu0 %v2859
  %2886 = vmatprep.subr.bf16.mxu0 0
  %2887 = vmatpush1.bf16.msra.mxu0 %v2860
  %2888 = vmatprep.subr.bf16.mxu0 0
  %2889 = vmatpush1.bf16.msra.mxu0 %v2861
  %2890 = vmatprep.subr.bf16.mxu0 0
  %2891 = vmatpush1.bf16.msra.mxu0 %v2862
  %2892 = vmatprep.subr.bf16.mxu0 0
  %2893 = vmatpush1.bf16.msra.mxu0 %v2863
  %2894 = vmatprep.subr.bf16.mxu0 0
  %2895 = vmatpush1.bf16.msra.mxu0 %v2864
  %2896 = vmatprep.subr.bf16.mxu0 0
  %2897 = vmatpush1.bf16.msra.mxu0 %v2865
  %2898 = vmatprep.subr.bf16.mxu0 0
  %2899 = vmatpush1.bf16.msra.mxu0 %v2866
  %2900 = vmatprep.subr.bf16.mxu0 0
  %2901 = vmatpush1.bf16.msra.mxu0 %v2867
  %2902 = vmatprep.subr.bf16.mxu0 0
  %2903 = vmatpush1.bf16.msra.mxu0 %v2868
  %2904 = vmatprep.subr.bf16.mxu0 0
  %2905 = vmatpush1.bf16.msra.mxu0 %v2869
  %2906 = vmatprep.subr.bf16.mxu0 0
  %2907 = vmatpush1.bf16.msra.mxu0 %v2870
  %2908 = vmatprep.subr.bf16.mxu0 0
  %2909 = vmatpush1.bf16.msra.mxu0 %v2871
  %2910 = vmatprep.mubr.bf16.mxu0 %v1570
  %2911 = vmatmul.mubr.bf16.gmra.mrb[0].mxu0 %v1569
  %v2912 = vpop.f32.mrb[0].mxu0
  %v2913 = vadd.f32 %v2876, %v2912
  %v2914 = vpop.f32.mrb[0].mxu0
  %v2915 = vpop.f32.mrb[0].mxu0
  %v2916 = vpop.f32.mrb[0].mxu0
  %2917 = vdwg.mxu0
  %2918 = vmax.xlane.f32.xlu0 %v2913
  %v2919 = vpop.xlane.xlu0 %2918
  %v2920 = vsub.f32 %v2913, %v2919
  %v2921 = vmul.f32 %v2920, 1.442695
  %v2922 = vpow.pop %v2921
  %2923 = vadd.xlane.f32.xlu0 %v2922
  %v2924 = vpop.xlane.xlu0 %2923
  %v2925 = vlog2.pop %v2924
  %v2926 = vmul.f32 %v2925, 0.6931472
  %v2927 = vadd.f32 %v2919, %v2926
  %v2928 = vmul.f32 %v1561, %v2913
  %2929 = vadd.xlane.f32.xlu0 %v2928
  %v2930 = vpop.xlane.xlu0 %2929
  %v2931 = vsub.f32 %v2927, %v2930
  %v2932 = vsel %vm192, %v2931, 0.0
  %2933 = vadd.xlane.f32.xlu0 %v2932
  %v2934 = vpop.xlane.xlu0 %2933
  %v2935 = vrot.slane %v2934, 4
  %v2936 = vadd.f32 %v2934, %v2935
  %v2937 = vrot.slane %v2936, 2
  %v2938 = vadd.f32 %v2936, %v2937
  %v2939 = vrot.slane %v2938, 1
  %v2940 = vadd.f32 %v2938, %v2939
  %s2941 = vtos %v2940
  %s2942 = smul.f32 %s2941, 0.125
  %vm2943 = vcmp.eq.f32.partialorder %v2913, %v2919
  %v2944 = vsel %vm2943, %v115, 128
  %v2945 = vand.u32 %v2944, 65535
  %v2946 = vshra.s32 %v2944, 16
  %v2947 = vcvt.s32.f32 %v2945
  %v2948 = vcvt.s32.f32 %v2946
  %2949 = vmin.xlane.f32.xlu0 %v2948
  %v2950 = vpop.xlane.xlu0 %2949
  %vm2951 = vcmp.eq.f32.partialorder %v2948, %v2950
  %v2952 = vsel %vm2951, %v2947, inf
  %2953 = vmin.xlane.f32.xlu0 %v2952
  %v2954 = vpop.xlane.xlu0 %2953
  %v2955 = vcvt.f32.s32 %v2954
  %v2956 = vcvt.f32.s32 %v2950
  %v2957 = vshll.u32 %v2956, 16
  %v2958 = vadd.s32 %v2957, %v2955
  %vm2959 = vcmp.eq.s32.totalorder %v2958, %v1565
  %v2960 = vsel %vm2959, 1, 0
  %v2961 = vcvt.s32.f32 %v2960
  %v2962 = vsel %vm192, %v2961, 0.0
  %2963 = vadd.xlane.f32.xlu0 %v2962
  %v2964 = vpop.xlane.xlu0 %2963
  %v2965 = vrot.slane %v2964, 4
  %v2966 = vadd.f32 %v2964, %v2965
  %v2967 = vrot.slane %v2966, 2
  %v2968 = vadd.f32 %v2966, %v2967
  %v2969 = vrot.slane %v2968, 1
  %v2970 = vadd.f32 %v2968, %v2969
  %s2971 = vtos %v2970
  %s2972 = sadd.f32 %s1540, %s2942
  %s2973 = sadd.f32 %s1541, %s2971
  %v2974 = vrcp.pop %v2924
  %v2975 = vmul.f32 %v2922, %v2974
  %v2976 = vsub.f32 %v2975, %v1561
  %v2977 = vmul.f32 %v2976, 0.125
  %v2978 = vpack.c.bf16 %v2977, %v2977
  %2979 = vxpose.xlu0.c.b16.start [1/8] %v1569, 128
  %2980 = vxpose.xlu0.c.b16.cont [2/8] 0, 128
  %2981 = vxpose.xlu0.c.b16.cont [3/8] 0, 128
  %2982 = vxpose.xlu0.c.b16.cont [4/8] 0, 128
  %2983 = vxpose.xlu0.c.b16.cont [5/8] 0, 128
  %2984 = vxpose.xlu0.c.b16.cont [6/8] 0, 128
  %2985 = vxpose.xlu0.c.b16.cont [7/8] 0, 128
  %2986 = vxpose.xlu0.c.b16.end [8/8] 0, 128
  %v2987 = vpop.trf.xlu0
  %v2988 = vpop.trf.xlu0
  %v2989 = vpop.trf.xlu0
  %v2990 = vpop.trf.xlu0
  %v2991 = vpop.trf.xlu0
  %v2992 = vpop.trf.xlu0
  %v2993 = vpop.trf.xlu0
  %v2994 = vpop.trf.xlu0
  %2995 = vxpose.xlu0.c.b16.start [1/8] %v1570, 128
  %2996 = vxpose.xlu0.c.b16.cont [2/8] 0, 128
  %2997 = vxpose.xlu0.c.b16.cont [3/8] 0, 128
  %2998 = vxpose.xlu0.c.b16.cont [4/8] 0, 128
  %2999 = vxpose.xlu0.c.b16.cont [5/8] 0, 128
  %3000 = vxpose.xlu0.c.b16.cont [6/8] 0, 128
  %3001 = vxpose.xlu0.c.b16.cont [7/8] 0, 128
  %3002 = vxpose.xlu0.c.b16.end [8/8] 0, 128
  %v3003 = vpop.trf.xlu0
  %v3004 = vpop.trf.xlu0
  %v3005 = vpop.trf.xlu0
  %v3006 = vpop.trf.xlu0
  %v3007 = vpop.trf.xlu0
  %v3008 = vpop.trf.xlu0
  %v3009 = vpop.trf.xlu0
  %v3010 = vpop.trf.xlu0
  %v3012 = vsel %vm326, %v2987, 0
  %v3015 = vsel %vm326, %v2988, 0
  %v3018 = vsel %vm326, %v2989, 0
  %v3021 = vsel %vm326, %v2990, 0
  %v3024 = vsel %vm326, %v2991, 0
  %v3027 = vsel %vm326, %v2992, 0
  %v3030 = vsel %vm326, %v2993, 0
  %v3033 = vsel %vm326, %v2994, 0
  %v3036 = vsel %vm326, %v3003, 0
  %v3039 = vsel %vm326, %v3004, 0
  %v3042 = vsel %vm326, %v3005, 0
  %v3045 = vsel %vm326, %v3006, 0
  %v3048 = vsel %vm326, %v3007, 0
  %v3051 = vsel %vm326, %v3008, 0
  %v3054 = vsel %vm326, %v3009, 0
  %v3057 = vsel %vm326, %v3010, 0
  %v3060 = vsel %vm375, %v2978, 0
  %3062 = vmatprep.subr.bf16.mxu0 0
  %3063 = vmatpush1.bf16.msra.mxu0 %v3060
  %3064 = vmatprep.subr.bf16.mxu0 0
  %3065 = vmatpush1.bf16.msra.mxu0 0
  %3066 = vmatprep.subr.bf16.mxu0 0
  %3067 = vmatpush1.bf16.msra.mxu0 0
  %3068 = vmatprep.subr.bf16.mxu0 0
  %3069 = vmatpush1.bf16.msra.mxu0 0
  %3070 = vmatprep.subr.bf16.mxu0 0
  %3071 = vmatpush1.bf16.msra.mxu0 0
  %3072 = vmatprep.subr.bf16.mxu0 0
  %3073 = vmatpush1.bf16.msra.mxu0 0
  %3074 = vmatprep.subr.bf16.mxu0 0
  %3075 = vmatpush1.bf16.msra.mxu0 0
  %3076 = vmatprep.subr.bf16.mxu0 0
  %3077 = vmatpush1.bf16.msra.mxu0 0
  %3078 = vmatprep.subr.bf16.mxu0 0
  %3079 = vmatpush1.bf16.msra.mxu0 0
  %3080 = vmatprep.subr.bf16.mxu0 0
  %3081 = vmatpush1.bf16.msra.mxu0 0
  %3082 = vmatprep.subr.bf16.mxu0 0
  %3083 = vmatpush1.bf16.msra.mxu0 0
  %3084 = vmatprep.subr.bf16.mxu0 0
  %3085 = vmatpush1.bf16.msra.mxu0 0
  %3086 = vmatprep.subr.bf16.mxu0 0
  %3087 = vmatpush1.bf16.msra.mxu0 0
  %3088 = vmatprep.subr.bf16.mxu0 0
  %3089 = vmatpush1.bf16.msra.mxu0 0
  %3090 = vmatprep.subr.bf16.mxu0 0
  %3091 = vmatpush1.bf16.msra.mxu0 0
  %3092 = vmatprep.subr.bf16.mxu0 0
  %3093 = vmatpush1.bf16.msra.mxu0 0
  %3094 = vmatprep.mubr.bf16.mxu0 0
  %3095 = vmatmul.mubr.bf16.gmra.mrb[0].mxu0 %v3012
  %v3096 = vpop.f32.mrb[0].mxu0
  %v3097 = vadd.f32 0.0, %v3096
  %v3098 = vpop.f32.mrb[0].mxu0
  %v3099 = vpop.f32.mrb[0].mxu0
  %v3100 = vadd.f32 0.0, %v3099
  %v3101 = vpop.f32.mrb[0].mxu0
  %3102 = vmatprep.mubr.bf16.mxu0 0
  %3103 = vmatmul.mubr.bf16.gmra.mrb[0].mxu0 %v3015
  %v3104 = vpop.f32.mrb[0].mxu0
  %v3105 = vadd.f32 0.0, %v3104
  %v3106 = vpop.f32.mrb[0].mxu0
  %v3107 = vpop.f32.mrb[0].mxu0
  %v3108 = vadd.f32 0.0, %v3107
  %v3109 = vpop.f32.mrb[0].mxu0
  %3110 = vmatprep.mubr.bf16.mxu0 0
  %3111 = vmatmul.mubr.bf16.gmra.mrb[0].mxu0 %v3018
  %v3112 = vpop.f32.mrb[0].mxu0
  %v3113 = vadd.f32 0.0, %v3112
  %v3114 = vpop.f32.mrb[0].mxu0
  %v3115 = vpop.f32.mrb[0].mxu0
  %v3116 = vadd.f32 0.0, %v3115
  %v3117 = vpop.f32.mrb[0].mxu0
  %3118 = vmatprep.mubr.bf16.mxu0 0
  %3119 = vmatmul.mubr.bf16.gmra.mrb[0].mxu0 %v3021
  %v3120 = vpop.f32.mrb[0].mxu0
  %v3121 = vadd.f32 0.0, %v3120
  %v3122 = vpop.f32.mrb[0].mxu0
  %v3123 = vpop.f32.mrb[0].mxu0
  %v3124 = vadd.f32 0.0, %v3123
  %v3125 = vpop.f32.mrb[0].mxu0
  %3126 = vmatprep.mubr.bf16.mxu0 0
  %3127 = vmatmul.mubr.bf16.gmra.mrb[0].mxu0 %v3024
  %v3128 = vpop.f32.mrb[0].mxu0
  %v3129 = vadd.f32 0.0, %v3128
  %v3130 = vpop.f32.mrb[0].mxu0
  %v3131 = vpop.f32.mrb[0].mxu0
  %v3132 = vadd.f32 0.0, %v3131
  %v3133 = vpop.f32.mrb[0].mxu0
  %3134 = vmatprep.mubr.bf16.mxu0 0
  %3135 = vmatmul.mubr.bf16.gmra.mrb[0].mxu0 %v3027
  %v3136 = vpop.f32.mrb[0].mxu0
  %v3137 = vadd.f32 0.0, %v3136
  %v3138 = vpop.f32.mrb[0].mxu0
  %v3139 = vpop.f32.mrb[0].mxu0
  %v3140 = vadd.f32 0.0, %v3139
  %v3141 = vpop.f32.mrb[0].mxu0
  %3142 = vmatprep.mubr.bf16.mxu0 0
  %3143 = vmatmul.mubr.bf16.gmra.mrb[0].mxu0 %v3030
  %v3144 = vpop.f32.mrb[0].mxu0
  %v3145 = vadd.f32 0.0, %v3144
  %v3146 = vpop.f32.mrb[0].mxu0
  %v3147 = vpop.f32.mrb[0].mxu0
  %v3148 = vadd.f32 0.0, %v3147
  %v3149 = vpop.f32.mrb[0].mxu0
  %3150 = vmatprep.mubr.bf16.mxu0 0
  %3151 = vmatmul.mubr.bf16.gmra.mrb[0].mxu0 %v3033
  %v3152 = vpop.f32.mrb[0].mxu0
  %v3153 = vadd.f32 0.0, %v3152
  %v3154 = vpop.f32.mrb[0].mxu0
  %v3155 = vpop.f32.mrb[0].mxu0
  %v3156 = vadd.f32 0.0, %v3155
  %v3157 = vpop.f32.mrb[0].mxu0
  %3158 = vmatprep.mubr.bf16.mxu0 0
  %3159 = vmatmul.mubr.bf16.gmra.mrb[0].mxu0 %v3036
  %v3160 = vpop.f32.mrb[0].mxu0
  %v3161 = vadd.f32 0.0, %v3160
  %v3162 = vpop.f32.mrb[0].mxu0
  %v3163 = vpop.f32.mrb[0].mxu0
  %v3164 = vadd.f32 0.0, %v3163
  %v3165 = vpop.f32.mrb[0].mxu0
  %3166 = vmatprep.mubr.bf16.mxu0 0
  %3167 = vmatmul.mubr.bf16.gmra.mrb[0].mxu0 %v3039
  %v3168 = vpop.f32.mrb[0].mxu0
  %v3169 = vadd.f32 0.0, %v3168
  %v3170 = vpop.f32.mrb[0].mxu0
  %v3171 = vpop.f32.mrb[0].mxu0
  %v3172 = vadd.f32 0.0, %v3171
  %v3173 = vpop.f32.mrb[0].mxu0
  %3174 = vmatprep.mubr.bf16.mxu0 0
  %3175 = vmatmul.mubr.bf16.gmra.mrb[0].mxu0 %v3042
  %v3176 = vpop.f32.mrb[0].mxu0
  %v3177 = vadd.f32 0.0, %v3176
  %v3178 = vpop.f32.mrb[0].mxu0
  %v3179 = vpop.f32.mrb[0].mxu0
  %v3180 = vadd.f32 0.0, %v3179
  %v3181 = vpop.f32.mrb[0].mxu0
  %3182 = vmatprep.mubr.bf16.mxu0 0
  %3183 = vmatmul.mubr.bf16.gmra.mrb[0].mxu0 %v3045
  %v3184 = vpop.f32.mrb[0].mxu0
  %v3185 = vadd.f32 0.0, %v3184
  %v3186 = vpop.f32.mrb[0].mxu0
  %v3187 = vpop.f32.mrb[0].mxu0
  %v3188 = vadd.f32 0.0, %v3187
  %v3189 = vpop.f32.mrb[0].mxu0
  %3190 = vmatprep.mubr.bf16.mxu0 0
  %3191 = vmatmul.mubr.bf16.gmra.mrb[0].mxu0 %v3048
  %v3192 = vpop.f32.mrb[0].mxu0
  %v3193 = vadd.f32 0.0, %v3192
  %v3194 = vpop.f32.mrb[0].mxu0
  %v3195 = vpop.f32.mrb[0].mxu0
  %v3196 = vadd.f32 0.0, %v3195
  %v3197 = vpop.f32.mrb[0].mxu0
  %3198 = vmatprep.mubr.bf16.mxu0 0
  %3199 = vmatmul.mubr.bf16.gmra.mrb[0].mxu0 %v3051
  %v3200 = vpop.f32.mrb[0].mxu0
  %v3201 = vadd.f32 0.0, %v3200
  %v3202 = vpop.f32.mrb[0].mxu0
  %v3203 = vpop.f32.mrb[0].mxu0
  %v3204 = vadd.f32 0.0, %v3203
  %v3205 = vpop.f32.mrb[0].mxu0
  %3206 = vmatprep.mubr.bf16.mxu0 0
  %3207 = vmatmul.mubr.bf16.gmra.mrb[0].mxu0 %v3054
  %v3208 = vpop.f32.mrb[0].mxu0
  %v3209 = vadd.f32 0.0, %v3208
  %v3210 = vpop.f32.mrb[0].mxu0
  %v3211 = vpop.f32.mrb[0].mxu0
  %v3212 = vadd.f32 0.0, %v3211
  %v3213 = vpop.f32.mrb[0].mxu0
  %3214 = vmatprep.mubr.bf16.mxu0 0
  %3215 = vmatmul.mubr.bf16.gmra.mrb[0].mxu0 %v3057
  %v3216 = vpop.f32.mrb[0].mxu0
  %v3217 = vadd.f32 0.0, %v3216
  %v3218 = vpop.f32.mrb[0].mxu0
  %v3219 = vpop.f32.mrb[0].mxu0
  %v3220 = vadd.f32 0.0, %v3219
  %v3221 = vpop.f32.mrb[0].mxu0
  %3222 = vdwg.mxu0
  %v3223 = vrot.slane %v2977, 4
  %v3224 = vadd.f32 %v2977, %v3223
  %v3225 = vrot.slane %v3224, 2
  %v3226 = vadd.f32 %v3224, %v3225
  %v3227 = vrot.slane %v3226, 1
  %v3228 = vadd.f32 %v3226, %v3227
  %3229 = vxpose.xlu0.c.b16.start [1/8] %v134, 128
  %3230 = vxpose.xlu0.c.b16.cont [2/8] 0, 128
  %3231 = vxpose.xlu0.c.b16.cont [3/8] 0, 128
  %3232 = vxpose.xlu0.c.b16.cont [4/8] 0, 128
  %3233 = vxpose.xlu0.c.b16.cont [5/8] 0, 128
  %3234 = vxpose.xlu0.c.b16.cont [6/8] 0, 128
  %3235 = vxpose.xlu0.c.b16.cont [7/8] 0, 128
  %3236 = vxpose.xlu0.c.b16.end [8/8] 0, 128
  %v3237 = vpop.trf.xlu0
  %v3238 = vpop.trf.xlu0
  %v3239 = vpop.trf.xlu0
  %v3240 = vpop.trf.xlu0
  %v3241 = vpop.trf.xlu0
  %v3242 = vpop.trf.xlu0
  %v3243 = vpop.trf.xlu0
  %v3244 = vpop.trf.xlu0
  %3245 = vxpose.xlu0.c.b16.start [1/8] %v135, 128
  %3246 = vxpose.xlu0.c.b16.cont [2/8] 0, 128
  %3247 = vxpose.xlu0.c.b16.cont [3/8] 0, 128
  %3248 = vxpose.xlu0.c.b16.cont [4/8] 0, 128
  %3249 = vxpose.xlu0.c.b16.cont [5/8] 0, 128
  %3250 = vxpose.xlu0.c.b16.cont [6/8] 0, 128
  %3251 = vxpose.xlu0.c.b16.cont [7/8] 0, 128
  %3252 = vxpose.xlu0.c.b16.end [8/8] 0, 128
  %v3253 = vpop.trf.xlu0
  %v3254 = vpop.trf.xlu0
  %v3255 = vpop.trf.xlu0
  %v3256 = vpop.trf.xlu0
  %v3257 = vpop.trf.xlu0
  %v3258 = vpop.trf.xlu0
  %v3259 = vpop.trf.xlu0
  %v3260 = vpop.trf.xlu0
  %v3262 = vsel %vm326, %v3237, 0
  %v3265 = vsel %vm326, %v3238, 0
  %v3268 = vsel %vm326, %v3239, 0
  %v3271 = vsel %vm326, %v3240, 0
  %v3274 = vsel %vm326, %v3241, 0
  %v3277 = vsel %vm326, %v3242, 0
  %v3280 = vsel %vm326, %v3243, 0
  %v3283 = vsel %vm326, %v3244, 0
  %v3286 = vsel %vm326, %v3253, 0
  %v3289 = vsel %vm326, %v3254, 0
  %v3292 = vsel %vm326, %v3255, 0
  %v3295 = vsel %vm326, %v3256, 0
  %v3298 = vsel %vm326, %v3257, 0
  %v3301 = vsel %vm326, %v3258, 0
  %v3304 = vsel %vm326, %v3259, 0
  %v3307 = vsel %vm326, %v3260, 0
  %v3310 = vsel %vm375, %v1546, 0
  %3312 = vmatprep.subr.bf16.mxu0 0
  %3313 = vmatpush1.bf16.msra.mxu0 %v3310
  %3314 = vmatprep.subr.bf16.mxu0 0
  %3315 = vmatpush1.bf16.msra.mxu0 0
  %3316 = vmatprep.subr.bf16.mxu0 0
  %3317 = vmatpush1.bf16.msra.mxu0 0
  %3318 = vmatprep.subr.bf16.mxu0 0
  %3319 = vmatpush1.bf16.msra.mxu0 0
  %3320 = vmatprep.subr.bf16.mxu0 0
  %3321 = vmatpush1.bf16.msra.mxu0 0
  %3322 = vmatprep.subr.bf16.mxu0 0
  %3323 = vmatpush1.bf16.msra.mxu0 0
  %3324 = vmatprep.subr.bf16.mxu0 0
  %3325 = vmatpush1.bf16.msra.mxu0 0
  %3326 = vmatprep.subr.bf16.mxu0 0
  %3327 = vmatpush1.bf16.msra.mxu0 0
  %3328 = vmatprep.subr.bf16.mxu0 0
  %3329 = vmatpush1.bf16.msra.mxu0 0
  %3330 = vmatprep.subr.bf16.mxu0 0
  %3331 = vmatpush1.bf16.msra.mxu0 0
  %3332 = vmatprep.subr.bf16.mxu0 0
  %3333 = vmatpush1.bf16.msra.mxu0 0
  %3334 = vmatprep.subr.bf16.mxu0 0
  %3335 = vmatpush1.bf16.msra.mxu0 0
  %3336 = vmatprep.subr.bf16.mxu0 0
  %3337 = vmatpush1.bf16.msra.mxu0 0
  %3338 = vmatprep.subr.bf16.mxu0 0
  %3339 = vmatpush1.bf16.msra.mxu0 0
  %3340 = vmatprep.subr.bf16.mxu0 0
  %3341 = vmatpush1.bf16.msra.mxu0 0
  %3342 = vmatprep.subr.bf16.mxu0 0
  %3343 = vmatpush1.bf16.msra.mxu0 0
  %3344 = vmatprep.mubr.bf16.mxu0 0
  %3345 = vmatmul.mubr.bf16.gmra.mrb[0].mxu0 %v3262
  %v3346 = vpop.f32.mrb[0].mxu0
  %v3347 = vadd.f32 %v3097, %v3346
  %v3348 = vpop.f32.mrb[0].mxu0
  %v3349 = vpop.f32.mrb[0].mxu0
  %v3350 = vadd.f32 %v3100, %v3349
  %v3351 = vpop.f32.mrb[0].mxu0
  %3352 = vmatprep.mubr.bf16.mxu0 0
  %3353 = vmatmul.mubr.bf16.gmra.mrb[0].mxu0 %v3265
  %v3354 = vpop.f32.mrb[0].mxu0
  %v3355 = vadd.f32 %v3105, %v3354
  %v3356 = vpop.f32.mrb[0].mxu0
  %v3357 = vpop.f32.mrb[0].mxu0
  %v3358 = vadd.f32 %v3108, %v3357
  %v3359 = vpop.f32.mrb[0].mxu0
  %3360 = vmatprep.mubr.bf16.mxu0 0
  %3361 = vmatmul.mubr.bf16.gmra.mrb[0].mxu0 %v3268
  %v3362 = vpop.f32.mrb[0].mxu0
  %v3363 = vadd.f32 %v3113, %v3362
  %v3364 = vpop.f32.mrb[0].mxu0
  %v3365 = vpop.f32.mrb[0].mxu0
  %v3366 = vadd.f32 %v3116, %v3365
  %v3367 = vpop.f32.mrb[0].mxu0
  %3368 = vmatprep.mubr.bf16.mxu0 0
  %3369 = vmatmul.mubr.bf16.gmra.mrb[0].mxu0 %v3271
  %v3370 = vpop.f32.mrb[0].mxu0
  %v3371 = vadd.f32 %v3121, %v3370
  %v3372 = vpop.f32.mrb[0].mxu0
  %v3373 = vpop.f32.mrb[0].mxu0
  %v3374 = vadd.f32 %v3124, %v3373
  %v3375 = vpop.f32.mrb[0].mxu0
  %3376 = vmatprep.mubr.bf16.mxu0 0
  %3377 = vmatmul.mubr.bf16.gmra.mrb[0].mxu0 %v3274
  %v3378 = vpop.f32.mrb[0].mxu0
  %v3379 = vadd.f32 %v3129, %v3378
  %v3380 = vpop.f32.mrb[0].mxu0
  %v3381 = vpop.f32.mrb[0].mxu0
  %v3382 = vadd.f32 %v3132, %v3381
  %v3383 = vpop.f32.mrb[0].mxu0
  %3384 = vmatprep.mubr.bf16.mxu0 0
  %3385 = vmatmul.mubr.bf16.gmra.mrb[0].mxu0 %v3277
  %v3386 = vpop.f32.mrb[0].mxu0
  %v3387 = vadd.f32 %v3137, %v3386
  %v3388 = vpop.f32.mrb[0].mxu0
  %v3389 = vpop.f32.mrb[0].mxu0
  %v3390 = vadd.f32 %v3140, %v3389
  %v3391 = vpop.f32.mrb[0].mxu0
  %3392 = vmatprep.mubr.bf16.mxu0 0
  %3393 = vmatmul.mubr.bf16.gmra.mrb[0].mxu0 %v3280
  %v3394 = vpop.f32.mrb[0].mxu0
  %v3395 = vadd.f32 %v3145, %v3394
  %v3396 = vpop.f32.mrb[0].mxu0
  %v3397 = vpop.f32.mrb[0].mxu0
  %v3398 = vadd.f32 %v3148, %v3397
  %v3399 = vpop.f32.mrb[0].mxu0
  %3400 = vmatprep.mubr.bf16.mxu0 0
  %3401 = vmatmul.mubr.bf16.gmra.mrb[0].mxu0 %v3283
  %v3402 = vpop.f32.mrb[0].mxu0
  %v3403 = vadd.f32 %v3153, %v3402
  %v3404 = vpop.f32.mrb[0].mxu0
  %v3405 = vpop.f32.mrb[0].mxu0
  %v3406 = vadd.f32 %v3156, %v3405
  %v3407 = vpop.f32.mrb[0].mxu0
  %3408 = vmatprep.mubr.bf16.mxu0 0
  %3409 = vmatmul.mubr.bf16.gmra.mrb[0].mxu0 %v3286
  %v3410 = vpop.f32.mrb[0].mxu0
  %v3411 = vadd.f32 %v3161, %v3410
  %v3412 = vpop.f32.mrb[0].mxu0
  %v3413 = vpop.f32.mrb[0].mxu0
  %v3414 = vadd.f32 %v3164, %v3413
  %v3415 = vpop.f32.mrb[0].mxu0
  %3416 = vmatprep.mubr.bf16.mxu0 0
  %3417 = vmatmul.mubr.bf16.gmra.mrb[0].mxu0 %v3289
  %v3418 = vpop.f32.mrb[0].mxu0
  %v3419 = vadd.f32 %v3169, %v3418
  %v3420 = vpop.f32.mrb[0].mxu0
  %v3421 = vpop.f32.mrb[0].mxu0
  %v3422 = vadd.f32 %v3172, %v3421
  %v3423 = vpop.f32.mrb[0].mxu0
  %3424 = vmatprep.mubr.bf16.mxu0 0
  %3425 = vmatmul.mubr.bf16.gmra.mrb[0].mxu0 %v3292
  %v3426 = vpop.f32.mrb[0].mxu0
  %v3427 = vadd.f32 %v3177, %v3426
  %v3428 = vpop.f32.mrb[0].mxu0
  %v3429 = vpop.f32.mrb[0].mxu0
  %v3430 = vadd.f32 %v3180, %v3429
  %v3431 = vpop.f32.mrb[0].mxu0
  %3432 = vmatprep.mubr.bf16.mxu0 0
  %3433 = vmatmul.mubr.bf16.gmra.mrb[0].mxu0 %v3295
  %v3434 = vpop.f32.mrb[0].mxu0
  %v3435 = vadd.f32 %v3185, %v3434
  %v3436 = vpop.f32.mrb[0].mxu0
  %v3437 = vpop.f32.mrb[0].mxu0
  %v3438 = vadd.f32 %v3188, %v3437
  %v3439 = vpop.f32.mrb[0].mxu0
  %3440 = vmatprep.mubr.bf16.mxu0 0
  %3441 = vmatmul.mubr.bf16.gmra.mrb[0].mxu0 %v3298
  %v3442 = vpop.f32.mrb[0].mxu0
  %v3443 = vadd.f32 %v3193, %v3442
  %v3444 = vpop.f32.mrb[0].mxu0
  %v3445 = vpop.f32.mrb[0].mxu0
  %v3446 = vadd.f32 %v3196, %v3445
  %v3447 = vpop.f32.mrb[0].mxu0
  %3448 = vmatprep.mubr.bf16.mxu0 0
  %3449 = vmatmul.mubr.bf16.gmra.mrb[0].mxu0 %v3301
  %v3450 = vpop.f32.mrb[0].mxu0
  %v3451 = vadd.f32 %v3201, %v3450
  %v3452 = vpop.f32.mrb[0].mxu0
  %v3453 = vpop.f32.mrb[0].mxu0
  %v3454 = vadd.f32 %v3204, %v3453
  %v3455 = vpop.f32.mrb[0].mxu0
  %3456 = vmatprep.mubr.bf16.mxu0 0
  %3457 = vmatmul.mubr.bf16.gmra.mrb[0].mxu0 %v3304
  %v3458 = vpop.f32.mrb[0].mxu0
  %v3459 = vadd.f32 %v3209, %v3458
  %v3460 = vpop.f32.mrb[0].mxu0
  %v3461 = vpop.f32.mrb[0].mxu0
  %v3462 = vadd.f32 %v3212, %v3461
  %v3463 = vpop.f32.mrb[0].mxu0
  %3464 = vmatprep.mubr.bf16.mxu0 0
  %3465 = vmatmul.mubr.bf16.gmra.mrb[0].mxu0 %v3307
  %v3466 = vpop.f32.mrb[0].mxu0
  %v3467 = vadd.f32 %v3217, %v3466
  %v3468 = vpop.f32.mrb[0].mxu0
  %v3469 = vpop.f32.mrb[0].mxu0
  %v3470 = vadd.f32 %v3220, %v3469
  %v3471 = vpop.f32.mrb[0].mxu0
  %3472 = vdwg.mxu0
  %v3473 = vadd.f32 %v1553, %v3228
  %v3474 = vlaneseq
  %v3475 = vshrl.u32 %v3474, 7
  %vm3476 = vcmp.eq.s32.totalorder %v3475, 0
  %v3477 = vstv %s1667
  %v3478 = vstv %s1668
  %v3479 = vsel %vm3476, %v3477, %v3478
  %vm3480 = vcmp.eq.s32.totalorder %v115, 0
  %vm3481 = vcmp.lt.s32.totalorder %v3475, 2
  %vm3482 = vmand %vm3480, %vm3481
  %v3483 = vsel %vm3482, %v3479, 0.0
  %v3484 = vadd.f32 %v3483, 0.0
  %v3485 = vstv %s2160
  %v3486 = vstv %s2161
  %v3487 = vsel %vm3476, %v3485, %v3486
  %vm3488 = vcmp.eq.s32.totalorder %v115, 1
  %vm3489 = vmand %vm3488, %vm3481
  %v3490 = vsel %vm3489, %v3487, 0.0
  %v3491 = vadd.f32 %v3484, %v3490
  %v3492 = vstv %s2566
  %v3493 = vstv %s2567
  %v3494 = vsel %vm3476, %v3492, %v3493
  %vm3495 = vcmp.eq.s32.totalorder %v115, 2
  %vm3496 = vmand %vm3495, %vm3481
  %v3497 = vsel %vm3496, %v3494, 0.0
  %v3498 = vadd.f32 %v3491, %v3497
  %v3499 = vstv %s2972
  %v3500 = vstv %s2973
  %v3501 = vsel %vm3476, %v3499, %v3500
  %vm3502 = vcmp.eq.s32.totalorder %v115, 3
  %vm3503 = vmand %vm3502, %vm3481
  %v3504 = vsel %vm3503, %v3501, 0.0
  %v3505 = vadd.f32 %v3498, %v3504
  %v3506 = vld [vmem:[%s6] sm:$0xff]
  %v3507 = vadd.f32 %v3506, %v3505
  %3508 = vst [vmem:[%s6] sm:$0xff] %v3507
  %v3509 = vld [vmem:[%s7] sm:$0xff]
  %v3510 = vld [vmem:[%s7 + $0x8] sm:$0xff]
  %v3511 = vld [vmem:[%s7 + $0x10] sm:$0xff]
  %v3512 = vld [vmem:[%s7 + $0x18] sm:$0xff]
  %v3513 = vld [vmem:[%s7 + $0x20] sm:$0xff]
  %v3514 = vld [vmem:[%s7 + $0x28] sm:$0xff]
  %v3515 = vld [vmem:[%s7 + $0x30] sm:$0xff]
  %v3516 = vld [vmem:[%s7 + $0x38] sm:$0xff]
  %v3517 = vld [vmem:[%s7 + $0x40] sm:$0xff]
  %v3518 = vld [vmem:[%s7 + $0x48] sm:$0xff]
  %v3519 = vld [vmem:[%s7 + $0x50] sm:$0xff]
  %v3520 = vld [vmem:[%s7 + $0x58] sm:$0xff]
  %v3521 = vld [vmem:[%s7 + $0x60] sm:$0xff]
  %v3522 = vld [vmem:[%s7 + $0x68] sm:$0xff]
  %v3523 = vld [vmem:[%s7 + $0x70] sm:$0xff]
  %v3524 = vld [vmem:[%s7 + $0x78] sm:$0xff]
  %v3525 = vld [vmem:[%s7 + $0x80] sm:$0xff]
  %v3526 = vld [vmem:[%s7 + $0x88] sm:$0xff]
  %v3527 = vld [vmem:[%s7 + $0x90] sm:$0xff]
  %v3528 = vld [vmem:[%s7 + $0x98] sm:$0xff]
  %v3529 = vld [vmem:[%s7 + $0xa0] sm:$0xff]
  %v3530 = vld [vmem:[%s7 + $0xa8] sm:$0xff]
  %v3531 = vld [vmem:[%s7 + $0xb0] sm:$0xff]
  %v3532 = vld [vmem:[%s7 + $0xb8] sm:$0xff]
  %v3533 = vld [vmem:[%s7 + $0xc0] sm:$0xff]
  %v3534 = vld [vmem:[%s7 + $0xc8] sm:$0xff]
  %v3535 = vld [vmem:[%s7 + $0xd0] sm:$0xff]
  %v3536 = vld [vmem:[%s7 + $0xd8] sm:$0xff]
  %v3537 = vld [vmem:[%s7 + $0xe0] sm:$0xff]
  %v3538 = vld [vmem:[%s7 + $0xe8] sm:$0xff]
  %v3539 = vld [vmem:[%s7 + $0xf0] sm:$0xff]
  %v3540 = vld [vmem:[%s7 + $0xf8] sm:$0xff]
  %v3541 = vadd.f32 %v3509, %v3347
  %v3542 = vadd.f32 %v3510, %v3350
  %v3543 = vadd.f32 %v3511, %v3355
  %v3544 = vadd.f32 %v3512, %v3358
  %v3545 = vadd.f32 %v3513, %v3363
  %v3546 = vadd.f32 %v3514, %v3366
  %v3547 = vadd.f32 %v3515, %v3371
  %v3548 = vadd.f32 %v3516, %v3374
  %v3549 = vadd.f32 %v3517, %v3379
  %v3550 = vadd.f32 %v3518, %v3382
  %v3551 = vadd.f32 %v3519, %v3387
  %v3552 = vadd.f32 %v3520, %v3390
  %v3553 = vadd.f32 %v3521, %v3395
  %v3554 = vadd.f32 %v3522, %v3398
  %v3555 = vadd.f32 %v3523, %v3403
  %v3556 = vadd.f32 %v3524, %v3406
  %v3557 = vadd.f32 %v3525, %v3411
  %v3558 = vadd.f32 %v3526, %v3414
  %v3559 = vadd.f32 %v3527, %v3419
  %v3560 = vadd.f32 %v3528, %v3422
  %v3561 = vadd.f32 %v3529, %v3427
  %v3562 = vadd.f32 %v3530, %v3430
  %v3563 = vadd.f32 %v3531, %v3435
  %v3564 = vadd.f32 %v3532, %v3438
  %v3565 = vadd.f32 %v3533, %v3443
  %v3566 = vadd.f32 %v3534, %v3446
  %v3567 = vadd.f32 %v3535, %v3451
  %v3568 = vadd.f32 %v3536, %v3454
  %v3569 = vadd.f32 %v3537, %v3459
  %v3570 = vadd.f32 %v3538, %v3462
  %v3571 = vadd.f32 %v3539, %v3467
  %v3572 = vadd.f32 %v3540, %v3470
  %3573 = vst [vmem:[%s7] sm:$0xff] %v3541
  %3574 = vst [vmem:[%s7 + $0x8] sm:$0xff] %v3542
  %3575 = vst [vmem:[%s7 + $0x10] sm:$0xff] %v3543
  %3576 = vst [vmem:[%s7 + $0x18] sm:$0xff] %v3544
  %3577 = vst [vmem:[%s7 + $0x20] sm:$0xff] %v3545
  %3578 = vst [vmem:[%s7 + $0x28] sm:$0xff] %v3546
  %3579 = vst [vmem:[%s7 + $0x30] sm:$0xff] %v3547
  %3580 = vst [vmem:[%s7 + $0x38] sm:$0xff] %v3548
  %3581 = vst [vmem:[%s7 + $0x40] sm:$0xff] %v3549
  %3582 = vst [vmem:[%s7 + $0x48] sm:$0xff] %v3550
  %3583 = vst [vmem:[%s7 + $0x50] sm:$0xff] %v3551
  %3584 = vst [vmem:[%s7 + $0x58] sm:$0xff] %v3552
  %3585 = vst [vmem:[%s7 + $0x60] sm:$0xff] %v3553
  %3586 = vst [vmem:[%s7 + $0x68] sm:$0xff] %v3554
  %3587 = vst [vmem:[%s7 + $0x70] sm:$0xff] %v3555
  %3588 = vst [vmem:[%s7 + $0x78] sm:$0xff] %v3556
  %3589 = vst [vmem:[%s7 + $0x80] sm:$0xff] %v3557
  %3590 = vst [vmem:[%s7 + $0x88] sm:$0xff] %v3558
  %3591 = vst [vmem:[%s7 + $0x90] sm:$0xff] %v3559
  %3592 = vst [vmem:[%s7 + $0x98] sm:$0xff] %v3560
  %3593 = vst [vmem:[%s7 + $0xa0] sm:$0xff] %v3561
  %3594 = vst [vmem:[%s7 + $0xa8] sm:$0xff] %v3562
  %3595 = vst [vmem:[%s7 + $0xb0] sm:$0xff] %v3563
  %3596 = vst [vmem:[%s7 + $0xb8] sm:$0xff] %v3564
  %3597 = vst [vmem:[%s7 + $0xc0] sm:$0xff] %v3565
  %3598 = vst [vmem:[%s7 + $0xc8] sm:$0xff] %v3566
  %3599 = vst [vmem:[%s7 + $0xd0] sm:$0xff] %v3567
  %3600 = vst [vmem:[%s7 + $0xd8] sm:$0xff] %v3568
  %3601 = vst [vmem:[%s7 + $0xe0] sm:$0xff] %v3569
  %3602 = vst [vmem:[%s7 + $0xe8] sm:$0xff] %v3570
  %3603 = vst [vmem:[%s7 + $0xf0] sm:$0xff] %v3571
  %3604 = vst [vmem:[%s7 + $0xf8] sm:$0xff] %v3572
  %v3605 = vld [vmem:[%s8] sm:$0x1]
  %v3606 = vadd.f32 %v3605, %v3473
  %3607 = vst [vmem:[%s8] sm:$0x1] %v3606
  // Predicated region
  $region30: #{_forward.1} parent=0 // pred_check
    _
  $region31: #{_forward.1} parent=0 // pred_check_branch
    %3609 = sbr.rel (0) target = $region33
  $region32: #{_forward.1} parent=0 // pred_region
    _
  $region33: #{_forward.1} parent=0 // pred_fallthru
    _
  // Predicated region
  $region34: #{_forward.1} parent=0 // pred_check
    _
  $region35: #{_forward.1} parent=0 // pred_check_branch
    %3611 = sbr.rel (0) target = $region37
  $region36: #{_forward.1} parent=0 // pred_region
    _
  $region37: #{_forward.1} parent=0 // pred_fallthru
    _
  // Predicated region
  $region38: #{_forward.1} parent=0 // pred_check
    _
  $region39: #{_forward.1} parent=0 // pred_check_branch
    %3613 = sbr.rel (0) target = $region41
  $region40: #{_forward.1} parent=0 // pred_region
    _
  $region41: #{_forward.1} parent=0 // pred_fallthru
    _
  // Predicated region
  $region42: #{_forward.1} parent=0 // pred_check
    _
  $region43: #{_forward.1} parent=0 // pred_check_branch
    %3615 = sbr.rel (0) target = $region45
  $region44: #{_forward.1} parent=0 // pred_region
    _
  $region45: #{_forward.1} parent=0 // pred_fallthru
    _
  // Predicated region
  $region46: #{_forward.1} parent=0 // pred_check
    _
  $region47: #{_forward.1} parent=0 // pred_check_branch
    %3617 = sbr.rel (0) target = $region49
  $region48: #{_forward.1} parent=0 // pred_region
    _
  $region49: #{_forward.1} parent=0 // pred_fallthru
    _
  // Predicated region
  $region50: #{_forward.1} parent=0 // pred_check
    _
  $region51: #{_forward.1} parent=0 // pred_check_branch
    %3619 = sbr.rel (0) target = $region53
  $region52: #{_forward.1} parent=0 // pred_region
    _
  $region53: #{_forward.1} parent=0 // pred_fallthru
    _

</llo_original>
